<compile_context>
chip_gen: v5e
topology: v5e:2x2
jax: 0.10.0
libtpu: 0.0.40
codegen_flags: <defaults>
</compile_context>

<pallas_src>
import math

import jax
import jax.numpy as jnp
from jax.experimental import pallas as pl
from jax.experimental.pallas import tpu as pltpu

OUT_PAD = 128  # lane-dense padded width for the 2-wide decoder output


def _make_kernel(S, F, H, NH, L, cdt):
    DH = H // NH
    scale = 1.0 / math.sqrt(DH)
    f32 = jnp.float32

    def layer_norm(z, g, b, eps=1e-5):
        mu = jnp.mean(z, axis=-1, keepdims=True)
        var = jnp.mean((z - mu) ** 2, axis=-1, keepdims=True)
        return (z - mu) * jax.lax.rsqrt(var + eps) * g + b

    def kernel(x_ref, pe_ref, w_emb_ref, b_emb_ref,
               w_ih_ref, w_hh_ref, b_lstm_ref,
               w_q_ref, b_q_ref, w_k_ref, b_k_ref, w_v_ref, b_v_ref,
               w_o_ref, b_o_ref, ln1_g_ref, ln1_b_ref,
               w_ff1_ref, b_ff1_ref, w_ff2_ref, b_ff2_ref,
               ln2_g_ref, ln2_b_ref,
               w_d1_ref, b_d1_ref, w_d2_ref, b_d2_ref,
               out_ref):
        # ---------------- embedding: Linear(F -> H) ----------------
        x = x_ref[...]                                               # (S, F) f32
        emb = jnp.dot(x, w_emb_ref[...], preferred_element_type=f32) + b_emb_ref[...]

        # ---------------- LSTM (1 layer, unidirectional) ----------------
        # Input projections hoisted out of the recurrence, one per gate (i, f, g, o).
        gx = [jnp.dot(emb, w_ih_ref[k], preferred_element_type=f32) + b_lstm_ref[k]
              for k in range(4)]                                     # 4 x (S, H)
        whh = [w_hh_ref[k] for k in range(4)]                        # 4 x (H, H)

        h = jnp.zeros((1, H), f32)
        c = jnp.zeros((1, H), f32)
        rows = []
        for t in range(S):                                           # serial recurrence
            gi = gx[0][t:t + 1, :] + jnp.dot(h, whh[0], preferred_element_type=f32)
            gf = gx[1][t:t + 1, :] + jnp.dot(h, whh[1], preferred_element_type=f32)
            gg = gx[2][t:t + 1, :] + jnp.dot(h, whh[2], preferred_element_type=f32)
            go = gx[3][t:t + 1, :] + jnp.dot(h, whh[3], preferred_element_type=f32)
            c = jax.nn.sigmoid(gf) * c + jax.nn.sigmoid(gi) * jnp.tanh(gg)
            h = jax.nn.sigmoid(go) * jnp.tanh(c)
            rows.append(h)
        lstm_out = jnp.concatenate(rows, axis=0)                     # (S, H)

        # ---------------- positional encoding ----------------
        # TODO(synk): dropout (p=0.1) implemented as identity (eval mode).
        xx = lstm_out + pe_ref[...]                                  # (S, H)

        # ---------------- Transformer encoder: L post-LN layers, relu FFN ----------------
        for l in range(L):
            xc = xx.astype(cdt)
            q = jnp.dot(xc, w_q_ref[l], preferred_element_type=f32) + b_q_ref[l]
            k = jnp.dot(xc, w_k_ref[l], preferred_element_type=f32) + b_k_ref[l]
            v = jnp.dot(xc, w_v_ref[l], preferred_element_type=f32) + b_v_ref[l]
            heads = []
            for n in range(NH):
                sl = slice(n * DH, (n + 1) * DH)
                qh = (q[:, sl] * scale).astype(cdt)
                kh = k[:, sl].astype(cdt)
                vh = v[:, sl].astype(cdt)
                s = jax.lax.dot_general(qh, kh, (((1,), (1,)), ((), ())),
                                        preferred_element_type=f32)   # (S, S)
                s = s - jnp.max(s, axis=-1, keepdims=True)
                p = jnp.exp(s)
                p = p * pl.reciprocal(jnp.sum(p, axis=-1, keepdims=True), approx=True)
                heads.append(jnp.dot(p.astype(cdt), vh,
                                     preferred_element_type=f32))     # (S, DH)
            attn = jnp.concatenate(heads, axis=1)                      # (S, H)
            attn = (jnp.dot(attn.astype(cdt), w_o_ref[l], preferred_element_type=f32)
                    + b_o_ref[l])
            xx = layer_norm(xx + attn, ln1_g_ref[l], ln1_b_ref[l])
            ff = (jnp.dot(xx.astype(cdt), w_ff1_ref[l], preferred_element_type=f32)
                  + b_ff1_ref[l])
            ff = jnp.maximum(ff, 0.0)
            ff = (jnp.dot(ff.astype(cdt), w_ff2_ref[l], preferred_element_type=f32)
                  + b_ff2_ref[l])
            xx = layer_norm(xx + ff, ln2_g_ref[l], ln2_b_ref[l])

        # ---------------- last time step + decoder MLP ----------------
        last = xx[S - 1:S, :]                                          # (1, H), contiguous
        d1 = jnp.dot(last.astype(cdt), w_d1_ref[...], preferred_element_type=f32) + b_d1_ref[...]
        d1 = jnp.maximum(d1, 0.0)
        out_ref[...] = (jnp.dot(d1.astype(cdt), w_d2_ref[...], preferred_element_type=f32)
                        + b_d2_ref[...])                               # (1, OUT_PAD)

    return kernel


def deep_hedging_forward(x, params, *, nhead, num_layers, matmul_dtype=jnp.bfloat16):
    """x: (batch, seq, n_features) float32 -> (batch, 2) float32."""
    B, S, F = x.shape
    H = params["w_emb"].shape[1]
    H2 = params["w_d1"].shape[1]
    n_out = params["w_d2"].shape[1]
    cdt = matmul_dtype

    # pad the tiny decoder output projection to a lane-dense (…,128) width
    w_d2p = jnp.zeros((H2, OUT_PAD), jnp.float32).at[:, :n_out].set(params["w_d2"])
    b_d2p = jnp.zeros((1, OUT_PAD), jnp.float32).at[:, :n_out].set(params["b_d2"])

    p = dict(params)
    for name in ("w_q", "w_k", "w_v", "w_o", "w_ff1", "w_ff2", "w_d1"):
        p[name] = p[name].astype(cdt)          # bf16 matmul operands, f32 accumulation
    w_d2p = w_d2p.astype(cdt)

    rest_names = ["pe", "w_emb", "b_emb", "w_ih", "w_hh", "b_lstm",
                  "w_q", "b_q", "w_k", "b_k", "w_v", "b_v",
                  "w_o", "b_o", "ln1_g", "ln1_b",
                  "w_ff1", "b_ff1", "w_ff2", "b_ff2", "ln2_g", "ln2_b",
                  "w_d1", "b_d1"]
    rest = [p[name] for name in rest_names] + [w_d2p, b_d2p]

    def full_spec(a):
        nd = a.ndim
        return pl.BlockSpec(a.shape, lambda b, _nd=nd: (0,) * _nd)   # resident weights

    x_spec = pl.BlockSpec((None, S, F), lambda b: (b, 0, 0))          # one batch / program
    out_spec = pl.BlockSpec((None, 1, OUT_PAD), lambda b: (b, 0, 0))

    kernel = _make_kernel(S, F, H, nhead, num_layers, cdt)
    out = pl.pallas_call(
        kernel,
        out_shape=jax.ShapeDtypeStruct((B, 1, OUT_PAD), jnp.float32),
        grid=(B,),
        in_specs=[x_spec] + [full_spec(a) for a in rest],
        out_specs=out_spec,
        compiler_params=pltpu.CompilerParams(
            dimension_semantics=("parallel",),          # shard batch across TCs (v7x)
            vmem_limit_bytes=32 * 1024 * 1024),
    )(x.astype(jnp.float32), *rest)
    return out.reshape(B, OUT_PAD)[:, :n_out]


def init_params(key, n_features, hidden_dim, nhead, num_layers, seq_len):
    H, F, L = hidden_dim, n_features, num_layers
    H2 = H // 2
    keys = iter(jax.random.split(key, 32))

    def xavier(shape):
        fan_in, fan_out = shape[-2], shape[-1]
        std = math.sqrt(2.0 / (fan_in + fan_out))
        return (std * jax.random.normal(next(keys), shape)).astype(jnp.float32)

    # positional-encoding buffer (same construction as PositionalEncoding)
    pos = jnp.arange(seq_len, dtype=jnp.float32)[:, None]
    div = jnp.exp(jnp.arange(0, H, 2, dtype=jnp.float32) * (-math.log(10000.0) / H))
    pe = jnp.zeros((seq_len, H), jnp.float32)
    pe = pe.at[:, 0::2].set(jnp.sin(pos * div))
    pe = pe.at[:, 1::2].set(jnp.cos(pos * div))

    zeros = lambda s: jnp.zeros(s, jnp.float32)
    ones = lambda s: jnp.ones(s, jnp.float32)
    return {
        "pe": pe,
        # embedding Linear(F, H)   (weights stored (in, out): y = x @ W + b)
        "w_emb": xavier((F, H)), "b_emb": zeros((1, H)),
        # LSTM, per-gate stacks in PyTorch gate order (i, f, g, o); bias = b_ih + b_hh
        "w_ih": xavier((4, H, H)), "w_hh": xavier((4, H, H)), "b_lstm": zeros((4, 1, H)),
        # Transformer encoder layers, stacked along leading L axis
        "w_q": xavier((L, H, H)), "b_q": zeros((L, 1, H)),
        "w_k": xavier((L, H, H)), "b_k": zeros((L, 1, H)),
        "w_v": xavier((L, H, H)), "b_v": zeros((L, 1, H)),
        "w_o": xavier((L, H, H)), "b_o": zeros((L, 1, H)),
        "ln1_g": ones((L, 1, H)), "ln1_b": zeros((L, 1, H)),
        "w_ff1": xavier((L, H, 4 * H)), "b_ff1": zeros((L, 1, 4 * H)),
        "w_ff2": xavier((L, 4 * H, H)), "b_ff2": zeros((L, 1, H)),
        "ln2_g": ones((L, 1, H)), "ln2_b": zeros((L, 1, H)),
        # decoder: Linear(H, H//2) -> ReLU -> Linear(H//2, 2)
        "w_d1": xavier((H, H2)), "b_d1": zeros((1, H2)),
        "w_d2": xavier((H2, 2)), "b_d2": zeros((1, 2)),
    }


if __name__ == "__main__":
    # small shapes consistent with the module: batch=2, seq_len=8, n_features=4,
    # hidden_dim=32, nhead=4, num_layers=2
    B, S, F, H, NH, L = 2, 8, 4, 32, 4, 2

    key = jax.random.PRNGKey(0)
    kx, kp = jax.random.split(key)
    x = jax.random.normal(kx, (B, S, F), jnp.float32)
    params = init_params(kp, n_features=F, hidden_dim=H, nhead=NH,
                         num_layers=L, seq_len=S)

    out = deep_hedging_forward(x, params, nhead=NH, num_layers=L)
    out = jax.block_until_ready(out)

    assert out.shape == (B, 2), out.shape
    assert bool(jnp.all(jnp.isfinite(out)))
    print("KERNEL_OK")
</pallas_src>

<mosaic_0001>
module attributes {stable_mosaic.version = 11 : i64} {
  func.func @kernel(%arg0: i32, %arg1: memref<1x8x4xf32, #tpu.memory_space<vmem>>, %arg2: memref<8x32xf32, #tpu.memory_space<vmem>>, %arg3: memref<4x32xf32, #tpu.memory_space<vmem>>, %arg4: memref<1x32xf32, #tpu.memory_space<vmem>>, %arg5: memref<4x32x32xf32, #tpu.memory_space<vmem>>, %arg6: memref<4x32x32xf32, #tpu.memory_space<vmem>>, %arg7: memref<4x1x32xf32, #tpu.memory_space<vmem>>, %arg8: memref<2x32x32xbf16, #tpu.memory_space<vmem>>, %arg9: memref<2x1x32xf32, #tpu.memory_space<vmem>>, %arg10: memref<2x32x32xbf16, #tpu.memory_space<vmem>>, %arg11: memref<2x1x32xf32, #tpu.memory_space<vmem>>, %arg12: memref<2x32x32xbf16, #tpu.memory_space<vmem>>, %arg13: memref<2x1x32xf32, #tpu.memory_space<vmem>>, %arg14: memref<2x32x32xbf16, #tpu.memory_space<vmem>>, %arg15: memref<2x1x32xf32, #tpu.memory_space<vmem>>, %arg16: memref<2x1x32xf32, #tpu.memory_space<vmem>>, %arg17: memref<2x1x32xf32, #tpu.memory_space<vmem>>, %arg18: memref<2x32x128xbf16, #tpu.memory_space<vmem>>, %arg19: memref<2x1x128xf32, #tpu.memory_space<vmem>>, %arg20: memref<2x128x32xbf16, #tpu.memory_space<vmem>>, %arg21: memref<2x1x32xf32, #tpu.memory_space<vmem>>, %arg22: memref<2x1x32xf32, #tpu.memory_space<vmem>>, %arg23: memref<2x1x32xf32, #tpu.memory_space<vmem>>, %arg24: memref<32x16xbf16, #tpu.memory_space<vmem>>, %arg25: memref<1x16xf32, #tpu.memory_space<vmem>>, %arg26: memref<16x128xbf16, #tpu.memory_space<vmem>>, %arg27: memref<1x128xf32, #tpu.memory_space<vmem>>, %arg28: memref<1x1x128xf32, #tpu.memory_space<vmem>>) attributes {dimension_semantics = [#tpu.dimension_semantics<parallel>], iteration_bounds = array<i64: 2>, scalar_prefetch = 0 : i64, scratch_operands = 0 : i64, tpu.core_type = #tpu.core_type<tc>, window_params = [{transform_indices = @transform_0, window_bounds = array<i64: 1, 8, 4>}, {pipeline_mode = #tpu.pipeline_mode<synchronous>, transform_indices = @transform_1, window_bounds = array<i64: 8, 32>}, {pipeline_mode = #tpu.pipeline_mode<synchronous>, transform_indices = @transform_2, window_bounds = array<i64: 4, 32>}, {pipeline_mode = #tpu.pipeline_mode<synchronous>, transform_indices = @transform_3, window_bounds = array<i64: 1, 32>}, {pipeline_mode = #tpu.pipeline_mode<synchronous>, transform_indices = @transform_4, window_bounds = array<i64: 4, 32, 32>}, {pipeline_mode = #tpu.pipeline_mode<synchronous>, transform_indices = @transform_5, window_bounds = array<i64: 4, 32, 32>}, {pipeline_mode = #tpu.pipeline_mode<synchronous>, transform_indices = @transform_6, window_bounds = array<i64: 4, 1, 32>}, {pipeline_mode = #tpu.pipeline_mode<synchronous>, transform_indices = @transform_7, window_bounds = array<i64: 2, 32, 32>}, {pipeline_mode = #tpu.pipeline_mode<synchronous>, transform_indices = @transform_8, window_bounds = array<i64: 2, 1, 32>}, {pipeline_mode = #tpu.pipeline_mode<synchronous>, transform_indices = @transform_9, window_bounds = array<i64: 2, 32, 32>}, {pipeline_mode = #tpu.pipeline_mode<synchronous>, transform_indices = @transform_10, window_bounds = array<i64: 2, 1, 32>}, {pipeline_mode = #tpu.pipeline_mode<synchronous>, transform_indices = @transform_11, window_bounds = array<i64: 2, 32, 32>}, {pipeline_mode = #tpu.pipeline_mode<synchronous>, transform_indices = @transform_12, window_bounds = array<i64: 2, 1, 32>}, {pipeline_mode = #tpu.pipeline_mode<synchronous>, transform_indices = @transform_13, window_bounds = array<i64: 2, 32, 32>}, {pipeline_mode = #tpu.pipeline_mode<synchronous>, transform_indices = @transform_14, window_bounds = array<i64: 2, 1, 32>}, {pipeline_mode = #tpu.pipeline_mode<synchronous>, transform_indices = @transform_15, window_bounds = array<i64: 2, 1, 32>}, {pipeline_mode = #tpu.pipeline_mode<synchronous>, transform_indices = @transform_16, window_bounds = array<i64: 2, 1, 32>}, {pipeline_mode = #tpu.pipeline_mode<synchronous>, transform_indices = @transform_17, window_bounds = array<i64: 2, 32, 128>}, {pipeline_mode = #tpu.pipeline_mode<synchronous>, transform_indices = @transform_18, window_bounds = array<i64: 2, 1, 128>}, {pipeline_mode = #tpu.pipeline_mode<synchronous>, transform_indices = @transform_19, window_bounds = array<i64: 2, 128, 32>}, {pipeline_mode = #tpu.pipeline_mode<synchronous>, transform_indices = @transform_20, window_bounds = array<i64: 2, 1, 32>}, {pipeline_mode = #tpu.pipeline_mode<synchronous>, transform_indices = @transform_21, window_bounds = array<i64: 2, 1, 32>}, {pipeline_mode = #tpu.pipeline_mode<synchronous>, transform_indices = @transform_22, window_bounds = array<i64: 2, 1, 32>}, {pipeline_mode = #tpu.pipeline_mode<synchronous>, transform_indices = @transform_23, window_bounds = array<i64: 32, 16>}, {pipeline_mode = #tpu.pipeline_mode<synchronous>, transform_indices = @transform_24, window_bounds = array<i64: 1, 16>}, {pipeline_mode = #tpu.pipeline_mode<synchronous>, transform_indices = @transform_25, window_bounds = array<i64: 16, 128>}, {pipeline_mode = #tpu.pipeline_mode<synchronous>, transform_indices = @transform_26, window_bounds = array<i64: 1, 128>}, {transform_indices = @transform_27, window_bounds = array<i64: 1, 1, 128>}]} {
    %c0 = arith.constant 0 : index
    %c0_0 = arith.constant 0 : index
    %c0_1 = arith.constant 0 : index
    %0 = vector.load %arg1[%c0, %c0_0, %c0_1] : memref<1x8x4xf32, #tpu.memory_space<vmem>>, vector<1x8x4xf32>
    %1 = vector.shape_cast %0 : vector<1x8x4xf32> to vector<8x4xf32>
    %c0_2 = arith.constant 0 : index
    %c0_3 = arith.constant 0 : index
    %2 = vector.load %arg3[%c0_2, %c0_3] : memref<4x32xf32, #tpu.memory_space<vmem>>, vector<4x32xf32>
    %cst = arith.constant dense<0.000000e+00> : vector<8x32xf32>
    %3 = tpu.matmul %1, %2, %cst {dimension_numbers = #tpu.dot_dimension_numbers<[1], [0], [0], [1], [0, 0, 1, 1], [], []>} : vector<8x4xf32>, vector<4x32xf32>, vector<8x32xf32> -> vector<8x32xf32>
    %c0_4 = arith.constant 0 : index
    %c0_5 = arith.constant 0 : index
    %4 = vector.load %arg4[%c0_4, %c0_5] : memref<1x32xf32, #tpu.memory_space<vmem>>, vector<1x32xf32>
    %5 = vector.broadcast %4 : vector<1x32xf32> to vector<8x32xf32>
    %6 = arith.addf %3, %5 : vector<8x32xf32>
    %c0_6 = arith.constant 0 : index
    %c0_7 = arith.constant 0 : index
    %c0_8 = arith.constant 0 : index
    %7 = vector.load %arg5[%c0_6, %c0_7, %c0_8] : memref<4x32x32xf32, #tpu.memory_space<vmem>>, vector<1x32x32xf32>
    %8 = vector.shape_cast %7 : vector<1x32x32xf32> to vector<32x32xf32>
    %cst_9 = arith.constant dense<0.000000e+00> : vector<8x32xf32>
    %9 = tpu.matmul %6, %8, %cst_9 {dimension_numbers = #tpu.dot_dimension_numbers<[1], [0], [0], [1], [0, 0, 1, 1], [], []>} : vector<8x32xf32>, vector<32x32xf32>, vector<8x32xf32> -> vector<8x32xf32>
    %c0_10 = arith.constant 0 : index
    %c0_11 = arith.constant 0 : index
    %c0_12 = arith.constant 0 : index
    %10 = vector.load %arg7[%c0_10, %c0_11, %c0_12] : memref<4x1x32xf32, #tpu.memory_space<vmem>>, vector<1x1x32xf32>
    %11 = vector.shape_cast %10 : vector<1x1x32xf32> to vector<1x32xf32>
    %12 = vector.broadcast %11 : vector<1x32xf32> to vector<8x32xf32>
    %13 = arith.addf %9, %12 : vector<8x32xf32>
    %c1 = arith.constant 1 : index
    %c0_13 = arith.constant 0 : index
    %c0_14 = arith.constant 0 : index
    %14 = vector.load %arg5[%c1, %c0_13, %c0_14] : memref<4x32x32xf32, #tpu.memory_space<vmem>>, vector<1x32x32xf32>
    %15 = vector.shape_cast %14 : vector<1x32x32xf32> to vector<32x32xf32>
    %cst_15 = arith.constant dense<0.000000e+00> : vector<8x32xf32>
    %16 = tpu.matmul %6, %15, %cst_15 {dimension_numbers = #tpu.dot_dimension_numbers<[1], [0], [0], [1], [0, 0, 1, 1], [], []>} : vector<8x32xf32>, vector<32x32xf32>, vector<8x32xf32> -> vector<8x32xf32>
    %c1_16 = arith.constant 1 : index
    %c0_17 = arith.constant 0 : index
    %c0_18 = arith.constant 0 : index
    %17 = vector.load %arg7[%c1_16, %c0_17, %c0_18] : memref<4x1x32xf32, #tpu.memory_space<vmem>>, vector<1x1x32xf32>
    %18 = vector.shape_cast %17 : vector<1x1x32xf32> to vector<1x32xf32>
    %19 = vector.broadcast %18 : vector<1x32xf32> to vector<8x32xf32>
    %20 = arith.addf %16, %19 : vector<8x32xf32>
    %c2 = arith.constant 2 : index
    %c0_19 = arith.constant 0 : index
    %c0_20 = arith.constant 0 : index
    %21 = vector.load %arg5[%c2, %c0_19, %c0_20] : memref<4x32x32xf32, #tpu.memory_space<vmem>>, vector<1x32x32xf32>
    %22 = vector.shape_cast %21 : vector<1x32x32xf32> to vector<32x32xf32>
    %cst_21 = arith.constant dense<0.000000e+00> : vector<8x32xf32>
    %23 = tpu.matmul %6, %22, %cst_21 {dimension_numbers = #tpu.dot_dimension_numbers<[1], [0], [0], [1], [0, 0, 1, 1], [], []>} : vector<8x32xf32>, vector<32x32xf32>, vector<8x32xf32> -> vector<8x32xf32>
    %c2_22 = arith.constant 2 : index
    %c0_23 = arith.constant 0 : index
    %c0_24 = arith.constant 0 : index
    %24 = vector.load %arg7[%c2_22, %c0_23, %c0_24] : memref<4x1x32xf32, #tpu.memory_space<vmem>>, vector<1x1x32xf32>
    %25 = vector.shape_cast %24 : vector<1x1x32xf32> to vector<1x32xf32>
    %26 = vector.broadcast %25 : vector<1x32xf32> to vector<8x32xf32>
    %27 = arith.addf %23, %26 : vector<8x32xf32>
    %c3 = arith.constant 3 : index
    %c0_25 = arith.constant 0 : index
    %c0_26 = arith.constant 0 : index
    %28 = vector.load %arg5[%c3, %c0_25, %c0_26] : memref<4x32x32xf32, #tpu.memory_space<vmem>>, vector<1x32x32xf32>
    %29 = vector.shape_cast %28 : vector<1x32x32xf32> to vector<32x32xf32>
    %cst_27 = arith.constant dense<0.000000e+00> : vector<8x32xf32>
    %30 = tpu.matmul %6, %29, %cst_27 {dimension_numbers = #tpu.dot_dimension_numbers<[1], [0], [0], [1], [0, 0, 1, 1], [], []>} : vector<8x32xf32>, vector<32x32xf32>, vector<8x32xf32> -> vector<8x32xf32>
    %c3_28 = arith.constant 3 : index
    %c0_29 = arith.constant 0 : index
    %c0_30 = arith.constant 0 : index
    %31 = vector.load %arg7[%c3_28, %c0_29, %c0_30] : memref<4x1x32xf32, #tpu.memory_space<vmem>>, vector<1x1x32xf32>
    %32 = vector.shape_cast %31 : vector<1x1x32xf32> to vector<1x32xf32>
    %33 = vector.broadcast %32 : vector<1x32xf32> to vector<8x32xf32>
    %34 = arith.addf %30, %33 : vector<8x32xf32>
    %c0_31 = arith.constant 0 : index
    %c0_32 = arith.constant 0 : index
    %c0_33 = arith.constant 0 : index
    %35 = vector.load %arg6[%c0_31, %c0_32, %c0_33] : memref<4x32x32xf32, #tpu.memory_space<vmem>>, vector<1x32x32xf32>
    %36 = vector.shape_cast %35 : vector<1x32x32xf32> to vector<32x32xf32>
    %c1_34 = arith.constant 1 : index
    %c0_35 = arith.constant 0 : index
    %c0_36 = arith.constant 0 : index
    %37 = vector.load %arg6[%c1_34, %c0_35, %c0_36] : memref<4x32x32xf32, #tpu.memory_space<vmem>>, vector<1x32x32xf32>
    %38 = vector.shape_cast %37 : vector<1x32x32xf32> to vector<32x32xf32>
    %c2_37 = arith.constant 2 : index
    %c0_38 = arith.constant 0 : index
    %c0_39 = arith.constant 0 : index
    %39 = vector.load %arg6[%c2_37, %c0_38, %c0_39] : memref<4x32x32xf32, #tpu.memory_space<vmem>>, vector<1x32x32xf32>
    %40 = vector.shape_cast %39 : vector<1x32x32xf32> to vector<32x32xf32>
    %c3_40 = arith.constant 3 : index
    %c0_41 = arith.constant 0 : index
    %c0_42 = arith.constant 0 : index
    %41 = vector.load %arg6[%c3_40, %c0_41, %c0_42] : memref<4x32x32xf32, #tpu.memory_space<vmem>>, vector<1x32x32xf32>
    %42 = vector.shape_cast %41 : vector<1x32x32xf32> to vector<32x32xf32>
    %cst_43 = arith.constant 0.000000e+00 : f32
    %43 = vector.broadcast %cst_43 : f32 to vector<1x32xf32>
    %cst_44 = arith.constant 0.000000e+00 : f32
    %44 = vector.broadcast %cst_44 : f32 to vector<1x32xf32>
    %45 = vector.extract_strided_slice %13 {offsets = [0, 0], sizes = [1, 32], strides = [1, 1]} : vector<8x32xf32> to vector<1x32xf32>
    %cst_45 = arith.constant dense<0.000000e+00> : vector<1x32xf32>
    %46 = tpu.matmul %43, %36, %cst_45 {dimension_numbers = #tpu.dot_dimension_numbers<[1], [0], [0], [1], [0, 0, 1, 1], [], []>} : vector<1x32xf32>, vector<32x32xf32>, vector<1x32xf32> -> vector<1x32xf32>
    %47 = arith.addf %45, %46 : vector<1x32xf32>
    %48 = vector.extract_strided_slice %20 {offsets = [0, 0], sizes = [1, 32], strides = [1, 1]} : vector<8x32xf32> to vector<1x32xf32>
    %cst_46 = arith.constant dense<0.000000e+00> : vector<1x32xf32>
    %49 = tpu.matmul %43, %38, %cst_46 {dimension_numbers = #tpu.dot_dimension_numbers<[1], [0], [0], [1], [0, 0, 1, 1], [], []>} : vector<1x32xf32>, vector<32x32xf32>, vector<1x32xf32> -> vector<1x32xf32>
    %50 = arith.addf %48, %49 : vector<1x32xf32>
    %51 = vector.extract_strided_slice %27 {offsets = [0, 0], sizes = [1, 32], strides = [1, 1]} : vector<8x32xf32> to vector<1x32xf32>
    %cst_47 = arith.constant dense<0.000000e+00> : vector<1x32xf32>
    %52 = tpu.matmul %43, %40, %cst_47 {dimension_numbers = #tpu.dot_dimension_numbers<[1], [0], [0], [1], [0, 0, 1, 1], [], []>} : vector<1x32xf32>, vector<32x32xf32>, vector<1x32xf32> -> vector<1x32xf32>
    %53 = arith.addf %51, %52 : vector<1x32xf32>
    %54 = vector.extract_strided_slice %34 {offsets = [0, 0], sizes = [1, 32], strides = [1, 1]} : vector<8x32xf32> to vector<1x32xf32>
    %cst_48 = arith.constant dense<0.000000e+00> : vector<1x32xf32>
    %55 = tpu.matmul %43, %42, %cst_48 {dimension_numbers = #tpu.dot_dimension_numbers<[1], [0], [0], [1], [0, 0, 1, 1], [], []>} : vector<1x32xf32>, vector<32x32xf32>, vector<1x32xf32> -> vector<1x32xf32>
    %56 = arith.addf %54, %55 : vector<1x32xf32>
    %57 = arith.negf %50 : vector<1x32xf32>
    %58 = math.exp %57 : vector<1x32xf32>
    %cst_49 = arith.constant 1.000000e+00 : f32
    %59 = vector.broadcast %cst_49 : f32 to vector<1x32xf32>
    %60 = arith.addf %59, %58 : vector<1x32xf32>
    %61 = arith.divf %59, %60 : vector<1x32xf32>
    %62 = arith.mulf %61, %44 : vector<1x32xf32>
    %63 = arith.negf %47 : vector<1x32xf32>
    %64 = math.exp %63 : vector<1x32xf32>
    %cst_50 = arith.constant 1.000000e+00 : f32
    %65 = vector.broadcast %cst_50 : f32 to vector<1x32xf32>
    %66 = arith.addf %65, %64 : vector<1x32xf32>
    %67 = arith.divf %65, %66 : vector<1x32xf32>
    %68 = math.tanh %53 : vector<1x32xf32>
    %69 = arith.mulf %67, %68 : vector<1x32xf32>
    %70 = arith.addf %62, %69 : vector<1x32xf32>
    %71 = arith.negf %56 : vector<1x32xf32>
    %72 = math.exp %71 : vector<1x32xf32>
    %cst_51 = arith.constant 1.000000e+00 : f32
    %73 = vector.broadcast %cst_51 : f32 to vector<1x32xf32>
    %74 = arith.addf %73, %72 : vector<1x32xf32>
    %75 = arith.divf %73, %74 : vector<1x32xf32>
    %76 = math.tanh %70 : vector<1x32xf32>
    %77 = arith.mulf %75, %76 : vector<1x32xf32>
    %78 = vector.extract_strided_slice %13 {offsets = [1, 0], sizes = [1, 32], strides = [1, 1]} : vector<8x32xf32> to vector<1x32xf32>
    %cst_52 = arith.constant dense<0.000000e+00> : vector<1x32xf32>
    %79 = tpu.matmul %77, %36, %cst_52 {dimension_numbers = #tpu.dot_dimension_numbers<[1], [0], [0], [1], [0, 0, 1, 1], [], []>} : vector<1x32xf32>, vector<32x32xf32>, vector<1x32xf32> -> vector<1x32xf32>
    %80 = arith.addf %78, %79 : vector<1x32xf32>
    %81 = vector.extract_strided_slice %20 {offsets = [1, 0], sizes = [1, 32], strides = [1, 1]} : vector<8x32xf32> to vector<1x32xf32>
    %cst_53 = arith.constant dense<0.000000e+00> : vector<1x32xf32>
    %82 = tpu.matmul %77, %38, %cst_53 {dimension_numbers = #tpu.dot_dimension_numbers<[1], [0], [0], [1], [0, 0, 1, 1], [], []>} : vector<1x32xf32>, vector<32x32xf32>, vector<1x32xf32> -> vector<1x32xf32>
    %83 = arith.addf %81, %82 : vector<1x32xf32>
    %84 = vector.extract_strided_slice %27 {offsets = [1, 0], sizes = [1, 32], strides = [1, 1]} : vector<8x32xf32> to vector<1x32xf32>
    %cst_54 = arith.constant dense<0.000000e+00> : vector<1x32xf32>
    %85 = tpu.matmul %77, %40, %cst_54 {dimension_numbers = #tpu.dot_dimension_numbers<[1], [0], [0], [1], [0, 0, 1, 1], [], []>} : vector<1x32xf32>, vector<32x32xf32>, vector<1x32xf32> -> vector<1x32xf32>
    %86 = arith.addf %84, %85 : vector<1x32xf32>
    %87 = vector.extract_strided_slice %34 {offsets = [1, 0], sizes = [1, 32], strides = [1, 1]} : vector<8x32xf32> to vector<1x32xf32>
    %cst_55 = arith.constant dense<0.000000e+00> : vector<1x32xf32>
    %88 = tpu.matmul %77, %42, %cst_55 {dimension_numbers = #tpu.dot_dimension_numbers<[1], [0], [0], [1], [0, 0, 1, 1], [], []>} : vector<1x32xf32>, vector<32x32xf32>, vector<1x32xf32> -> vector<1x32xf32>
    %89 = arith.addf %87, %88 : vector<1x32xf32>
    %90 = arith.negf %83 : vector<1x32xf32>
    %91 = math.exp %90 : vector<1x32xf32>
    %cst_56 = arith.constant 1.000000e+00 : f32
    %92 = vector.broadcast %cst_56 : f32 to vector<1x32xf32>
    %93 = arith.addf %92, %91 : vector<1x32xf32>
    %94 = arith.divf %92, %93 : vector<1x32xf32>
    %95 = arith.mulf %94, %70 : vector<1x32xf32>
    %96 = arith.negf %80 : vector<1x32xf32>
    %97 = math.exp %96 : vector<1x32xf32>
    %cst_57 = arith.constant 1.000000e+00 : f32
    %98 = vector.broadcast %cst_57 : f32 to vector<1x32xf32>
    %99 = arith.addf %98, %97 : vector<1x32xf32>
    %100 = arith.divf %98, %99 : vector<1x32xf32>
    %101 = math.tanh %86 : vector<1x32xf32>
    %102 = arith.mulf %100, %101 : vector<1x32xf32>
    %103 = arith.addf %95, %102 : vector<1x32xf32>
    %104 = arith.negf %89 : vector<1x32xf32>
    %105 = math.exp %104 : vector<1x32xf32>
    %cst_58 = arith.constant 1.000000e+00 : f32
    %106 = vector.broadcast %cst_58 : f32 to vector<1x32xf32>
    %107 = arith.addf %106, %105 : vector<1x32xf32>
    %108 = arith.divf %106, %107 : vector<1x32xf32>
    %109 = math.tanh %103 : vector<1x32xf32>
    %110 = arith.mulf %108, %109 : vector<1x32xf32>
    %111 = vector.extract_strided_slice %13 {offsets = [2, 0], sizes = [1, 32], strides = [1, 1]} : vector<8x32xf32> to vector<1x32xf32>
    %cst_59 = arith.constant dense<0.000000e+00> : vector<1x32xf32>
    %112 = tpu.matmul %110, %36, %cst_59 {dimension_numbers = #tpu.dot_dimension_numbers<[1], [0], [0], [1], [0, 0, 1, 1], [], []>} : vector<1x32xf32>, vector<32x32xf32>, vector<1x32xf32> -> vector<1x32xf32>
    %113 = arith.addf %111, %112 : vector<1x32xf32>
    %114 = vector.extract_strided_slice %20 {offsets = [2, 0], sizes = [1, 32], strides = [1, 1]} : vector<8x32xf32> to vector<1x32xf32>
    %cst_60 = arith.constant dense<0.000000e+00> : vector<1x32xf32>
    %115 = tpu.matmul %110, %38, %cst_60 {dimension_numbers = #tpu.dot_dimension_numbers<[1], [0], [0], [1], [0, 0, 1, 1], [], []>} : vector<1x32xf32>, vector<32x32xf32>, vector<1x32xf32> -> vector<1x32xf32>
    %116 = arith.addf %114, %115 : vector<1x32xf32>
    %117 = vector.extract_strided_slice %27 {offsets = [2, 0], sizes = [1, 32], strides = [1, 1]} : vector<8x32xf32> to vector<1x32xf32>
    %cst_61 = arith.constant dense<0.000000e+00> : vector<1x32xf32>
    %118 = tpu.matmul %110, %40, %cst_61 {dimension_numbers = #tpu.dot_dimension_numbers<[1], [0], [0], [1], [0, 0, 1, 1], [], []>} : vector<1x32xf32>, vector<32x32xf32>, vector<1x32xf32> -> vector<1x32xf32>
    %119 = arith.addf %117, %118 : vector<1x32xf32>
    %120 = vector.extract_strided_slice %34 {offsets = [2, 0], sizes = [1, 32], strides = [1, 1]} : vector<8x32xf32> to vector<1x32xf32>
    %cst_62 = arith.constant dense<0.000000e+00> : vector<1x32xf32>
    %121 = tpu.matmul %110, %42, %cst_62 {dimension_numbers = #tpu.dot_dimension_numbers<[1], [0], [0], [1], [0, 0, 1, 1], [], []>} : vector<1x32xf32>, vector<32x32xf32>, vector<1x32xf32> -> vector<1x32xf32>
    %122 = arith.addf %120, %121 : vector<1x32xf32>
    %123 = arith.negf %116 : vector<1x32xf32>
    %124 = math.exp %123 : vector<1x32xf32>
    %cst_63 = arith.constant 1.000000e+00 : f32
    %125 = vector.broadcast %cst_63 : f32 to vector<1x32xf32>
    %126 = arith.addf %125, %124 : vector<1x32xf32>
    %127 = arith.divf %125, %126 : vector<1x32xf32>
    %128 = arith.mulf %127, %103 : vector<1x32xf32>
    %129 = arith.negf %113 : vector<1x32xf32>
    %130 = math.exp %129 : vector<1x32xf32>
    %cst_64 = arith.constant 1.000000e+00 : f32
    %131 = vector.broadcast %cst_64 : f32 to vector<1x32xf32>
    %132 = arith.addf %131, %130 : vector<1x32xf32>
    %133 = arith.divf %131, %132 : vector<1x32xf32>
    %134 = math.tanh %119 : vector<1x32xf32>
    %135 = arith.mulf %133, %134 : vector<1x32xf32>
    %136 = arith.addf %128, %135 : vector<1x32xf32>
    %137 = arith.negf %122 : vector<1x32xf32>
    %138 = math.exp %137 : vector<1x32xf32>
    %cst_65 = arith.constant 1.000000e+00 : f32
    %139 = vector.broadcast %cst_65 : f32 to vector<1x32xf32>
    %140 = arith.addf %139, %138 : vector<1x32xf32>
    %141 = arith.divf %139, %140 : vector<1x32xf32>
    %142 = math.tanh %136 : vector<1x32xf32>
    %143 = arith.mulf %141, %142 : vector<1x32xf32>
    %144 = vector.extract_strided_slice %13 {offsets = [3, 0], sizes = [1, 32], strides = [1, 1]} : vector<8x32xf32> to vector<1x32xf32>
    %cst_66 = arith.constant dense<0.000000e+00> : vector<1x32xf32>
    %145 = tpu.matmul %143, %36, %cst_66 {dimension_numbers = #tpu.dot_dimension_numbers<[1], [0], [0], [1], [0, 0, 1, 1], [], []>} : vector<1x32xf32>, vector<32x32xf32>, vector<1x32xf32> -> vector<1x32xf32>
    %146 = arith.addf %144, %145 : vector<1x32xf32>
    %147 = vector.extract_strided_slice %20 {offsets = [3, 0], sizes = [1, 32], strides = [1, 1]} : vector<8x32xf32> to vector<1x32xf32>
    %cst_67 = arith.constant dense<0.000000e+00> : vector<1x32xf32>
    %148 = tpu.matmul %143, %38, %cst_67 {dimension_numbers = #tpu.dot_dimension_numbers<[1], [0], [0], [1], [0, 0, 1, 1], [], []>} : vector<1x32xf32>, vector<32x32xf32>, vector<1x32xf32> -> vector<1x32xf32>
    %149 = arith.addf %147, %148 : vector<1x32xf32>
    %150 = vector.extract_strided_slice %27 {offsets = [3, 0], sizes = [1, 32], strides = [1, 1]} : vector<8x32xf32> to vector<1x32xf32>
    %cst_68 = arith.constant dense<0.000000e+00> : vector<1x32xf32>
    %151 = tpu.matmul %143, %40, %cst_68 {dimension_numbers = #tpu.dot_dimension_numbers<[1], [0], [0], [1], [0, 0, 1, 1], [], []>} : vector<1x32xf32>, vector<32x32xf32>, vector<1x32xf32> -> vector<1x32xf32>
    %152 = arith.addf %150, %151 : vector<1x32xf32>
    %153 = vector.extract_strided_slice %34 {offsets = [3, 0], sizes = [1, 32], strides = [1, 1]} : vector<8x32xf32> to vector<1x32xf32>
    %cst_69 = arith.constant dense<0.000000e+00> : vector<1x32xf32>
    %154 = tpu.matmul %143, %42, %cst_69 {dimension_numbers = #tpu.dot_dimension_numbers<[1], [0], [0], [1], [0, 0, 1, 1], [], []>} : vector<1x32xf32>, vector<32x32xf32>, vector<1x32xf32> -> vector<1x32xf32>
    %155 = arith.addf %153, %154 : vector<1x32xf32>
    %156 = arith.negf %149 : vector<1x32xf32>
    %157 = math.exp %156 : vector<1x32xf32>
    %cst_70 = arith.constant 1.000000e+00 : f32
    %158 = vector.broadcast %cst_70 : f32 to vector<1x32xf32>
    %159 = arith.addf %158, %157 : vector<1x32xf32>
    %160 = arith.divf %158, %159 : vector<1x32xf32>
    %161 = arith.mulf %160, %136 : vector<1x32xf32>
    %162 = arith.negf %146 : vector<1x32xf32>
    %163 = math.exp %162 : vector<1x32xf32>
    %cst_71 = arith.constant 1.000000e+00 : f32
    %164 = vector.broadcast %cst_71 : f32 to vector<1x32xf32>
    %165 = arith.addf %164, %163 : vector<1x32xf32>
    %166 = arith.divf %164, %165 : vector<1x32xf32>
    %167 = math.tanh %152 : vector<1x32xf32>
    %168 = arith.mulf %166, %167 : vector<1x32xf32>
    %169 = arith.addf %161, %168 : vector<1x32xf32>
    %170 = arith.negf %155 : vector<1x32xf32>
    %171 = math.exp %170 : vector<1x32xf32>
    %cst_72 = arith.constant 1.000000e+00 : f32
    %172 = vector.broadcast %cst_72 : f32 to vector<1x32xf32>
    %173 = arith.addf %172, %171 : vector<1x32xf32>
    %174 = arith.divf %172, %173 : vector<1x32xf32>
    %175 = math.tanh %169 : vector<1x32xf32>
    %176 = arith.mulf %174, %175 : vector<1x32xf32>
    %177 = vector.extract_strided_slice %13 {offsets = [4, 0], sizes = [1, 32], strides = [1, 1]} : vector<8x32xf32> to vector<1x32xf32>
    %cst_73 = arith.constant dense<0.000000e+00> : vector<1x32xf32>
    %178 = tpu.matmul %176, %36, %cst_73 {dimension_numbers = #tpu.dot_dimension_numbers<[1], [0], [0], [1], [0, 0, 1, 1], [], []>} : vector<1x32xf32>, vector<32x32xf32>, vector<1x32xf32> -> vector<1x32xf32>
    %179 = arith.addf %177, %178 : vector<1x32xf32>
    %180 = vector.extract_strided_slice %20 {offsets = [4, 0], sizes = [1, 32], strides = [1, 1]} : vector<8x32xf32> to vector<1x32xf32>
    %cst_74 = arith.constant dense<0.000000e+00> : vector<1x32xf32>
    %181 = tpu.matmul %176, %38, %cst_74 {dimension_numbers = #tpu.dot_dimension_numbers<[1], [0], [0], [1], [0, 0, 1, 1], [], []>} : vector<1x32xf32>, vector<32x32xf32>, vector<1x32xf32> -> vector<1x32xf32>
    %182 = arith.addf %180, %181 : vector<1x32xf32>
    %183 = vector.extract_strided_slice %27 {offsets = [4, 0], sizes = [1, 32], strides = [1, 1]} : vector<8x32xf32> to vector<1x32xf32>
    %cst_75 = arith.constant dense<0.000000e+00> : vector<1x32xf32>
    %184 = tpu.matmul %176, %40, %cst_75 {dimension_numbers = #tpu.dot_dimension_numbers<[1], [0], [0], [1], [0, 0, 1, 1], [], []>} : vector<1x32xf32>, vector<32x32xf32>, vector<1x32xf32> -> vector<1x32xf32>
    %185 = arith.addf %183, %184 : vector<1x32xf32>
    %186 = vector.extract_strided_slice %34 {offsets = [4, 0], sizes = [1, 32], strides = [1, 1]} : vector<8x32xf32> to vector<1x32xf32>
    %cst_76 = arith.constant dense<0.000000e+00> : vector<1x32xf32>
    %187 = tpu.matmul %176, %42, %cst_76 {dimension_numbers = #tpu.dot_dimension_numbers<[1], [0], [0], [1], [0, 0, 1, 1], [], []>} : vector<1x32xf32>, vector<32x32xf32>, vector<1x32xf32> -> vector<1x32xf32>
    %188 = arith.addf %186, %187 : vector<1x32xf32>
    %189 = arith.negf %182 : vector<1x32xf32>
    %190 = math.exp %189 : vector<1x32xf32>
    %cst_77 = arith.constant 1.000000e+00 : f32
    %191 = vector.broadcast %cst_77 : f32 to vector<1x32xf32>
    %192 = arith.addf %191, %190 : vector<1x32xf32>
    %193 = arith.divf %191, %192 : vector<1x32xf32>
    %194 = arith.mulf %193, %169 : vector<1x32xf32>
    %195 = arith.negf %179 : vector<1x32xf32>
    %196 = math.exp %195 : vector<1x32xf32>
    %cst_78 = arith.constant 1.000000e+00 : f32
    %197 = vector.broadcast %cst_78 : f32 to vector<1x32xf32>
    %198 = arith.addf %197, %196 : vector<1x32xf32>
    %199 = arith.divf %197, %198 : vector<1x32xf32>
    %200 = math.tanh %185 : vector<1x32xf32>
    %201 = arith.mulf %199, %200 : vector<1x32xf32>
    %202 = arith.addf %194, %201 : vector<1x32xf32>
    %203 = arith.negf %188 : vector<1x32xf32>
    %204 = math.exp %203 : vector<1x32xf32>
    %cst_79 = arith.constant 1.000000e+00 : f32
    %205 = vector.broadcast %cst_79 : f32 to vector<1x32xf32>
    %206 = arith.addf %205, %204 : vector<1x32xf32>
    %207 = arith.divf %205, %206 : vector<1x32xf32>
    %208 = math.tanh %202 : vector<1x32xf32>
    %209 = arith.mulf %207, %208 : vector<1x32xf32>
    %210 = vector.extract_strided_slice %13 {offsets = [5, 0], sizes = [1, 32], strides = [1, 1]} : vector<8x32xf32> to vector<1x32xf32>
    %cst_80 = arith.constant dense<0.000000e+00> : vector<1x32xf32>
    %211 = tpu.matmul %209, %36, %cst_80 {dimension_numbers = #tpu.dot_dimension_numbers<[1], [0], [0], [1], [0, 0, 1, 1], [], []>} : vector<1x32xf32>, vector<32x32xf32>, vector<1x32xf32> -> vector<1x32xf32>
    %212 = arith.addf %210, %211 : vector<1x32xf32>
    %213 = vector.extract_strided_slice %20 {offsets = [5, 0], sizes = [1, 32], strides = [1, 1]} : vector<8x32xf32> to vector<1x32xf32>
    %cst_81 = arith.constant dense<0.000000e+00> : vector<1x32xf32>
    %214 = tpu.matmul %209, %38, %cst_81 {dimension_numbers = #tpu.dot_dimension_numbers<[1], [0], [0], [1], [0, 0, 1, 1], [], []>} : vector<1x32xf32>, vector<32x32xf32>, vector<1x32xf32> -> vector<1x32xf32>
    %215 = arith.addf %213, %214 : vector<1x32xf32>
    %216 = vector.extract_strided_slice %27 {offsets = [5, 0], sizes = [1, 32], strides = [1, 1]} : vector<8x32xf32> to vector<1x32xf32>
    %cst_82 = arith.constant dense<0.000000e+00> : vector<1x32xf32>
    %217 = tpu.matmul %209, %40, %cst_82 {dimension_numbers = #tpu.dot_dimension_numbers<[1], [0], [0], [1], [0, 0, 1, 1], [], []>} : vector<1x32xf32>, vector<32x32xf32>, vector<1x32xf32> -> vector<1x32xf32>
    %218 = arith.addf %216, %217 : vector<1x32xf32>
    %219 = vector.extract_strided_slice %34 {offsets = [5, 0], sizes = [1, 32], strides = [1, 1]} : vector<8x32xf32> to vector<1x32xf32>
    %cst_83 = arith.constant dense<0.000000e+00> : vector<1x32xf32>
    %220 = tpu.matmul %209, %42, %cst_83 {dimension_numbers = #tpu.dot_dimension_numbers<[1], [0], [0], [1], [0, 0, 1, 1], [], []>} : vector<1x32xf32>, vector<32x32xf32>, vector<1x32xf32> -> vector<1x32xf32>
    %221 = arith.addf %219, %220 : vector<1x32xf32>
    %222 = arith.negf %215 : vector<1x32xf32>
    %223 = math.exp %222 : vector<1x32xf32>
    %cst_84 = arith.constant 1.000000e+00 : f32
    %224 = vector.broadcast %cst_84 : f32 to vector<1x32xf32>
    %225 = arith.addf %224, %223 : vector<1x32xf32>
    %226 = arith.divf %224, %225 : vector<1x32xf32>
    %227 = arith.mulf %226, %202 : vector<1x32xf32>
    %228 = arith.negf %212 : vector<1x32xf32>
    %229 = math.exp %228 : vector<1x32xf32>
    %cst_85 = arith.constant 1.000000e+00 : f32
    %230 = vector.broadcast %cst_85 : f32 to vector<1x32xf32>
    %231 = arith.addf %230, %229 : vector<1x32xf32>
    %232 = arith.divf %230, %231 : vector<1x32xf32>
    %233 = math.tanh %218 : vector<1x32xf32>
    %234 = arith.mulf %232, %233 : vector<1x32xf32>
    %235 = arith.addf %227, %234 : vector<1x32xf32>
    %236 = arith.negf %221 : vector<1x32xf32>
    %237 = math.exp %236 : vector<1x32xf32>
    %cst_86 = arith.constant 1.000000e+00 : f32
    %238 = vector.broadcast %cst_86 : f32 to vector<1x32xf32>
    %239 = arith.addf %238, %237 : vector<1x32xf32>
    %240 = arith.divf %238, %239 : vector<1x32xf32>
    %241 = math.tanh %235 : vector<1x32xf32>
    %242 = arith.mulf %240, %241 : vector<1x32xf32>
    %243 = vector.extract_strided_slice %13 {offsets = [6, 0], sizes = [1, 32], strides = [1, 1]} : vector<8x32xf32> to vector<1x32xf32>
    %cst_87 = arith.constant dense<0.000000e+00> : vector<1x32xf32>
    %244 = tpu.matmul %242, %36, %cst_87 {dimension_numbers = #tpu.dot_dimension_numbers<[1], [0], [0], [1], [0, 0, 1, 1], [], []>} : vector<1x32xf32>, vector<32x32xf32>, vector<1x32xf32> -> vector<1x32xf32>
    %245 = arith.addf %243, %244 : vector<1x32xf32>
    %246 = vector.extract_strided_slice %20 {offsets = [6, 0], sizes = [1, 32], strides = [1, 1]} : vector<8x32xf32> to vector<1x32xf32>
    %cst_88 = arith.constant dense<0.000000e+00> : vector<1x32xf32>
    %247 = tpu.matmul %242, %38, %cst_88 {dimension_numbers = #tpu.dot_dimension_numbers<[1], [0], [0], [1], [0, 0, 1, 1], [], []>} : vector<1x32xf32>, vector<32x32xf32>, vector<1x32xf32> -> vector<1x32xf32>
    %248 = arith.addf %246, %247 : vector<1x32xf32>
    %249 = vector.extract_strided_slice %27 {offsets = [6, 0], sizes = [1, 32], strides = [1, 1]} : vector<8x32xf32> to vector<1x32xf32>
    %cst_89 = arith.constant dense<0.000000e+00> : vector<1x32xf32>
    %250 = tpu.matmul %242, %40, %cst_89 {dimension_numbers = #tpu.dot_dimension_numbers<[1], [0], [0], [1], [0, 0, 1, 1], [], []>} : vector<1x32xf32>, vector<32x32xf32>, vector<1x32xf32> -> vector<1x32xf32>
    %251 = arith.addf %249, %250 : vector<1x32xf32>
    %252 = vector.extract_strided_slice %34 {offsets = [6, 0], sizes = [1, 32], strides = [1, 1]} : vector<8x32xf32> to vector<1x32xf32>
    %cst_90 = arith.constant dense<0.000000e+00> : vector<1x32xf32>
    %253 = tpu.matmul %242, %42, %cst_90 {dimension_numbers = #tpu.dot_dimension_numbers<[1], [0], [0], [1], [0, 0, 1, 1], [], []>} : vector<1x32xf32>, vector<32x32xf32>, vector<1x32xf32> -> vector<1x32xf32>
    %254 = arith.addf %252, %253 : vector<1x32xf32>
    %255 = arith.negf %248 : vector<1x32xf32>
    %256 = math.exp %255 : vector<1x32xf32>
    %cst_91 = arith.constant 1.000000e+00 : f32
    %257 = vector.broadcast %cst_91 : f32 to vector<1x32xf32>
    %258 = arith.addf %257, %256 : vector<1x32xf32>
    %259 = arith.divf %257, %258 : vector<1x32xf32>
    %260 = arith.mulf %259, %235 : vector<1x32xf32>
    %261 = arith.negf %245 : vector<1x32xf32>
    %262 = math.exp %261 : vector<1x32xf32>
    %cst_92 = arith.constant 1.000000e+00 : f32
    %263 = vector.broadcast %cst_92 : f32 to vector<1x32xf32>
    %264 = arith.addf %263, %262 : vector<1x32xf32>
    %265 = arith.divf %263, %264 : vector<1x32xf32>
    %266 = math.tanh %251 : vector<1x32xf32>
    %267 = arith.mulf %265, %266 : vector<1x32xf32>
    %268 = arith.addf %260, %267 : vector<1x32xf32>
    %269 = arith.negf %254 : vector<1x32xf32>
    %270 = math.exp %269 : vector<1x32xf32>
    %cst_93 = arith.constant 1.000000e+00 : f32
    %271 = vector.broadcast %cst_93 : f32 to vector<1x32xf32>
    %272 = arith.addf %271, %270 : vector<1x32xf32>
    %273 = arith.divf %271, %272 : vector<1x32xf32>
    %274 = math.tanh %268 : vector<1x32xf32>
    %275 = arith.mulf %273, %274 : vector<1x32xf32>
    %276 = vector.extract_strided_slice %13 {offsets = [7, 0], sizes = [1, 32], strides = [1, 1]} : vector<8x32xf32> to vector<1x32xf32>
    %cst_94 = arith.constant dense<0.000000e+00> : vector<1x32xf32>
    %277 = tpu.matmul %275, %36, %cst_94 {dimension_numbers = #tpu.dot_dimension_numbers<[1], [0], [0], [1], [0, 0, 1, 1], [], []>} : vector<1x32xf32>, vector<32x32xf32>, vector<1x32xf32> -> vector<1x32xf32>
    %278 = arith.addf %276, %277 : vector<1x32xf32>
    %279 = vector.extract_strided_slice %20 {offsets = [7, 0], sizes = [1, 32], strides = [1, 1]} : vector<8x32xf32> to vector<1x32xf32>
    %cst_95 = arith.constant dense<0.000000e+00> : vector<1x32xf32>
    %280 = tpu.matmul %275, %38, %cst_95 {dimension_numbers = #tpu.dot_dimension_numbers<[1], [0], [0], [1], [0, 0, 1, 1], [], []>} : vector<1x32xf32>, vector<32x32xf32>, vector<1x32xf32> -> vector<1x32xf32>
    %281 = arith.addf %279, %280 : vector<1x32xf32>
    %282 = vector.extract_strided_slice %27 {offsets = [7, 0], sizes = [1, 32], strides = [1, 1]} : vector<8x32xf32> to vector<1x32xf32>
    %cst_96 = arith.constant dense<0.000000e+00> : vector<1x32xf32>
    %283 = tpu.matmul %275, %40, %cst_96 {dimension_numbers = #tpu.dot_dimension_numbers<[1], [0], [0], [1], [0, 0, 1, 1], [], []>} : vector<1x32xf32>, vector<32x32xf32>, vector<1x32xf32> -> vector<1x32xf32>
    %284 = arith.addf %282, %283 : vector<1x32xf32>
    %285 = vector.extract_strided_slice %34 {offsets = [7, 0], sizes = [1, 32], strides = [1, 1]} : vector<8x32xf32> to vector<1x32xf32>
    %cst_97 = arith.constant dense<0.000000e+00> : vector<1x32xf32>
    %286 = tpu.matmul %275, %42, %cst_97 {dimension_numbers = #tpu.dot_dimension_numbers<[1], [0], [0], [1], [0, 0, 1, 1], [], []>} : vector<1x32xf32>, vector<32x32xf32>, vector<1x32xf32> -> vector<1x32xf32>
    %287 = arith.addf %285, %286 : vector<1x32xf32>
    %288 = arith.negf %281 : vector<1x32xf32>
    %289 = math.exp %288 : vector<1x32xf32>
    %cst_98 = arith.constant 1.000000e+00 : f32
    %290 = vector.broadcast %cst_98 : f32 to vector<1x32xf32>
    %291 = arith.addf %290, %289 : vector<1x32xf32>
    %292 = arith.divf %290, %291 : vector<1x32xf32>
    %293 = arith.mulf %292, %268 : vector<1x32xf32>
    %294 = arith.negf %278 : vector<1x32xf32>
    %295 = math.exp %294 : vector<1x32xf32>
    %cst_99 = arith.constant 1.000000e+00 : f32
    %296 = vector.broadcast %cst_99 : f32 to vector<1x32xf32>
    %297 = arith.addf %296, %295 : vector<1x32xf32>
    %298 = arith.divf %296, %297 : vector<1x32xf32>
    %299 = math.tanh %284 : vector<1x32xf32>
    %300 = arith.mulf %298, %299 : vector<1x32xf32>
    %301 = arith.addf %293, %300 : vector<1x32xf32>
    %302 = arith.negf %287 : vector<1x32xf32>
    %303 = math.exp %302 : vector<1x32xf32>
    %cst_100 = arith.constant 1.000000e+00 : f32
    %304 = vector.broadcast %cst_100 : f32 to vector<1x32xf32>
    %305 = arith.addf %304, %303 : vector<1x32xf32>
    %306 = arith.divf %304, %305 : vector<1x32xf32>
    %307 = math.tanh %301 : vector<1x32xf32>
    %308 = arith.mulf %306, %307 : vector<1x32xf32>
    %309 = tpu.concatenate %77, %110, %143, %176, %209, %242, %275, %308 in 0 : vector<1x32xf32>, vector<1x32xf32>, vector<1x32xf32>, vector<1x32xf32>, vector<1x32xf32>, vector<1x32xf32>, vector<1x32xf32>, vector<1x32xf32> -> vector<8x32xf32>
    %c0_101 = arith.constant 0 : index
    %c0_102 = arith.constant 0 : index
    %310 = vector.load %arg2[%c0_101, %c0_102] : memref<8x32xf32, #tpu.memory_space<vmem>>, vector<8x32xf32>
    %311 = arith.addf %309, %310 : vector<8x32xf32>
    %312 = arith.truncf %311 : vector<8x32xf32> to vector<8x32xbf16>
    %c0_103 = arith.constant 0 : index
    %c0_104 = arith.constant 0 : index
    %c0_105 = arith.constant 0 : index
    %313 = vector.load %arg8[%c0_103, %c0_104, %c0_105] : memref<2x32x32xbf16, #tpu.memory_space<vmem>>, vector<1x32x32xbf16>
    %314 = vector.shape_cast %313 : vector<1x32x32xbf16> to vector<32x32xbf16>
    %cst_106 = arith.constant dense<0.000000e+00> : vector<8x32xf32>
    %315 = tpu.matmul %312, %314, %cst_106 {dimension_numbers = #tpu.dot_dimension_numbers<[1], [0], [0], [1], [0, 0, 1, 1], [], []>} : vector<8x32xbf16>, vector<32x32xbf16>, vector<8x32xf32> -> vector<8x32xf32>
    %c0_107 = arith.constant 0 : index
    %c0_108 = arith.constant 0 : index
    %c0_109 = arith.constant 0 : index
    %316 = vector.load %arg9[%c0_107, %c0_108, %c0_109] : memref<2x1x32xf32, #tpu.memory_space<vmem>>, vector<1x1x32xf32>
    %317 = vector.shape_cast %316 : vector<1x1x32xf32> to vector<1x32xf32>
    %318 = vector.broadcast %317 : vector<1x32xf32> to vector<8x32xf32>
    %319 = arith.addf %315, %318 : vector<8x32xf32>
    %c0_110 = arith.constant 0 : index
    %c0_111 = arith.constant 0 : index
    %c0_112 = arith.constant 0 : index
    %320 = vector.load %arg10[%c0_110, %c0_111, %c0_112] : memref<2x32x32xbf16, #tpu.memory_space<vmem>>, vector<1x32x32xbf16>
    %321 = vector.shape_cast %320 : vector<1x32x32xbf16> to vector<32x32xbf16>
    %cst_113 = arith.constant dense<0.000000e+00> : vector<8x32xf32>
    %322 = tpu.matmul %312, %321, %cst_113 {dimension_numbers = #tpu.dot_dimension_numbers<[1], [0], [0], [1], [0, 0, 1, 1], [], []>} : vector<8x32xbf16>, vector<32x32xbf16>, vector<8x32xf32> -> vector<8x32xf32>
    %c0_114 = arith.constant 0 : index
    %c0_115 = arith.constant 0 : index
    %c0_116 = arith.constant 0 : index
    %323 = vector.load %arg11[%c0_114, %c0_115, %c0_116] : memref<2x1x32xf32, #tpu.memory_space<vmem>>, vector<1x1x32xf32>
    %324 = vector.shape_cast %323 : vector<1x1x32xf32> to vector<1x32xf32>
    %325 = vector.broadcast %324 : vector<1x32xf32> to vector<8x32xf32>
    %326 = arith.addf %322, %325 : vector<8x32xf32>
    %c0_117 = arith.constant 0 : index
    %c0_118 = arith.constant 0 : index
    %c0_119 = arith.constant 0 : index
    %327 = vector.load %arg12[%c0_117, %c0_118, %c0_119] : memref<2x32x32xbf16, #tpu.memory_space<vmem>>, vector<1x32x32xbf16>
    %328 = vector.shape_cast %327 : vector<1x32x32xbf16> to vector<32x32xbf16>
    %cst_120 = arith.constant dense<0.000000e+00> : vector<8x32xf32>
    %329 = tpu.matmul %312, %328, %cst_120 {dimension_numbers = #tpu.dot_dimension_numbers<[1], [0], [0], [1], [0, 0, 1, 1], [], []>} : vector<8x32xbf16>, vector<32x32xbf16>, vector<8x32xf32> -> vector<8x32xf32>
    %c0_121 = arith.constant 0 : index
    %c0_122 = arith.constant 0 : index
    %c0_123 = arith.constant 0 : index
    %330 = vector.load %arg13[%c0_121, %c0_122, %c0_123] : memref<2x1x32xf32, #tpu.memory_space<vmem>>, vector<1x1x32xf32>
    %331 = vector.shape_cast %330 : vector<1x1x32xf32> to vector<1x32xf32>
    %332 = vector.broadcast %331 : vector<1x32xf32> to vector<8x32xf32>
    %333 = arith.addf %329, %332 : vector<8x32xf32>
    %334 = vector.extract_strided_slice %319 {offsets = [0, 0], sizes = [8, 8], strides = [1, 1]} : vector<8x32xf32> to vector<8x8xf32>
    %cst_124 = arith.constant 0.353553385 : f32
    %335 = vector.broadcast %cst_124 : f32 to vector<8x8xf32>
    %336 = arith.mulf %334, %335 : vector<8x8xf32>
    %337 = arith.truncf %336 : vector<8x8xf32> to vector<8x8xbf16>
    %338 = vector.extract_strided_slice %326 {offsets = [0, 0], sizes = [8, 8], strides = [1, 1]} : vector<8x32xf32> to vector<8x8xf32>
    %339 = arith.truncf %338 : vector<8x8xf32> to vector<8x8xbf16>
    %340 = vector.extract_strided_slice %333 {offsets = [0, 0], sizes = [8, 8], strides = [1, 1]} : vector<8x32xf32> to vector<8x8xf32>
    %341 = arith.truncf %340 : vector<8x8xf32> to vector<8x8xbf16>
    %cst_125 = arith.constant dense<0.000000e+00> : vector<8x8xf32>
    %342 = tpu.matmul %337, %339, %cst_125 {dimension_numbers = #tpu.dot_dimension_numbers<[1], [1], [0], [0], [0, 0, 1, 0], [], []>} : vector<8x8xbf16>, vector<8x8xbf16>, vector<8x8xf32> -> vector<8x8xf32>
    %cst_126 = arith.constant dense<0xFF800000> : vector<8xf32>
    %343 = vector.multi_reduction <maximumf>, %342, %cst_126 [1] : vector<8x8xf32> to vector<8xf32>
    %344 = vector.shape_cast %343 : vector<8xf32> to vector<8x1xf32>
    %345 = vector.broadcast %344 : vector<8x1xf32> to vector<8x8xf32>
    %346 = arith.subf %342, %345 : vector<8x8xf32>
    %347 = math.exp %346 : vector<8x8xf32>
    %cst_127 = arith.constant dense<0.000000e+00> : vector<8xf32>
    %348 = vector.multi_reduction <add>, %347, %cst_127 [1] : vector<8x8xf32> to vector<8xf32>
    %349 = vector.shape_cast %348 : vector<8xf32> to vector<8x1xf32>
    %350 = tpu.reciprocal %349 {approx = true} : vector<8x1xf32> -> vector<8x1xf32>
    %351 = vector.broadcast %350 : vector<8x1xf32> to vector<8x8xf32>
    %352 = arith.mulf %347, %351 : vector<8x8xf32>
    %353 = arith.truncf %352 : vector<8x8xf32> to vector<8x8xbf16>
    %cst_128 = arith.constant dense<0.000000e+00> : vector<8x8xf32>
    %354 = tpu.matmul %353, %341, %cst_128 {dimension_numbers = #tpu.dot_dimension_numbers<[1], [0], [0], [1], [0, 0, 1, 1], [], []>} : vector<8x8xbf16>, vector<8x8xbf16>, vector<8x8xf32> -> vector<8x8xf32>
    %355 = vector.extract_strided_slice %319 {offsets = [0, 8], sizes = [8, 8], strides = [1, 1]} : vector<8x32xf32> to vector<8x8xf32>
    %cst_129 = arith.constant 0.353553385 : f32
    %356 = vector.broadcast %cst_129 : f32 to vector<8x8xf32>
    %357 = arith.mulf %355, %356 : vector<8x8xf32>
    %358 = arith.truncf %357 : vector<8x8xf32> to vector<8x8xbf16>
    %359 = vector.extract_strided_slice %326 {offsets = [0, 8], sizes = [8, 8], strides = [1, 1]} : vector<8x32xf32> to vector<8x8xf32>
    %360 = arith.truncf %359 : vector<8x8xf32> to vector<8x8xbf16>
    %361 = vector.extract_strided_slice %333 {offsets = [0, 8], sizes = [8, 8], strides = [1, 1]} : vector<8x32xf32> to vector<8x8xf32>
    %362 = arith.truncf %361 : vector<8x8xf32> to vector<8x8xbf16>
    %cst_130 = arith.constant dense<0.000000e+00> : vector<8x8xf32>
    %363 = tpu.matmul %358, %360, %cst_130 {dimension_numbers = #tpu.dot_dimension_numbers<[1], [1], [0], [0], [0, 0, 1, 0], [], []>} : vector<8x8xbf16>, vector<8x8xbf16>, vector<8x8xf32> -> vector<8x8xf32>
    %cst_131 = arith.constant dense<0xFF800000> : vector<8xf32>
    %364 = vector.multi_reduction <maximumf>, %363, %cst_131 [1] : vector<8x8xf32> to vector<8xf32>
    %365 = vector.shape_cast %364 : vector<8xf32> to vector<8x1xf32>
    %366 = vector.broadcast %365 : vector<8x1xf32> to vector<8x8xf32>
    %367 = arith.subf %363, %366 : vector<8x8xf32>
    %368 = math.exp %367 : vector<8x8xf32>
    %cst_132 = arith.constant dense<0.000000e+00> : vector<8xf32>
    %369 = vector.multi_reduction <add>, %368, %cst_132 [1] : vector<8x8xf32> to vector<8xf32>
    %370 = vector.shape_cast %369 : vector<8xf32> to vector<8x1xf32>
    %371 = tpu.reciprocal %370 {approx = true} : vector<8x1xf32> -> vector<8x1xf32>
    %372 = vector.broadcast %371 : vector<8x1xf32> to vector<8x8xf32>
    %373 = arith.mulf %368, %372 : vector<8x8xf32>
    %374 = arith.truncf %373 : vector<8x8xf32> to vector<8x8xbf16>
    %cst_133 = arith.constant dense<0.000000e+00> : vector<8x8xf32>
    %375 = tpu.matmul %374, %362, %cst_133 {dimension_numbers = #tpu.dot_dimension_numbers<[1], [0], [0], [1], [0, 0, 1, 1], [], []>} : vector<8x8xbf16>, vector<8x8xbf16>, vector<8x8xf32> -> vector<8x8xf32>
    %376 = vector.extract_strided_slice %319 {offsets = [0, 16], sizes = [8, 8], strides = [1, 1]} : vector<8x32xf32> to vector<8x8xf32>
    %cst_134 = arith.constant 0.353553385 : f32
    %377 = vector.broadcast %cst_134 : f32 to vector<8x8xf32>
    %378 = arith.mulf %376, %377 : vector<8x8xf32>
    %379 = arith.truncf %378 : vector<8x8xf32> to vector<8x8xbf16>
    %380 = vector.extract_strided_slice %326 {offsets = [0, 16], sizes = [8, 8], strides = [1, 1]} : vector<8x32xf32> to vector<8x8xf32>
    %381 = arith.truncf %380 : vector<8x8xf32> to vector<8x8xbf16>
    %382 = vector.extract_strided_slice %333 {offsets = [0, 16], sizes = [8, 8], strides = [1, 1]} : vector<8x32xf32> to vector<8x8xf32>
    %383 = arith.truncf %382 : vector<8x8xf32> to vector<8x8xbf16>
    %cst_135 = arith.constant dense<0.000000e+00> : vector<8x8xf32>
    %384 = tpu.matmul %379, %381, %cst_135 {dimension_numbers = #tpu.dot_dimension_numbers<[1], [1], [0], [0], [0, 0, 1, 0], [], []>} : vector<8x8xbf16>, vector<8x8xbf16>, vector<8x8xf32> -> vector<8x8xf32>
    %cst_136 = arith.constant dense<0xFF800000> : vector<8xf32>
    %385 = vector.multi_reduction <maximumf>, %384, %cst_136 [1] : vector<8x8xf32> to vector<8xf32>
    %386 = vector.shape_cast %385 : vector<8xf32> to vector<8x1xf32>
    %387 = vector.broadcast %386 : vector<8x1xf32> to vector<8x8xf32>
    %388 = arith.subf %384, %387 : vector<8x8xf32>
    %389 = math.exp %388 : vector<8x8xf32>
    %cst_137 = arith.constant dense<0.000000e+00> : vector<8xf32>
    %390 = vector.multi_reduction <add>, %389, %cst_137 [1] : vector<8x8xf32> to vector<8xf32>
    %391 = vector.shape_cast %390 : vector<8xf32> to vector<8x1xf32>
    %392 = tpu.reciprocal %391 {approx = true} : vector<8x1xf32> -> vector<8x1xf32>
    %393 = vector.broadcast %392 : vector<8x1xf32> to vector<8x8xf32>
    %394 = arith.mulf %389, %393 : vector<8x8xf32>
    %395 = arith.truncf %394 : vector<8x8xf32> to vector<8x8xbf16>
    %cst_138 = arith.constant dense<0.000000e+00> : vector<8x8xf32>
    %396 = tpu.matmul %395, %383, %cst_138 {dimension_numbers = #tpu.dot_dimension_numbers<[1], [0], [0], [1], [0, 0, 1, 1], [], []>} : vector<8x8xbf16>, vector<8x8xbf16>, vector<8x8xf32> -> vector<8x8xf32>
    %397 = vector.extract_strided_slice %319 {offsets = [0, 24], sizes = [8, 8], strides = [1, 1]} : vector<8x32xf32> to vector<8x8xf32>
    %cst_139 = arith.constant 0.353553385 : f32
    %398 = vector.broadcast %cst_139 : f32 to vector<8x8xf32>
    %399 = arith.mulf %397, %398 : vector<8x8xf32>
    %400 = arith.truncf %399 : vector<8x8xf32> to vector<8x8xbf16>
    %401 = vector.extract_strided_slice %326 {offsets = [0, 24], sizes = [8, 8], strides = [1, 1]} : vector<8x32xf32> to vector<8x8xf32>
    %402 = arith.truncf %401 : vector<8x8xf32> to vector<8x8xbf16>
    %403 = vector.extract_strided_slice %333 {offsets = [0, 24], sizes = [8, 8], strides = [1, 1]} : vector<8x32xf32> to vector<8x8xf32>
    %404 = arith.truncf %403 : vector<8x8xf32> to vector<8x8xbf16>
    %cst_140 = arith.constant dense<0.000000e+00> : vector<8x8xf32>
    %405 = tpu.matmul %400, %402, %cst_140 {dimension_numbers = #tpu.dot_dimension_numbers<[1], [1], [0], [0], [0, 0, 1, 0], [], []>} : vector<8x8xbf16>, vector<8x8xbf16>, vector<8x8xf32> -> vector<8x8xf32>
    %cst_141 = arith.constant dense<0xFF800000> : vector<8xf32>
    %406 = vector.multi_reduction <maximumf>, %405, %cst_141 [1] : vector<8x8xf32> to vector<8xf32>
    %407 = vector.shape_cast %406 : vector<8xf32> to vector<8x1xf32>
    %408 = vector.broadcast %407 : vector<8x1xf32> to vector<8x8xf32>
    %409 = arith.subf %405, %408 : vector<8x8xf32>
    %410 = math.exp %409 : vector<8x8xf32>
    %cst_142 = arith.constant dense<0.000000e+00> : vector<8xf32>
    %411 = vector.multi_reduction <add>, %410, %cst_142 [1] : vector<8x8xf32> to vector<8xf32>
    %412 = vector.shape_cast %411 : vector<8xf32> to vector<8x1xf32>
    %413 = tpu.reciprocal %412 {approx = true} : vector<8x1xf32> -> vector<8x1xf32>
    %414 = vector.broadcast %413 : vector<8x1xf32> to vector<8x8xf32>
    %415 = arith.mulf %410, %414 : vector<8x8xf32>
    %416 = arith.truncf %415 : vector<8x8xf32> to vector<8x8xbf16>
    %cst_143 = arith.constant dense<0.000000e+00> : vector<8x8xf32>
    %417 = tpu.matmul %416, %404, %cst_143 {dimension_numbers = #tpu.dot_dimension_numbers<[1], [0], [0], [1], [0, 0, 1, 1], [], []>} : vector<8x8xbf16>, vector<8x8xbf16>, vector<8x8xf32> -> vector<8x8xf32>
    %418 = tpu.concatenate %354, %375, %396, %417 in 1 : vector<8x8xf32>, vector<8x8xf32>, vector<8x8xf32>, vector<8x8xf32> -> vector<8x32xf32>
    %419 = arith.truncf %418 : vector<8x32xf32> to vector<8x32xbf16>
    %c0_144 = arith.constant 0 : index
    %c0_145 = arith.constant 0 : index
    %c0_146 = arith.constant 0 : index
    %420 = vector.load %arg14[%c0_144, %c0_145, %c0_146] : memref<2x32x32xbf16, #tpu.memory_space<vmem>>, vector<1x32x32xbf16>
    %421 = vector.shape_cast %420 : vector<1x32x32xbf16> to vector<32x32xbf16>
    %cst_147 = arith.constant dense<0.000000e+00> : vector<8x32xf32>
    %422 = tpu.matmul %419, %421, %cst_147 {dimension_numbers = #tpu.dot_dimension_numbers<[1], [0], [0], [1], [0, 0, 1, 1], [], []>} : vector<8x32xbf16>, vector<32x32xbf16>, vector<8x32xf32> -> vector<8x32xf32>
    %c0_148 = arith.constant 0 : index
    %c0_149 = arith.constant 0 : index
    %c0_150 = arith.constant 0 : index
    %423 = vector.load %arg15[%c0_148, %c0_149, %c0_150] : memref<2x1x32xf32, #tpu.memory_space<vmem>>, vector<1x1x32xf32>
    %424 = vector.shape_cast %423 : vector<1x1x32xf32> to vector<1x32xf32>
    %425 = vector.broadcast %424 : vector<1x32xf32> to vector<8x32xf32>
    %426 = arith.addf %422, %425 : vector<8x32xf32>
    %427 = arith.addf %311, %426 : vector<8x32xf32>
    %c0_151 = arith.constant 0 : index
    %c0_152 = arith.constant 0 : index
    %c0_153 = arith.constant 0 : index
    %428 = vector.load %arg16[%c0_151, %c0_152, %c0_153] : memref<2x1x32xf32, #tpu.memory_space<vmem>>, vector<1x1x32xf32>
    %429 = vector.shape_cast %428 : vector<1x1x32xf32> to vector<1x32xf32>
    %c0_154 = arith.constant 0 : index
    %c0_155 = arith.constant 0 : index
    %c0_156 = arith.constant 0 : index
    %430 = vector.load %arg17[%c0_154, %c0_155, %c0_156] : memref<2x1x32xf32, #tpu.memory_space<vmem>>, vector<1x1x32xf32>
    %431 = vector.shape_cast %430 : vector<1x1x32xf32> to vector<1x32xf32>
    %cst_157 = arith.constant dense<0.000000e+00> : vector<8xf32>
    %432 = vector.multi_reduction <add>, %427, %cst_157 [1] : vector<8x32xf32> to vector<8xf32>
    %433 = vector.shape_cast %432 : vector<8xf32> to vector<8x1xf32>
    %cst_158 = arith.constant 3.200000e+01 : f32
    %434 = vector.broadcast %cst_158 : f32 to vector<8x1xf32>
    %435 = arith.divf %433, %434 : vector<8x1xf32>
    %436 = vector.broadcast %435 : vector<8x1xf32> to vector<8x32xf32>
    %437 = arith.subf %427, %436 : vector<8x32xf32>
    %438 = arith.mulf %437, %437 : vector<8x32xf32>
    %cst_159 = arith.constant dense<0.000000e+00> : vector<8xf32>
    %439 = vector.multi_reduction <add>, %438, %cst_159 [1] : vector<8x32xf32> to vector<8xf32>
    %440 = vector.shape_cast %439 : vector<8xf32> to vector<8x1xf32>
    %cst_160 = arith.constant 3.200000e+01 : f32
    %441 = vector.broadcast %cst_160 : f32 to vector<8x1xf32>
    %442 = arith.divf %440, %441 : vector<8x1xf32>
    %443 = vector.broadcast %435 : vector<8x1xf32> to vector<8x32xf32>
    %444 = arith.subf %427, %443 : vector<8x32xf32>
    %cst_161 = arith.constant 9.99999974E-6 : f32
    %445 = vector.broadcast %cst_161 : f32 to vector<8x1xf32>
    %446 = arith.addf %442, %445 : vector<8x1xf32>
    %447 = math.rsqrt %446 : vector<8x1xf32>
    %448 = vector.broadcast %447 : vector<8x1xf32> to vector<8x32xf32>
    %449 = arith.mulf %444, %448 : vector<8x32xf32>
    %450 = vector.broadcast %429 : vector<1x32xf32> to vector<8x32xf32>
    %451 = arith.mulf %449, %450 : vector<8x32xf32>
    %452 = vector.broadcast %431 : vector<1x32xf32> to vector<8x32xf32>
    %453 = arith.addf %451, %452 : vector<8x32xf32>
    %454 = arith.truncf %453 : vector<8x32xf32> to vector<8x32xbf16>
    %c0_162 = arith.constant 0 : index
    %c0_163 = arith.constant 0 : index
    %c0_164 = arith.constant 0 : index
    %455 = vector.load %arg18[%c0_162, %c0_163, %c0_164] : memref<2x32x128xbf16, #tpu.memory_space<vmem>>, vector<1x32x128xbf16>
    %456 = vector.shape_cast %455 : vector<1x32x128xbf16> to vector<32x128xbf16>
    %cst_165 = arith.constant dense<0.000000e+00> : vector<8x128xf32>
    %457 = tpu.matmul %454, %456, %cst_165 {dimension_numbers = #tpu.dot_dimension_numbers<[1], [0], [0], [1], [0, 0, 1, 1], [], []>} : vector<8x32xbf16>, vector<32x128xbf16>, vector<8x128xf32> -> vector<8x128xf32>
    %c0_166 = arith.constant 0 : index
    %c0_167 = arith.constant 0 : index
    %c0_168 = arith.constant 0 : index
    %458 = vector.load %arg19[%c0_166, %c0_167, %c0_168] : memref<2x1x128xf32, #tpu.memory_space<vmem>>, vector<1x1x128xf32>
    %459 = vector.shape_cast %458 : vector<1x1x128xf32> to vector<1x128xf32>
    %460 = vector.broadcast %459 : vector<1x128xf32> to vector<8x128xf32>
    %461 = arith.addf %457, %460 : vector<8x128xf32>
    %cst_169 = arith.constant 0.000000e+00 : f32
    %462 = vector.broadcast %cst_169 : f32 to vector<8x128xf32>
    %463 = arith.maximumf %461, %462 : vector<8x128xf32>
    %464 = arith.truncf %463 : vector<8x128xf32> to vector<8x128xbf16>
    %c0_170 = arith.constant 0 : index
    %c0_171 = arith.constant 0 : index
    %c0_172 = arith.constant 0 : index
    %465 = vector.load %arg20[%c0_170, %c0_171, %c0_172] : memref<2x128x32xbf16, #tpu.memory_space<vmem>>, vector<1x128x32xbf16>
    %466 = vector.shape_cast %465 : vector<1x128x32xbf16> to vector<128x32xbf16>
    %cst_173 = arith.constant dense<0.000000e+00> : vector<8x32xf32>
    %467 = tpu.matmul %464, %466, %cst_173 {dimension_numbers = #tpu.dot_dimension_numbers<[1], [0], [0], [1], [0, 0, 1, 1], [], []>} : vector<8x128xbf16>, vector<128x32xbf16>, vector<8x32xf32> -> vector<8x32xf32>
    %c0_174 = arith.constant 0 : index
    %c0_175 = arith.constant 0 : index
    %c0_176 = arith.constant 0 : index
    %468 = vector.load %arg21[%c0_174, %c0_175, %c0_176] : memref<2x1x32xf32, #tpu.memory_space<vmem>>, vector<1x1x32xf32>
    %469 = vector.shape_cast %468 : vector<1x1x32xf32> to vector<1x32xf32>
    %470 = vector.broadcast %469 : vector<1x32xf32> to vector<8x32xf32>
    %471 = arith.addf %467, %470 : vector<8x32xf32>
    %472 = arith.addf %453, %471 : vector<8x32xf32>
    %c0_177 = arith.constant 0 : index
    %c0_178 = arith.constant 0 : index
    %c0_179 = arith.constant 0 : index
    %473 = vector.load %arg22[%c0_177, %c0_178, %c0_179] : memref<2x1x32xf32, #tpu.memory_space<vmem>>, vector<1x1x32xf32>
    %474 = vector.shape_cast %473 : vector<1x1x32xf32> to vector<1x32xf32>
    %c0_180 = arith.constant 0 : index
    %c0_181 = arith.constant 0 : index
    %c0_182 = arith.constant 0 : index
    %475 = vector.load %arg23[%c0_180, %c0_181, %c0_182] : memref<2x1x32xf32, #tpu.memory_space<vmem>>, vector<1x1x32xf32>
    %476 = vector.shape_cast %475 : vector<1x1x32xf32> to vector<1x32xf32>
    %cst_183 = arith.constant dense<0.000000e+00> : vector<8xf32>
    %477 = vector.multi_reduction <add>, %472, %cst_183 [1] : vector<8x32xf32> to vector<8xf32>
    %478 = vector.shape_cast %477 : vector<8xf32> to vector<8x1xf32>
    %cst_184 = arith.constant 3.200000e+01 : f32
    %479 = vector.broadcast %cst_184 : f32 to vector<8x1xf32>
    %480 = arith.divf %478, %479 : vector<8x1xf32>
    %481 = vector.broadcast %480 : vector<8x1xf32> to vector<8x32xf32>
    %482 = arith.subf %472, %481 : vector<8x32xf32>
    %483 = arith.mulf %482, %482 : vector<8x32xf32>
    %cst_185 = arith.constant dense<0.000000e+00> : vector<8xf32>
    %484 = vector.multi_reduction <add>, %483, %cst_185 [1] : vector<8x32xf32> to vector<8xf32>
    %485 = vector.shape_cast %484 : vector<8xf32> to vector<8x1xf32>
    %cst_186 = arith.constant 3.200000e+01 : f32
    %486 = vector.broadcast %cst_186 : f32 to vector<8x1xf32>
    %487 = arith.divf %485, %486 : vector<8x1xf32>
    %488 = vector.broadcast %480 : vector<8x1xf32> to vector<8x32xf32>
    %489 = arith.subf %472, %488 : vector<8x32xf32>
    %cst_187 = arith.constant 9.99999974E-6 : f32
    %490 = vector.broadcast %cst_187 : f32 to vector<8x1xf32>
    %491 = arith.addf %487, %490 : vector<8x1xf32>
    %492 = math.rsqrt %491 : vector<8x1xf32>
    %493 = vector.broadcast %492 : vector<8x1xf32> to vector<8x32xf32>
    %494 = arith.mulf %489, %493 : vector<8x32xf32>
    %495 = vector.broadcast %474 : vector<1x32xf32> to vector<8x32xf32>
    %496 = arith.mulf %494, %495 : vector<8x32xf32>
    %497 = vector.broadcast %476 : vector<1x32xf32> to vector<8x32xf32>
    %498 = arith.addf %496, %497 : vector<8x32xf32>
    %499 = arith.truncf %498 : vector<8x32xf32> to vector<8x32xbf16>
    %c1_188 = arith.constant 1 : index
    %c0_189 = arith.constant 0 : index
    %c0_190 = arith.constant 0 : index
    %500 = vector.load %arg8[%c1_188, %c0_189, %c0_190] : memref<2x32x32xbf16, #tpu.memory_space<vmem>>, vector<1x32x32xbf16>
    %501 = vector.shape_cast %500 : vector<1x32x32xbf16> to vector<32x32xbf16>
    %cst_191 = arith.constant dense<0.000000e+00> : vector<8x32xf32>
    %502 = tpu.matmul %499, %501, %cst_191 {dimension_numbers = #tpu.dot_dimension_numbers<[1], [0], [0], [1], [0, 0, 1, 1], [], []>} : vector<8x32xbf16>, vector<32x32xbf16>, vector<8x32xf32> -> vector<8x32xf32>
    %c1_192 = arith.constant 1 : index
    %c0_193 = arith.constant 0 : index
    %c0_194 = arith.constant 0 : index
    %503 = vector.load %arg9[%c1_192, %c0_193, %c0_194] : memref<2x1x32xf32, #tpu.memory_space<vmem>>, vector<1x1x32xf32>
    %504 = vector.shape_cast %503 : vector<1x1x32xf32> to vector<1x32xf32>
    %505 = vector.broadcast %504 : vector<1x32xf32> to vector<8x32xf32>
    %506 = arith.addf %502, %505 : vector<8x32xf32>
    %c1_195 = arith.constant 1 : index
    %c0_196 = arith.constant 0 : index
    %c0_197 = arith.constant 0 : index
    %507 = vector.load %arg10[%c1_195, %c0_196, %c0_197] : memref<2x32x32xbf16, #tpu.memory_space<vmem>>, vector<1x32x32xbf16>
    %508 = vector.shape_cast %507 : vector<1x32x32xbf16> to vector<32x32xbf16>
    %cst_198 = arith.constant dense<0.000000e+00> : vector<8x32xf32>
    %509 = tpu.matmul %499, %508, %cst_198 {dimension_numbers = #tpu.dot_dimension_numbers<[1], [0], [0], [1], [0, 0, 1, 1], [], []>} : vector<8x32xbf16>, vector<32x32xbf16>, vector<8x32xf32> -> vector<8x32xf32>
    %c1_199 = arith.constant 1 : index
    %c0_200 = arith.constant 0 : index
    %c0_201 = arith.constant 0 : index
    %510 = vector.load %arg11[%c1_199, %c0_200, %c0_201] : memref<2x1x32xf32, #tpu.memory_space<vmem>>, vector<1x1x32xf32>
    %511 = vector.shape_cast %510 : vector<1x1x32xf32> to vector<1x32xf32>
    %512 = vector.broadcast %511 : vector<1x32xf32> to vector<8x32xf32>
    %513 = arith.addf %509, %512 : vector<8x32xf32>
    %c1_202 = arith.constant 1 : index
    %c0_203 = arith.constant 0 : index
    %c0_204 = arith.constant 0 : index
    %514 = vector.load %arg12[%c1_202, %c0_203, %c0_204] : memref<2x32x32xbf16, #tpu.memory_space<vmem>>, vector<1x32x32xbf16>
    %515 = vector.shape_cast %514 : vector<1x32x32xbf16> to vector<32x32xbf16>
    %cst_205 = arith.constant dense<0.000000e+00> : vector<8x32xf32>
    %516 = tpu.matmul %499, %515, %cst_205 {dimension_numbers = #tpu.dot_dimension_numbers<[1], [0], [0], [1], [0, 0, 1, 1], [], []>} : vector<8x32xbf16>, vector<32x32xbf16>, vector<8x32xf32> -> vector<8x32xf32>
    %c1_206 = arith.constant 1 : index
    %c0_207 = arith.constant 0 : index
    %c0_208 = arith.constant 0 : index
    %517 = vector.load %arg13[%c1_206, %c0_207, %c0_208] : memref<2x1x32xf32, #tpu.memory_space<vmem>>, vector<1x1x32xf32>
    %518 = vector.shape_cast %517 : vector<1x1x32xf32> to vector<1x32xf32>
    %519 = vector.broadcast %518 : vector<1x32xf32> to vector<8x32xf32>
    %520 = arith.addf %516, %519 : vector<8x32xf32>
    %521 = vector.extract_strided_slice %506 {offsets = [0, 0], sizes = [8, 8], strides = [1, 1]} : vector<8x32xf32> to vector<8x8xf32>
    %cst_209 = arith.constant 0.353553385 : f32
    %522 = vector.broadcast %cst_209 : f32 to vector<8x8xf32>
    %523 = arith.mulf %521, %522 : vector<8x8xf32>
    %524 = arith.truncf %523 : vector<8x8xf32> to vector<8x8xbf16>
    %525 = vector.extract_strided_slice %513 {offsets = [0, 0], sizes = [8, 8], strides = [1, 1]} : vector<8x32xf32> to vector<8x8xf32>
    %526 = arith.truncf %525 : vector<8x8xf32> to vector<8x8xbf16>
    %527 = vector.extract_strided_slice %520 {offsets = [0, 0], sizes = [8, 8], strides = [1, 1]} : vector<8x32xf32> to vector<8x8xf32>
    %528 = arith.truncf %527 : vector<8x8xf32> to vector<8x8xbf16>
    %cst_210 = arith.constant dense<0.000000e+00> : vector<8x8xf32>
    %529 = tpu.matmul %524, %526, %cst_210 {dimension_numbers = #tpu.dot_dimension_numbers<[1], [1], [0], [0], [0, 0, 1, 0], [], []>} : vector<8x8xbf16>, vector<8x8xbf16>, vector<8x8xf32> -> vector<8x8xf32>
    %cst_211 = arith.constant dense<0xFF800000> : vector<8xf32>
    %530 = vector.multi_reduction <maximumf>, %529, %cst_211 [1] : vector<8x8xf32> to vector<8xf32>
    %531 = vector.shape_cast %530 : vector<8xf32> to vector<8x1xf32>
    %532 = vector.broadcast %531 : vector<8x1xf32> to vector<8x8xf32>
    %533 = arith.subf %529, %532 : vector<8x8xf32>
    %534 = math.exp %533 : vector<8x8xf32>
    %cst_212 = arith.constant dense<0.000000e+00> : vector<8xf32>
    %535 = vector.multi_reduction <add>, %534, %cst_212 [1] : vector<8x8xf32> to vector<8xf32>
    %536 = vector.shape_cast %535 : vector<8xf32> to vector<8x1xf32>
    %537 = tpu.reciprocal %536 {approx = true} : vector<8x1xf32> -> vector<8x1xf32>
    %538 = vector.broadcast %537 : vector<8x1xf32> to vector<8x8xf32>
    %539 = arith.mulf %534, %538 : vector<8x8xf32>
    %540 = arith.truncf %539 : vector<8x8xf32> to vector<8x8xbf16>
    %cst_213 = arith.constant dense<0.000000e+00> : vector<8x8xf32>
    %541 = tpu.matmul %540, %528, %cst_213 {dimension_numbers = #tpu.dot_dimension_numbers<[1], [0], [0], [1], [0, 0, 1, 1], [], []>} : vector<8x8xbf16>, vector<8x8xbf16>, vector<8x8xf32> -> vector<8x8xf32>
    %542 = vector.extract_strided_slice %506 {offsets = [0, 8], sizes = [8, 8], strides = [1, 1]} : vector<8x32xf32> to vector<8x8xf32>
    %cst_214 = arith.constant 0.353553385 : f32
    %543 = vector.broadcast %cst_214 : f32 to vector<8x8xf32>
    %544 = arith.mulf %542, %543 : vector<8x8xf32>
    %545 = arith.truncf %544 : vector<8x8xf32> to vector<8x8xbf16>
    %546 = vector.extract_strided_slice %513 {offsets = [0, 8], sizes = [8, 8], strides = [1, 1]} : vector<8x32xf32> to vector<8x8xf32>
    %547 = arith.truncf %546 : vector<8x8xf32> to vector<8x8xbf16>
    %548 = vector.extract_strided_slice %520 {offsets = [0, 8], sizes = [8, 8], strides = [1, 1]} : vector<8x32xf32> to vector<8x8xf32>
    %549 = arith.truncf %548 : vector<8x8xf32> to vector<8x8xbf16>
    %cst_215 = arith.constant dense<0.000000e+00> : vector<8x8xf32>
    %550 = tpu.matmul %545, %547, %cst_215 {dimension_numbers = #tpu.dot_dimension_numbers<[1], [1], [0], [0], [0, 0, 1, 0], [], []>} : vector<8x8xbf16>, vector<8x8xbf16>, vector<8x8xf32> -> vector<8x8xf32>
    %cst_216 = arith.constant dense<0xFF800000> : vector<8xf32>
    %551 = vector.multi_reduction <maximumf>, %550, %cst_216 [1] : vector<8x8xf32> to vector<8xf32>
    %552 = vector.shape_cast %551 : vector<8xf32> to vector<8x1xf32>
    %553 = vector.broadcast %552 : vector<8x1xf32> to vector<8x8xf32>
    %554 = arith.subf %550, %553 : vector<8x8xf32>
    %555 = math.exp %554 : vector<8x8xf32>
    %cst_217 = arith.constant dense<0.000000e+00> : vector<8xf32>
    %556 = vector.multi_reduction <add>, %555, %cst_217 [1] : vector<8x8xf32> to vector<8xf32>
    %557 = vector.shape_cast %556 : vector<8xf32> to vector<8x1xf32>
    %558 = tpu.reciprocal %557 {approx = true} : vector<8x1xf32> -> vector<8x1xf32>
    %559 = vector.broadcast %558 : vector<8x1xf32> to vector<8x8xf32>
    %560 = arith.mulf %555, %559 : vector<8x8xf32>
    %561 = arith.truncf %560 : vector<8x8xf32> to vector<8x8xbf16>
    %cst_218 = arith.constant dense<0.000000e+00> : vector<8x8xf32>
    %562 = tpu.matmul %561, %549, %cst_218 {dimension_numbers = #tpu.dot_dimension_numbers<[1], [0], [0], [1], [0, 0, 1, 1], [], []>} : vector<8x8xbf16>, vector<8x8xbf16>, vector<8x8xf32> -> vector<8x8xf32>
    %563 = vector.extract_strided_slice %506 {offsets = [0, 16], sizes = [8, 8], strides = [1, 1]} : vector<8x32xf32> to vector<8x8xf32>
    %cst_219 = arith.constant 0.353553385 : f32
    %564 = vector.broadcast %cst_219 : f32 to vector<8x8xf32>
    %565 = arith.mulf %563, %564 : vector<8x8xf32>
    %566 = arith.truncf %565 : vector<8x8xf32> to vector<8x8xbf16>
    %567 = vector.extract_strided_slice %513 {offsets = [0, 16], sizes = [8, 8], strides = [1, 1]} : vector<8x32xf32> to vector<8x8xf32>
    %568 = arith.truncf %567 : vector<8x8xf32> to vector<8x8xbf16>
    %569 = vector.extract_strided_slice %520 {offsets = [0, 16], sizes = [8, 8], strides = [1, 1]} : vector<8x32xf32> to vector<8x8xf32>
    %570 = arith.truncf %569 : vector<8x8xf32> to vector<8x8xbf16>
    %cst_220 = arith.constant dense<0.000000e+00> : vector<8x8xf32>
    %571 = tpu.matmul %566, %568, %cst_220 {dimension_numbers = #tpu.dot_dimension_numbers<[1], [1], [0], [0], [0, 0, 1, 0], [], []>} : vector<8x8xbf16>, vector<8x8xbf16>, vector<8x8xf32> -> vector<8x8xf32>
    %cst_221 = arith.constant dense<0xFF800000> : vector<8xf32>
    %572 = vector.multi_reduction <maximumf>, %571, %cst_221 [1] : vector<8x8xf32> to vector<8xf32>
    %573 = vector.shape_cast %572 : vector<8xf32> to vector<8x1xf32>
    %574 = vector.broadcast %573 : vector<8x1xf32> to vector<8x8xf32>
    %575 = arith.subf %571, %574 : vector<8x8xf32>
    %576 = math.exp %575 : vector<8x8xf32>
    %cst_222 = arith.constant dense<0.000000e+00> : vector<8xf32>
    %577 = vector.multi_reduction <add>, %576, %cst_222 [1] : vector<8x8xf32> to vector<8xf32>
    %578 = vector.shape_cast %577 : vector<8xf32> to vector<8x1xf32>
    %579 = tpu.reciprocal %578 {approx = true} : vector<8x1xf32> -> vector<8x1xf32>
    %580 = vector.broadcast %579 : vector<8x1xf32> to vector<8x8xf32>
    %581 = arith.mulf %576, %580 : vector<8x8xf32>
    %582 = arith.truncf %581 : vector<8x8xf32> to vector<8x8xbf16>
    %cst_223 = arith.constant dense<0.000000e+00> : vector<8x8xf32>
    %583 = tpu.matmul %582, %570, %cst_223 {dimension_numbers = #tpu.dot_dimension_numbers<[1], [0], [0], [1], [0, 0, 1, 1], [], []>} : vector<8x8xbf16>, vector<8x8xbf16>, vector<8x8xf32> -> vector<8x8xf32>
    %584 = vector.extract_strided_slice %506 {offsets = [0, 24], sizes = [8, 8], strides = [1, 1]} : vector<8x32xf32> to vector<8x8xf32>
    %cst_224 = arith.constant 0.353553385 : f32
    %585 = vector.broadcast %cst_224 : f32 to vector<8x8xf32>
    %586 = arith.mulf %584, %585 : vector<8x8xf32>
    %587 = arith.truncf %586 : vector<8x8xf32> to vector<8x8xbf16>
    %588 = vector.extract_strided_slice %513 {offsets = [0, 24], sizes = [8, 8], strides = [1, 1]} : vector<8x32xf32> to vector<8x8xf32>
    %589 = arith.truncf %588 : vector<8x8xf32> to vector<8x8xbf16>
    %590 = vector.extract_strided_slice %520 {offsets = [0, 24], sizes = [8, 8], strides = [1, 1]} : vector<8x32xf32> to vector<8x8xf32>
    %591 = arith.truncf %590 : vector<8x8xf32> to vector<8x8xbf16>
    %cst_225 = arith.constant dense<0.000000e+00> : vector<8x8xf32>
    %592 = tpu.matmul %587, %589, %cst_225 {dimension_numbers = #tpu.dot_dimension_numbers<[1], [1], [0], [0], [0, 0, 1, 0], [], []>} : vector<8x8xbf16>, vector<8x8xbf16>, vector<8x8xf32> -> vector<8x8xf32>
    %cst_226 = arith.constant dense<0xFF800000> : vector<8xf32>
    %593 = vector.multi_reduction <maximumf>, %592, %cst_226 [1] : vector<8x8xf32> to vector<8xf32>
    %594 = vector.shape_cast %593 : vector<8xf32> to vector<8x1xf32>
    %595 = vector.broadcast %594 : vector<8x1xf32> to vector<8x8xf32>
    %596 = arith.subf %592, %595 : vector<8x8xf32>
    %597 = math.exp %596 : vector<8x8xf32>
    %cst_227 = arith.constant dense<0.000000e+00> : vector<8xf32>
    %598 = vector.multi_reduction <add>, %597, %cst_227 [1] : vector<8x8xf32> to vector<8xf32>
    %599 = vector.shape_cast %598 : vector<8xf32> to vector<8x1xf32>
    %600 = tpu.reciprocal %599 {approx = true} : vector<8x1xf32> -> vector<8x1xf32>
    %601 = vector.broadcast %600 : vector<8x1xf32> to vector<8x8xf32>
    %602 = arith.mulf %597, %601 : vector<8x8xf32>
    %603 = arith.truncf %602 : vector<8x8xf32> to vector<8x8xbf16>
    %cst_228 = arith.constant dense<0.000000e+00> : vector<8x8xf32>
    %604 = tpu.matmul %603, %591, %cst_228 {dimension_numbers = #tpu.dot_dimension_numbers<[1], [0], [0], [1], [0, 0, 1, 1], [], []>} : vector<8x8xbf16>, vector<8x8xbf16>, vector<8x8xf32> -> vector<8x8xf32>
    %605 = tpu.concatenate %541, %562, %583, %604 in 1 : vector<8x8xf32>, vector<8x8xf32>, vector<8x8xf32>, vector<8x8xf32> -> vector<8x32xf32>
    %606 = arith.truncf %605 : vector<8x32xf32> to vector<8x32xbf16>
    %c1_229 = arith.constant 1 : index
    %c0_230 = arith.constant 0 : index
    %c0_231 = arith.constant 0 : index
    %607 = vector.load %arg14[%c1_229, %c0_230, %c0_231] : memref<2x32x32xbf16, #tpu.memory_space<vmem>>, vector<1x32x32xbf16>
    %608 = vector.shape_cast %607 : vector<1x32x32xbf16> to vector<32x32xbf16>
    %cst_232 = arith.constant dense<0.000000e+00> : vector<8x32xf32>
    %609 = tpu.matmul %606, %608, %cst_232 {dimension_numbers = #tpu.dot_dimension_numbers<[1], [0], [0], [1], [0, 0, 1, 1], [], []>} : vector<8x32xbf16>, vector<32x32xbf16>, vector<8x32xf32> -> vector<8x32xf32>
    %c1_233 = arith.constant 1 : index
    %c0_234 = arith.constant 0 : index
    %c0_235 = arith.constant 0 : index
    %610 = vector.load %arg15[%c1_233, %c0_234, %c0_235] : memref<2x1x32xf32, #tpu.memory_space<vmem>>, vector<1x1x32xf32>
    %611 = vector.shape_cast %610 : vector<1x1x32xf32> to vector<1x32xf32>
    %612 = vector.broadcast %611 : vector<1x32xf32> to vector<8x32xf32>
    %613 = arith.addf %609, %612 : vector<8x32xf32>
    %614 = arith.addf %498, %613 : vector<8x32xf32>
    %c1_236 = arith.constant 1 : index
    %c0_237 = arith.constant 0 : index
    %c0_238 = arith.constant 0 : index
    %615 = vector.load %arg16[%c1_236, %c0_237, %c0_238] : memref<2x1x32xf32, #tpu.memory_space<vmem>>, vector<1x1x32xf32>
    %616 = vector.shape_cast %615 : vector<1x1x32xf32> to vector<1x32xf32>
    %c1_239 = arith.constant 1 : index
    %c0_240 = arith.constant 0 : index
    %c0_241 = arith.constant 0 : index
    %617 = vector.load %arg17[%c1_239, %c0_240, %c0_241] : memref<2x1x32xf32, #tpu.memory_space<vmem>>, vector<1x1x32xf32>
    %618 = vector.shape_cast %617 : vector<1x1x32xf32> to vector<1x32xf32>
    %cst_242 = arith.constant dense<0.000000e+00> : vector<8xf32>
    %619 = vector.multi_reduction <add>, %614, %cst_242 [1] : vector<8x32xf32> to vector<8xf32>
    %620 = vector.shape_cast %619 : vector<8xf32> to vector<8x1xf32>
    %cst_243 = arith.constant 3.200000e+01 : f32
    %621 = vector.broadcast %cst_243 : f32 to vector<8x1xf32>
    %622 = arith.divf %620, %621 : vector<8x1xf32>
    %623 = vector.broadcast %622 : vector<8x1xf32> to vector<8x32xf32>
    %624 = arith.subf %614, %623 : vector<8x32xf32>
    %625 = arith.mulf %624, %624 : vector<8x32xf32>
    %cst_244 = arith.constant dense<0.000000e+00> : vector<8xf32>
    %626 = vector.multi_reduction <add>, %625, %cst_244 [1] : vector<8x32xf32> to vector<8xf32>
    %627 = vector.shape_cast %626 : vector<8xf32> to vector<8x1xf32>
    %cst_245 = arith.constant 3.200000e+01 : f32
    %628 = vector.broadcast %cst_245 : f32 to vector<8x1xf32>
    %629 = arith.divf %627, %628 : vector<8x1xf32>
    %630 = vector.broadcast %622 : vector<8x1xf32> to vector<8x32xf32>
    %631 = arith.subf %614, %630 : vector<8x32xf32>
    %cst_246 = arith.constant 9.99999974E-6 : f32
    %632 = vector.broadcast %cst_246 : f32 to vector<8x1xf32>
    %633 = arith.addf %629, %632 : vector<8x1xf32>
    %634 = math.rsqrt %633 : vector<8x1xf32>
    %635 = vector.broadcast %634 : vector<8x1xf32> to vector<8x32xf32>
    %636 = arith.mulf %631, %635 : vector<8x32xf32>
    %637 = vector.broadcast %616 : vector<1x32xf32> to vector<8x32xf32>
    %638 = arith.mulf %636, %637 : vector<8x32xf32>
    %639 = vector.broadcast %618 : vector<1x32xf32> to vector<8x32xf32>
    %640 = arith.addf %638, %639 : vector<8x32xf32>
    %641 = arith.truncf %640 : vector<8x32xf32> to vector<8x32xbf16>
    %c1_247 = arith.constant 1 : index
    %c0_248 = arith.constant 0 : index
    %c0_249 = arith.constant 0 : index
    %642 = vector.load %arg18[%c1_247, %c0_248, %c0_249] : memref<2x32x128xbf16, #tpu.memory_space<vmem>>, vector<1x32x128xbf16>
    %643 = vector.shape_cast %642 : vector<1x32x128xbf16> to vector<32x128xbf16>
    %cst_250 = arith.constant dense<0.000000e+00> : vector<8x128xf32>
    %644 = tpu.matmul %641, %643, %cst_250 {dimension_numbers = #tpu.dot_dimension_numbers<[1], [0], [0], [1], [0, 0, 1, 1], [], []>} : vector<8x32xbf16>, vector<32x128xbf16>, vector<8x128xf32> -> vector<8x128xf32>
    %c1_251 = arith.constant 1 : index
    %c0_252 = arith.constant 0 : index
    %c0_253 = arith.constant 0 : index
    %645 = vector.load %arg19[%c1_251, %c0_252, %c0_253] : memref<2x1x128xf32, #tpu.memory_space<vmem>>, vector<1x1x128xf32>
    %646 = vector.shape_cast %645 : vector<1x1x128xf32> to vector<1x128xf32>
    %647 = vector.broadcast %646 : vector<1x128xf32> to vector<8x128xf32>
    %648 = arith.addf %644, %647 : vector<8x128xf32>
    %cst_254 = arith.constant 0.000000e+00 : f32
    %649 = vector.broadcast %cst_254 : f32 to vector<8x128xf32>
    %650 = arith.maximumf %648, %649 : vector<8x128xf32>
    %651 = arith.truncf %650 : vector<8x128xf32> to vector<8x128xbf16>
    %c1_255 = arith.constant 1 : index
    %c0_256 = arith.constant 0 : index
    %c0_257 = arith.constant 0 : index
    %652 = vector.load %arg20[%c1_255, %c0_256, %c0_257] : memref<2x128x32xbf16, #tpu.memory_space<vmem>>, vector<1x128x32xbf16>
    %653 = vector.shape_cast %652 : vector<1x128x32xbf16> to vector<128x32xbf16>
    %cst_258 = arith.constant dense<0.000000e+00> : vector<8x32xf32>
    %654 = tpu.matmul %651, %653, %cst_258 {dimension_numbers = #tpu.dot_dimension_numbers<[1], [0], [0], [1], [0, 0, 1, 1], [], []>} : vector<8x128xbf16>, vector<128x32xbf16>, vector<8x32xf32> -> vector<8x32xf32>
    %c1_259 = arith.constant 1 : index
    %c0_260 = arith.constant 0 : index
    %c0_261 = arith.constant 0 : index
    %655 = vector.load %arg21[%c1_259, %c0_260, %c0_261] : memref<2x1x32xf32, #tpu.memory_space<vmem>>, vector<1x1x32xf32>
    %656 = vector.shape_cast %655 : vector<1x1x32xf32> to vector<1x32xf32>
    %657 = vector.broadcast %656 : vector<1x32xf32> to vector<8x32xf32>
    %658 = arith.addf %654, %657 : vector<8x32xf32>
    %659 = arith.addf %640, %658 : vector<8x32xf32>
    %c1_262 = arith.constant 1 : index
    %c0_263 = arith.constant 0 : index
    %c0_264 = arith.constant 0 : index
    %660 = vector.load %arg22[%c1_262, %c0_263, %c0_264] : memref<2x1x32xf32, #tpu.memory_space<vmem>>, vector<1x1x32xf32>
    %661 = vector.shape_cast %660 : vector<1x1x32xf32> to vector<1x32xf32>
    %c1_265 = arith.constant 1 : index
    %c0_266 = arith.constant 0 : index
    %c0_267 = arith.constant 0 : index
    %662 = vector.load %arg23[%c1_265, %c0_266, %c0_267] : memref<2x1x32xf32, #tpu.memory_space<vmem>>, vector<1x1x32xf32>
    %663 = vector.shape_cast %662 : vector<1x1x32xf32> to vector<1x32xf32>
    %cst_268 = arith.constant dense<0.000000e+00> : vector<8xf32>
    %664 = vector.multi_reduction <add>, %659, %cst_268 [1] : vector<8x32xf32> to vector<8xf32>
    %665 = vector.shape_cast %664 : vector<8xf32> to vector<8x1xf32>
    %cst_269 = arith.constant 3.200000e+01 : f32
    %666 = vector.broadcast %cst_269 : f32 to vector<8x1xf32>
    %667 = arith.divf %665, %666 : vector<8x1xf32>
    %668 = vector.broadcast %667 : vector<8x1xf32> to vector<8x32xf32>
    %669 = arith.subf %659, %668 : vector<8x32xf32>
    %670 = arith.mulf %669, %669 : vector<8x32xf32>
    %cst_270 = arith.constant dense<0.000000e+00> : vector<8xf32>
    %671 = vector.multi_reduction <add>, %670, %cst_270 [1] : vector<8x32xf32> to vector<8xf32>
    %672 = vector.shape_cast %671 : vector<8xf32> to vector<8x1xf32>
    %cst_271 = arith.constant 3.200000e+01 : f32
    %673 = vector.broadcast %cst_271 : f32 to vector<8x1xf32>
    %674 = arith.divf %672, %673 : vector<8x1xf32>
    %675 = vector.broadcast %667 : vector<8x1xf32> to vector<8x32xf32>
    %676 = arith.subf %659, %675 : vector<8x32xf32>
    %cst_272 = arith.constant 9.99999974E-6 : f32
    %677 = vector.broadcast %cst_272 : f32 to vector<8x1xf32>
    %678 = arith.addf %674, %677 : vector<8x1xf32>
    %679 = math.rsqrt %678 : vector<8x1xf32>
    %680 = vector.broadcast %679 : vector<8x1xf32> to vector<8x32xf32>
    %681 = arith.mulf %676, %680 : vector<8x32xf32>
    %682 = vector.broadcast %661 : vector<1x32xf32> to vector<8x32xf32>
    %683 = arith.mulf %681, %682 : vector<8x32xf32>
    %684 = vector.broadcast %663 : vector<1x32xf32> to vector<8x32xf32>
    %685 = arith.addf %683, %684 : vector<8x32xf32>
    %686 = vector.extract_strided_slice %685 {offsets = [7, 0], sizes = [1, 32], strides = [1, 1]} : vector<8x32xf32> to vector<1x32xf32>
    %687 = arith.truncf %686 : vector<1x32xf32> to vector<1x32xbf16>
    %c0_273 = arith.constant 0 : index
    %c0_274 = arith.constant 0 : index
    %688 = vector.load %arg24[%c0_273, %c0_274] : memref<32x16xbf16, #tpu.memory_space<vmem>>, vector<32x16xbf16>
    %cst_275 = arith.constant dense<0.000000e+00> : vector<1x16xf32>
    %689 = tpu.matmul %687, %688, %cst_275 {dimension_numbers = #tpu.dot_dimension_numbers<[1], [0], [0], [1], [0, 0, 1, 1], [], []>} : vector<1x32xbf16>, vector<32x16xbf16>, vector<1x16xf32> -> vector<1x16xf32>
    %c0_276 = arith.constant 0 : index
    %c0_277 = arith.constant 0 : index
    %690 = vector.load %arg25[%c0_276, %c0_277] : memref<1x16xf32, #tpu.memory_space<vmem>>, vector<1x16xf32>
    %691 = arith.addf %689, %690 : vector<1x16xf32>
    %cst_278 = arith.constant 0.000000e+00 : f32
    %692 = vector.broadcast %cst_278 : f32 to vector<1x16xf32>
    %693 = arith.maximumf %691, %692 : vector<1x16xf32>
    %694 = arith.truncf %693 : vector<1x16xf32> to vector<1x16xbf16>
    %c0_279 = arith.constant 0 : index
    %c0_280 = arith.constant 0 : index
    %695 = vector.load %arg26[%c0_279, %c0_280] : memref<16x128xbf16, #tpu.memory_space<vmem>>, vector<16x128xbf16>
    %cst_281 = arith.constant dense<0.000000e+00> : vector<1x128xf32>
    %696 = tpu.matmul %694, %695, %cst_281 {dimension_numbers = #tpu.dot_dimension_numbers<[1], [0], [0], [1], [0, 0, 1, 1], [], []>} : vector<1x16xbf16>, vector<16x128xbf16>, vector<1x128xf32> -> vector<1x128xf32>
    %c0_282 = arith.constant 0 : index
    %c0_283 = arith.constant 0 : index
    %697 = vector.load %arg27[%c0_282, %c0_283] : memref<1x128xf32, #tpu.memory_space<vmem>>, vector<1x128xf32>
    %698 = arith.addf %696, %697 : vector<1x128xf32>
    %c0_284 = arith.constant 0 : index
    %c0_285 = arith.constant 0 : index
    %c0_286 = arith.constant 0 : index
    %699 = vector.load %arg28[%c0_284, %c0_285, %c0_286] : memref<1x1x128xf32, #tpu.memory_space<vmem>>, vector<1x1x128xf32>
    %700 = vector.shape_cast %699 : vector<1x1x128xf32> to vector<1x128xf32>
    %701 = vector.shape_cast %698 : vector<1x128xf32> to vector<1x1x128xf32>
    tpu.vector_store %arg28[%c0_284, %c0_285, %c0_286], %701 {strides = array<i32>} : memref<1x1x128xf32, #tpu.memory_space<vmem>>, vector<1x1x128xf32>,
    return
  }
  func.func @transform_0(%arg0: i32) -> (i32, i32, i32) {
    %c0_i32 = arith.constant 0 : i32
    %c0_i32_0 = arith.constant 0 : i32
    %c0_i32_1 = arith.constant 0 : i32
    return %arg0, %c0_i32, %c0_i32_0 : i32, i32, i32
  }
  func.func @transform_1(%arg0: i32) -> (i32, i32) {
    %c0_i32 = arith.constant 0 : i32
    %c0_i32_0 = arith.constant 0 : i32
    %c0_i32_1 = arith.constant 0 : i32
    return %c0_i32, %c0_i32_0 : i32, i32
  }
  func.func @transform_2(%arg0: i32) -> (i32, i32) {
    %c0_i32 = arith.constant 0 : i32
    %c0_i32_0 = arith.constant 0 : i32
    %c0_i32_1 = arith.constant 0 : i32
    return %c0_i32, %c0_i32_0 : i32, i32
  }
  func.func @transform_3(%arg0: i32) -> (i32, i32) {
    %c0_i32 = arith.constant 0 : i32
    %c0_i32_0 = arith.constant 0 : i32
    %c0_i32_1 = arith.constant 0 : i32
    return %c0_i32, %c0_i32_0 : i32, i32
  }
  func.func @transform_4(%arg0: i32) -> (i32, i32, i32) {
    %c0_i32 = arith.constant 0 : i32
    %c0_i32_0 = arith.constant 0 : i32
    %c0_i32_1 = arith.constant 0 : i32
    %c0_i32_2 = arith.constant 0 : i32
    return %c0_i32, %c0_i32_0, %c0_i32_1 : i32, i32, i32
  }
  func.func @transform_5(%arg0: i32) -> (i32, i32, i32) {
    %c0_i32 = arith.constant 0 : i32
    %c0_i32_0 = arith.constant 0 : i32
    %c0_i32_1 = arith.constant 0 : i32
    %c0_i32_2 = arith.constant 0 : i32
    return %c0_i32, %c0_i32_0, %c0_i32_1 : i32, i32, i32
  }
  func.func @transform_6(%arg0: i32) -> (i32, i32, i32) {
    %c0_i32 = arith.constant 0 : i32
    %c0_i32_0 = arith.constant 0 : i32
    %c0_i32_1 = arith.constant 0 : i32
    %c0_i32_2 = arith.constant 0 : i32
    return %c0_i32, %c0_i32_0, %c0_i32_1 : i32, i32, i32
  }
  func.func @transform_7(%arg0: i32) -> (i32, i32, i32) {
    %c0_i32 = arith.constant 0 : i32
    %c0_i32_0 = arith.constant 0 : i32
    %c0_i32_1 = arith.constant 0 : i32
    %c0_i32_2 = arith.constant 0 : i32
    return %c0_i32, %c0_i32_0, %c0_i32_1 : i32, i32, i32
  }
  func.func @transform_8(%arg0: i32) -> (i32, i32, i32) {
    %c0_i32 = arith.constant 0 : i32
    %c0_i32_0 = arith.constant 0 : i32
    %c0_i32_1 = arith.constant 0 : i32
    %c0_i32_2 = arith.constant 0 : i32
    return %c0_i32, %c0_i32_0, %c0_i32_1 : i32, i32, i32
  }
  func.func @transform_9(%arg0: i32) -> (i32, i32, i32) {
    %c0_i32 = arith.constant 0 : i32
    %c0_i32_0 = arith.constant 0 : i32
    %c0_i32_1 = arith.constant 0 : i32
    %c0_i32_2 = arith.constant 0 : i32
    return %c0_i32, %c0_i32_0, %c0_i32_1 : i32, i32, i32
  }
  func.func @transform_10(%arg0: i32) -> (i32, i32, i32) {
    %c0_i32 = arith.constant 0 : i32
    %c0_i32_0 = arith.constant 0 : i32
    %c0_i32_1 = arith.constant 0 : i32
    %c0_i32_2 = arith.constant 0 : i32
    return %c0_i32, %c0_i32_0, %c0_i32_1 : i32, i32, i32
  }
  func.func @transform_11(%arg0: i32) -> (i32, i32, i32) {
    %c0_i32 = arith.constant 0 : i32
    %c0_i32_0 = arith.constant 0 : i32
    %c0_i32_1 = arith.constant 0 : i32
    %c0_i32_2 = arith.constant 0 : i32
    return %c0_i32, %c0_i32_0, %c0_i32_1 : i32, i32, i32
  }
  func.func @transform_12(%arg0: i32) -> (i32, i32, i32) {
    %c0_i32 = arith.constant 0 : i32
    %c0_i32_0 = arith.constant 0 : i32
    %c0_i32_1 = arith.constant 0 : i32
    %c0_i32_2 = arith.constant 0 : i32
    return %c0_i32, %c0_i32_0, %c0_i32_1 : i32, i32, i32
  }
  func.func @transform_13(%arg0: i32) -> (i32, i32, i32) {
    %c0_i32 = arith.constant 0 : i32
    %c0_i32_0 = arith.constant 0 : i32
    %c0_i32_1 = arith.constant 0 : i32
    %c0_i32_2 = arith.constant 0 : i32
    return %c0_i32, %c0_i32_0, %c0_i32_1 : i32, i32, i32
  }
  func.func @transform_14(%arg0: i32) -> (i32, i32, i32) {
    %c0_i32 = arith.constant 0 : i32
    %c0_i32_0 = arith.constant 0 : i32
    %c0_i32_1 = arith.constant 0 : i32
    %c0_i32_2 = arith.constant 0 : i32
    return %c0_i32, %c0_i32_0, %c0_i32_1 : i32, i32, i32
  }
  func.func @transform_15(%arg0: i32) -> (i32, i32, i32) {
    %c0_i32 = arith.constant 0 : i32
    %c0_i32_0 = arith.constant 0 : i32
    %c0_i32_1 = arith.constant 0 : i32
    %c0_i32_2 = arith.constant 0 : i32
    return %c0_i32, %c0_i32_0, %c0_i32_1 : i32, i32, i32
  }
  func.func @transform_16(%arg0: i32) -> (i32, i32, i32) {
    %c0_i32 = arith.constant 0 : i32
    %c0_i32_0 = arith.constant 0 : i32
    %c0_i32_1 = arith.constant 0 : i32
    %c0_i32_2 = arith.constant 0 : i32
    return %c0_i32, %c0_i32_0, %c0_i32_1 : i32, i32, i32
  }
  func.func @transform_17(%arg0: i32) -> (i32, i32, i32) {
    %c0_i32 = arith.constant 0 : i32
    %c0_i32_0 = arith.constant 0 : i32
    %c0_i32_1 = arith.constant 0 : i32
    %c0_i32_2 = arith.constant 0 : i32
    return %c0_i32, %c0_i32_0, %c0_i32_1 : i32, i32, i32
  }
  func.func @transform_18(%arg0: i32) -> (i32, i32, i32) {
    %c0_i32 = arith.constant 0 : i32
    %c0_i32_0 = arith.constant 0 : i32
    %c0_i32_1 = arith.constant 0 : i32
    %c0_i32_2 = arith.constant 0 : i32
    return %c0_i32, %c0_i32_0, %c0_i32_1 : i32, i32, i32
  }
  func.func @transform_19(%arg0: i32) -> (i32, i32, i32) {
    %c0_i32 = arith.constant 0 : i32
    %c0_i32_0 = arith.constant 0 : i32
    %c0_i32_1 = arith.constant 0 : i32
    %c0_i32_2 = arith.constant 0 : i32
    return %c0_i32, %c0_i32_0, %c0_i32_1 : i32, i32, i32
  }
  func.func @transform_20(%arg0: i32) -> (i32, i32, i32) {
    %c0_i32 = arith.constant 0 : i32
    %c0_i32_0 = arith.constant 0 : i32
    %c0_i32_1 = arith.constant 0 : i32
    %c0_i32_2 = arith.constant 0 : i32
    return %c0_i32, %c0_i32_0, %c0_i32_1 : i32, i32, i32
  }
  func.func @transform_21(%arg0: i32) -> (i32, i32, i32) {
    %c0_i32 = arith.constant 0 : i32
    %c0_i32_0 = arith.constant 0 : i32
    %c0_i32_1 = arith.constant 0 : i32
    %c0_i32_2 = arith.constant 0 : i32
    return %c0_i32, %c0_i32_0, %c0_i32_1 : i32, i32, i32
  }
  func.func @transform_22(%arg0: i32) -> (i32, i32, i32) {
    %c0_i32 = arith.constant 0 : i32
    %c0_i32_0 = arith.constant 0 : i32
    %c0_i32_1 = arith.constant 0 : i32
    %c0_i32_2 = arith.constant 0 : i32
    return %c0_i32, %c0_i32_0, %c0_i32_1 : i32, i32, i32
  }
  func.func @transform_23(%arg0: i32) -> (i32, i32) {
    %c0_i32 = arith.constant 0 : i32
    %c0_i32_0 = arith.constant 0 : i32
    %c0_i32_1 = arith.constant 0 : i32
    return %c0_i32, %c0_i32_0 : i32, i32
  }
  func.func @transform_24(%arg0: i32) -> (i32, i32) {
    %c0_i32 = arith.constant 0 : i32
    %c0_i32_0 = arith.constant 0 : i32
    %c0_i32_1 = arith.constant 0 : i32
    return %c0_i32, %c0_i32_0 : i32, i32
  }
  func.func @transform_25(%arg0: i32) -> (i32, i32) {
    %c0_i32 = arith.constant 0 : i32
    %c0_i32_0 = arith.constant 0 : i32
    %c0_i32_1 = arith.constant 0 : i32
    return %c0_i32, %c0_i32_0 : i32, i32
  }
  func.func @transform_26(%arg0: i32) -> (i32, i32) {
    %c0_i32 = arith.constant 0 : i32
    %c0_i32_0 = arith.constant 0 : i32
    %c0_i32_1 = arith.constant 0 : i32
    return %c0_i32, %c0_i32_0 : i32, i32
  }
  func.func @transform_27(%arg0: i32) -> (i32, i32, i32) {
    %c0_i32 = arith.constant 0 : i32
    %c0_i32_0 = arith.constant 0 : i32
    %c0_i32_1 = arith.constant 0 : i32
    return %arg0, %c0_i32, %c0_i32_0 : i32, i32, i32
  }
}

</mosaic_0001>

<llo_original>
// kernel: tpu_custom_call.1
$region0: #{tpu_custom_call.1}
  #allocation0 [shape = 'u32[]', space=smem, size = 0x4, offset = 0x4, fixed_abs, tag = 'smem constant byte address 0x4 - core index']
  #allocation1 [shape = 'u32[72,128]{1,0:T(1,128)}', space=vmem, size = 0x9000, scoped, tag = 'internal scratch']
  %s0 = inlined_call_operand.vmem [shape: f32[2,8,4], index: 0, kind: input, shape index: {}]
  %s1 = inlined_call_operand.vmem [shape: f32[8,32], index: 1, kind: input, shape index: {}]
  %s2 = inlined_call_operand.vmem [shape: f32[4,32], index: 2, kind: input, shape index: {}]
  %s3 = inlined_call_operand.hbm [shape: f32[1,32], index: 3, kind: input, shape index: {}]
  %s4 = inlined_call_operand.vmem [shape: f32[4,32,32], index: 4, kind: input, shape index: {}]
  %s5 = inlined_call_operand.hbm [shape: f32[4,32,32], index: 5, kind: input, shape index: {}]
  %s6 = inlined_call_operand.vmem [shape: f32[4,1,32], index: 6, kind: input, shape index: {}]
  %s7 = inlined_call_operand.vmem [shape: bf16[2,32,32], index: 7, kind: input, shape index: {}]
  %s8 = inlined_call_operand.hbm [shape: f32[2,1,32], index: 8, kind: input, shape index: {}]
  %s9 = inlined_call_operand.hbm [shape: bf16[2,32,32], index: 9, kind: input, shape index: {}]
  %s10 = inlined_call_operand.hbm [shape: f32[2,1,32], index: 10, kind: input, shape index: {}]
  %s11 = inlined_call_operand.hbm [shape: bf16[2,32,32], index: 11, kind: input, shape index: {}]
  %s12 = inlined_call_operand.hbm [shape: f32[2,1,32], index: 12, kind: input, shape index: {}]
  %s13 = inlined_call_operand.hbm [shape: bf16[2,32,32], index: 13, kind: input, shape index: {}]
  %s14 = inlined_call_operand.hbm [shape: f32[2,1,32], index: 14, kind: input, shape index: {}]
  %s15 = inlined_call_operand.hbm [shape: f32[2,1,32], index: 15, kind: input, shape index: {}]
  %s16 = inlined_call_operand.hbm [shape: f32[2,1,32], index: 16, kind: input, shape index: {}]
  %s17 = inlined_call_operand.hbm [shape: bf16[2,32,128], index: 17, kind: input, shape index: {}]
  %s18 = inlined_call_operand.hbm [shape: f32[2,1,128], index: 18, kind: input, shape index: {}]
  %s19 = inlined_call_operand.vmem [shape: bf16[2,128,32], index: 19, kind: input, shape index: {}]
  %s20 = inlined_call_operand.hbm [shape: f32[2,1,32], index: 20, kind: input, shape index: {}]
  %s21 = inlined_call_operand.vmem [shape: f32[2,1,32], index: 21, kind: input, shape index: {}]
  %s22 = inlined_call_operand.vmem [shape: f32[2,1,32], index: 22, kind: input, shape index: {}]
  %s23 = inlined_call_operand.vmem [shape: bf16[32,16], index: 23, kind: input, shape index: {}]
  %s24 = inlined_call_operand.vmem [shape: f32[1,16], index: 24, kind: input, shape index: {}]
  %s25 = inlined_call_operand.vmem [shape: bf16[16,128], index: 25, kind: input, shape index: {}]
  %s26 = inlined_call_operand.vmem [shape: f32[1,128], index: 26, kind: input, shape index: {}]
  %s27 = inlined_call_operand.hbm [shape: f32[2,1,128], index: 27, kind: output, shape index: {}]
  %s28 = sld [smem:[#allocation0]]
  $region197: #{tpu_custom_call.1} parent=0
    _
  %s30 = ssub.s32 1, %s28
  %s31 = scalar_select 0, %s30, %s28
  $region1: #{tpu_custom_call.1} parent=0
    #allocation2 [shape = 'u8[512]{0}', space=vmem, size = 0x400, scoped, tag = 'input window, operand 3, single buffered']
    #allocation3 [shape = 's32[2]{0}', space=sflag, size = 0x8, scoped, tag = 'scoped memory for tpu_custom_call.1']
    #allocation4 [shape = 's32[2]{0}', space=sflag, size = 0x8, scoped, tag = 'scoped memory for tpu_custom_call.1']
    #allocation5 [shape = 'u8[65536]{0}', space=vmem, size = 0x10000, scoped, tag = 'input window, operand 5, single buffered']
    #allocation6 [shape = 's32[1]{0}', space=sflag, size = 0x4, scoped, tag = 'scoped memory for tpu_custom_call.1']
    #allocation7 [shape = 'u8[1024]{0}', space=vmem, size = 0x400, scoped, tag = 'input window, operand 8, single buffered']
    #allocation8 [shape = 'u8[16384]{0}', space=vmem, size = 0x4000, scoped, tag = 'input window, operand 9, single buffered']
    #allocation9 [shape = 's32[1]{0}', space=sflag, size = 0x4, scoped, tag = 'scoped memory for tpu_custom_call.1']
    #allocation10 [shape = 'u8[1024]{0}', space=vmem, size = 0x400, scoped, tag = 'input window, operand 10, single buffered']
    #allocation11 [shape = 'u8[16384]{0}', space=vmem, size = 0x4000, scoped, tag = 'input window, operand 11, single buffered']
    #allocation12 [shape = 's32[1]{0}', space=sflag, size = 0x4, scoped, tag = 'scoped memory for tpu_custom_call.1']
    #allocation13 [shape = 'u8[1024]{0}', space=vmem, size = 0x400, scoped, tag = 'input window, operand 12, single buffered']
    #allocation14 [shape = 'u8[16384]{0}', space=vmem, size = 0x4000, scoped, tag = 'input window, operand 13, single buffered']
    #allocation15 [shape = 's32[1]{0}', space=sflag, size = 0x4, scoped, tag = 'scoped memory for tpu_custom_call.1']
    #allocation16 [shape = 'u8[1024]{0}', space=vmem, size = 0x400, scoped, tag = 'input window, operand 14, single buffered']
    #allocation17 [shape = 'u8[1024]{0}', space=vmem, size = 0x400, scoped, tag = 'input window, operand 15, single buffered']
    #allocation18 [shape = 's32[1]{0}', space=sflag, size = 0x4, scoped, tag = 'scoped memory for tpu_custom_call.1']
    #allocation19 [shape = 'u8[1024]{0}', space=vmem, size = 0x400, scoped, tag = 'input window, operand 16, single buffered']
    #allocation20 [shape = 'u8[16384]{0}', space=vmem, size = 0x4000, scoped, tag = 'input window, operand 17, single buffered']
    #allocation21 [shape = 's32[1]{0}', space=sflag, size = 0x4, scoped, tag = 'scoped memory for tpu_custom_call.1']
    #allocation22 [shape = 'u8[1024]{0}', space=vmem, size = 0x400, scoped, tag = 'input window, operand 18, single buffered']
    #allocation23 [shape = 'u8[1024]{0}', space=vmem, size = 0x400, scoped, tag = 'input window, operand 20, single buffered']
    #allocation24 [shape = 's32[1]{0}', space=sflag, size = 0x4, scoped, tag = 'scoped memory for tpu_custom_call.1']
    #allocation25 [shape = 'u8[1024]{0}', space=vmem, size = 0x400, scoped, tag = 'output window, operand 0']
    %32 = vsyncpa [#allocation3], 0
    %33 = vsyncpa [#allocation6], 0
    %34 = vsyncpa [#allocation9], 0
    %35 = vsyncpa [#allocation12], 0
    %36 = vsyncpa [#allocation15], 0
    %37 = vsyncpa [#allocation18], 0
    %38 = vsyncpa [#allocation21], 0
    %39 = vsyncpa [#allocation24], 0
    %40 = vsyncpa [#allocation4], 0
    %s41 = scalar_lea.sflag [#allocation4], 1
    %42 = vsyncpa %s41, 0
    loop: start=0, step=1, limit=4
    $region2: #{tpu_custom_call.1} parent=1 // loop_pre_header
      _
    $region3: #{tpu_custom_call.1} parent=1 // loop_header
      %s44 = sphi 0, %s48
      %p45 = scmp.ge.s32.totalorder %s44, 4
      %s54 = sphi 0, %s56
      %s57 = sphi 0, %s54
      %s58 = sphi 0, %s57
      %s74 = sphi 0, %s58
      %s78 = sphi 0, %s78
      %s80 = sphi 0, %s78
      %s81 = sphi 0, %s80
      %s95 = sphi 0, %s81
      %s99 = sphi 0, %s99
      %s101 = sphi 0, %s99
      %s102 = sphi 0, %s101
      %s116 = sphi 0, %s102
      %s120 = sphi 0, %s120
      %s122 = sphi 0, %s120
      %s123 = sphi 0, %s122
      %s137 = sphi 0, %s123
      %s141 = sphi 0, %s141
      %s143 = sphi 0, %s141
      %s144 = sphi 0, %s143
      %s158 = sphi 0, %s144
      %s162 = sphi 0, %s162
      %s164 = sphi 0, %s162
      %s165 = sphi 0, %s164
      %s179 = sphi 0, %s165
      %s183 = sphi 0, %s183
      %s185 = sphi 0, %s183
      %s186 = sphi 0, %s185
      %s200 = sphi 0, %s186
      %s204 = sphi 0, %s204
      %s206 = sphi 0, %s204
      %s207 = sphi 0, %s206
      %s221 = sphi 0, %s207
      %s225 = sphi 0, %s225
      %s227 = sphi 0, %s225
      %s228 = sphi 0, %s227
      %s242 = sphi 0, %s228
      %s246 = sphi 0, %s246
      %s248 = sphi 0, %s246
      %s249 = sphi 0, %s248
      %s263 = sphi 0, %s249
      %s267 = sphi 0, %s267
      %s269 = sphi 0, %s267
      %s270 = sphi 0, %s269
      %s284 = sphi 0, %s270
      %s288 = sphi 0, %s288
      %s290 = sphi 0, %s288
      %s291 = sphi 0, %s290
      %s305 = sphi 0, %s291
      %s309 = sphi 0, %s309
      %s311 = sphi 0, %s309
      %s312 = sphi 0, %s311
      %s326 = sphi 0, %s312
      %s330 = sphi 0, %s330
      %s332 = sphi 0, %s330
      %s333 = sphi 0, %s332
      %s347 = sphi 0, %s333
      %s351 = sphi 0, %s351
      %s353 = sphi 0, %s351
      %s354 = sphi 0, %s353
      %s368 = sphi 0, %s354
      %s372 = sphi 0, %s372
      %s374 = sphi 0, %s372
      %s375 = sphi 0, %s374
      %s389 = sphi 0, %s375
      %s393 = sphi 0, %s393
      %s395 = sphi 0, %s393
      %s396 = sphi 0, %s395
      %s410 = sphi 0, %s396
      %s414 = sphi 0, %s414
      %s416 = sphi 0, %s414
      %s417 = sphi 0, %s416
      %s431 = sphi 0, %s417
      %s435 = sphi 0, %s435
      %s437 = sphi 0, %s435
      %s438 = sphi 0, %s437
      %s452 = sphi 0, %s438
      %s456 = sphi 0, %s456
      %s458 = sphi 0, %s456
      %s459 = sphi 0, %s458
      %s473 = sphi 0, %s459
      %s477 = sphi 0, %s477
      %s479 = sphi 0, %s477
      %s480 = sphi 0, %s479
      %s494 = sphi 0, %s480
      %s498 = sphi 0, %s498
      %s500 = sphi 0, %s498
      %s501 = sphi 0, %s500
      %s515 = sphi 0, %s501
      %s519 = sphi 0, %s519
      %s521 = sphi 0, %s519
      %s522 = sphi 0, %s521
      %s536 = sphi 0, %s522
      %s540 = sphi 0, %s540
      %s542 = sphi 0, %s540
      %s543 = sphi 0, %s542
      %s557 = sphi 0, %s543
      %s561 = sphi 0, %s561
      %s563 = sphi 0, %s561
      %s564 = sphi 0, %s563
      %s578 = sphi 0, %s564
      %s582 = sphi 0, %s582
      %s584 = sphi 0, %s582
      %s585 = sphi 0, %s584
      %s599 = sphi 0, %s585
      %s603 = sphi 0, %s603
      %s605 = sphi 0, %s603
      %s606 = sphi 0, %s605
      %s620 = sphi 0, %s606
      %s626 = sphi 0, %s628
      %s629 = sphi 0, %s626
      %s630 = sphi 0, %s629
      %s646 = sphi 0, %s630
    $region4: #{tpu_custom_call.1} parent=1 // loop_header_branch
      %47 = sbr.rel (%p45) target = $region8
    $region5: #{tpu_custom_call.1} parent=1 // loop_body
      %s49 = ssub.s32 %s44, 1
      %s50 = ssub.s32 %s44, 2
      %s51 = sadd.s32 %s44, 1
      %s52 = ssub.s32 %s44, %s51
      %p53 = scmp.eq.s32.totalorder %s52, 0
      %s55 = sadd.s32 %s54, 1
      %s56 = scalar_select %p53, %s54, %s55
      %p59 = pneg %p53
      %p60 = scmp.eq.s32.totalorder %s44, 1
      %p61 = por %p59, %p60
      %p62 = scmp.ne.s32.totalorder %s54, %s57
      %p63 = scmp.eq.s32.totalorder %s44, 0
      %p64 = por %p62, %p63
      %p65 = scmp.ne.s32.totalorder %s54, %s57
      %p66 = scmp.eq.s32.totalorder %s49, 1
      %p67 = por %p65, %p66
      %p68 = scmp.ne.s32.totalorder %s57, %s58
      %p69 = scmp.eq.s32.totalorder %s49, 0
      %p70 = por %p68, %p69
      %p71 = scmp.ne.s32.totalorder %s57, %s58
      %p72 = scmp.eq.s32.totalorder %s50, 1
      %p73 = por %p71, %p72
      %p75 = scmp.ne.s32.totalorder %s58, %s74
      %p76 = scmp.eq.s32.totalorder %s50, 0
      %p77 = por %p75, %p76
      %s79 = sadd.s32 %s78, 1
      %p82 = scmp.eq.s32.totalorder %s44, 1
      %p83 = scmp.ne.s32.totalorder %s78, %s80
      %p84 = scmp.eq.s32.totalorder %s44, 0
      %p85 = por %p83, %p84
      %p86 = scmp.ne.s32.totalorder %s78, %s80
      %p87 = scmp.eq.s32.totalorder %s49, 1
      %p88 = por %p86, %p87
      %p89 = scmp.ne.s32.totalorder %s80, %s81
      %p90 = scmp.eq.s32.totalorder %s49, 0
      %p91 = por %p89, %p90
      %p92 = scmp.ne.s32.totalorder %s80, %s81
      %p93 = scmp.eq.s32.totalorder %s50, 1
      %p94 = por %p92, %p93
      %p96 = scmp.ne.s32.totalorder %s81, %s95
      %p97 = scmp.eq.s32.totalorder %s50, 0
      %p98 = por %p96, %p97
      %s100 = sadd.s32 %s99, 1
      %p103 = scmp.eq.s32.totalorder %s44, 1
      %p104 = scmp.ne.s32.totalorder %s99, %s101
      %p105 = scmp.eq.s32.totalorder %s44, 0
      %p106 = por %p104, %p105
      %p107 = scmp.ne.s32.totalorder %s99, %s101
      %p108 = scmp.eq.s32.totalorder %s49, 1
      %p109 = por %p107, %p108
      %p110 = scmp.ne.s32.totalorder %s101, %s102
      %p111 = scmp.eq.s32.totalorder %s49, 0
      %p112 = por %p110, %p111
      %p113 = scmp.ne.s32.totalorder %s101, %s102
      %p114 = scmp.eq.s32.totalorder %s50, 1
      %p115 = por %p113, %p114
      %p117 = scmp.ne.s32.totalorder %s102, %s116
      %p118 = scmp.eq.s32.totalorder %s50, 0
      %p119 = por %p117, %p118
      %s121 = sadd.s32 %s120, 1
      %p124 = scmp.eq.s32.totalorder %s44, 1
      %p125 = scmp.ne.s32.totalorder %s120, %s122
      %p126 = scmp.eq.s32.totalorder %s44, 0
      %p127 = por %p125, %p126
      %p128 = scmp.ne.s32.totalorder %s120, %s122
      %p129 = scmp.eq.s32.totalorder %s49, 1
      %p130 = por %p128, %p129
      %p131 = scmp.ne.s32.totalorder %s122, %s123
      %p132 = scmp.eq.s32.totalorder %s49, 0
      %p133 = por %p131, %p132
      %p134 = scmp.ne.s32.totalorder %s122, %s123
      %p135 = scmp.eq.s32.totalorder %s50, 1
      %p136 = por %p134, %p135
      %p138 = scmp.ne.s32.totalorder %s123, %s137
      %p139 = scmp.eq.s32.totalorder %s50, 0
      %p140 = por %p138, %p139
      %s142 = sadd.s32 %s141, 1
      %p145 = scmp.eq.s32.totalorder %s44, 1
      %p146 = scmp.ne.s32.totalorder %s141, %s143
      %p147 = scmp.eq.s32.totalorder %s44, 0
      %p148 = por %p146, %p147
      %p149 = scmp.ne.s32.totalorder %s141, %s143
      %p150 = scmp.eq.s32.totalorder %s49, 1
      %p151 = por %p149, %p150
      %p152 = scmp.ne.s32.totalorder %s143, %s144
      %p153 = scmp.eq.s32.totalorder %s49, 0
      %p154 = por %p152, %p153
      %p155 = scmp.ne.s32.totalorder %s143, %s144
      %p156 = scmp.eq.s32.totalorder %s50, 1
      %p157 = por %p155, %p156
      %p159 = scmp.ne.s32.totalorder %s144, %s158
      %p160 = scmp.eq.s32.totalorder %s50, 0
      %p161 = por %p159, %p160
      %s163 = sadd.s32 %s162, 1
      %p166 = scmp.eq.s32.totalorder %s44, 1
      %p167 = scmp.ne.s32.totalorder %s162, %s164
      %p168 = scmp.eq.s32.totalorder %s44, 0
      %p169 = por %p167, %p168
      %p170 = scmp.ne.s32.totalorder %s162, %s164
      %p171 = scmp.eq.s32.totalorder %s49, 1
      %p172 = por %p170, %p171
      %p173 = scmp.ne.s32.totalorder %s164, %s165
      %p174 = scmp.eq.s32.totalorder %s49, 0
      %p175 = por %p173, %p174
      %p176 = scmp.ne.s32.totalorder %s164, %s165
      %p177 = scmp.eq.s32.totalorder %s50, 1
      %p178 = por %p176, %p177
      %p180 = scmp.ne.s32.totalorder %s165, %s179
      %p181 = scmp.eq.s32.totalorder %s50, 0
      %p182 = por %p180, %p181
      %s184 = sadd.s32 %s183, 1
      %p187 = scmp.eq.s32.totalorder %s44, 1
      %p188 = scmp.ne.s32.totalorder %s183, %s185
      %p189 = scmp.eq.s32.totalorder %s44, 0
      %p190 = por %p188, %p189
      %p191 = scmp.ne.s32.totalorder %s183, %s185
      %p192 = scmp.eq.s32.totalorder %s49, 1
      %p193 = por %p191, %p192
      %p194 = scmp.ne.s32.totalorder %s185, %s186
      %p195 = scmp.eq.s32.totalorder %s49, 0
      %p196 = por %p194, %p195
      %p197 = scmp.ne.s32.totalorder %s185, %s186
      %p198 = scmp.eq.s32.totalorder %s50, 1
      %p199 = por %p197, %p198
      %p201 = scmp.ne.s32.totalorder %s186, %s200
      %p202 = scmp.eq.s32.totalorder %s50, 0
      %p203 = por %p201, %p202
      %s205 = sadd.s32 %s204, 1
      %p208 = scmp.eq.s32.totalorder %s44, 1
      %p209 = scmp.ne.s32.totalorder %s204, %s206
      %p210 = scmp.eq.s32.totalorder %s44, 0
      %p211 = por %p209, %p210
      %p212 = scmp.ne.s32.totalorder %s204, %s206
      %p213 = scmp.eq.s32.totalorder %s49, 1
      %p214 = por %p212, %p213
      %p215 = scmp.ne.s32.totalorder %s206, %s207
      %p216 = scmp.eq.s32.totalorder %s49, 0
      %p217 = por %p215, %p216
      %p218 = scmp.ne.s32.totalorder %s206, %s207
      %p219 = scmp.eq.s32.totalorder %s50, 1
      %p220 = por %p218, %p219
      %p222 = scmp.ne.s32.totalorder %s207, %s221
      %p223 = scmp.eq.s32.totalorder %s50, 0
      %p224 = por %p222, %p223
      %s226 = sadd.s32 %s225, 1
      %p229 = scmp.eq.s32.totalorder %s44, 1
      %p230 = scmp.ne.s32.totalorder %s225, %s227
      %p231 = scmp.eq.s32.totalorder %s44, 0
      %p232 = por %p230, %p231
      %p233 = scmp.ne.s32.totalorder %s225, %s227
      %p234 = scmp.eq.s32.totalorder %s49, 1
      %p235 = por %p233, %p234
      %p236 = scmp.ne.s32.totalorder %s227, %s228
      %p237 = scmp.eq.s32.totalorder %s49, 0
      %p238 = por %p236, %p237
      %p239 = scmp.ne.s32.totalorder %s227, %s228
      %p240 = scmp.eq.s32.totalorder %s50, 1
      %p241 = por %p239, %p240
      %p243 = scmp.ne.s32.totalorder %s228, %s242
      %p244 = scmp.eq.s32.totalorder %s50, 0
      %p245 = por %p243, %p244
      %s247 = sadd.s32 %s246, 1
      %p250 = scmp.eq.s32.totalorder %s44, 1
      %p251 = scmp.ne.s32.totalorder %s246, %s248
      %p252 = scmp.eq.s32.totalorder %s44, 0
      %p253 = por %p251, %p252
      %p254 = scmp.ne.s32.totalorder %s246, %s248
      %p255 = scmp.eq.s32.totalorder %s49, 1
      %p256 = por %p254, %p255
      %p257 = scmp.ne.s32.totalorder %s248, %s249
      %p258 = scmp.eq.s32.totalorder %s49, 0
      %p259 = por %p257, %p258
      %p260 = scmp.ne.s32.totalorder %s248, %s249
      %p261 = scmp.eq.s32.totalorder %s50, 1
      %p262 = por %p260, %p261
      %p264 = scmp.ne.s32.totalorder %s249, %s263
      %p265 = scmp.eq.s32.totalorder %s50, 0
      %p266 = por %p264, %p265
      %s268 = sadd.s32 %s267, 1
      %p271 = scmp.eq.s32.totalorder %s44, 1
      %p272 = scmp.ne.s32.totalorder %s267, %s269
      %p273 = scmp.eq.s32.totalorder %s44, 0
      %p274 = por %p272, %p273
      %p275 = scmp.ne.s32.totalorder %s267, %s269
      %p276 = scmp.eq.s32.totalorder %s49, 1
      %p277 = por %p275, %p276
      %p278 = scmp.ne.s32.totalorder %s269, %s270
      %p279 = scmp.eq.s32.totalorder %s49, 0
      %p280 = por %p278, %p279
      %p281 = scmp.ne.s32.totalorder %s269, %s270
      %p282 = scmp.eq.s32.totalorder %s50, 1
      %p283 = por %p281, %p282
      %p285 = scmp.ne.s32.totalorder %s270, %s284
      %p286 = scmp.eq.s32.totalorder %s50, 0
      %p287 = por %p285, %p286
      %s289 = sadd.s32 %s288, 1
      %p292 = scmp.eq.s32.totalorder %s44, 1
      %p293 = scmp.ne.s32.totalorder %s288, %s290
      %p294 = scmp.eq.s32.totalorder %s44, 0
      %p295 = por %p293, %p294
      %p296 = scmp.ne.s32.totalorder %s288, %s290
      %p297 = scmp.eq.s32.totalorder %s49, 1
      %p298 = por %p296, %p297
      %p299 = scmp.ne.s32.totalorder %s290, %s291
      %p300 = scmp.eq.s32.totalorder %s49, 0
      %p301 = por %p299, %p300
      %p302 = scmp.ne.s32.totalorder %s290, %s291
      %p303 = scmp.eq.s32.totalorder %s50, 1
      %p304 = por %p302, %p303
      %p306 = scmp.ne.s32.totalorder %s291, %s305
      %p307 = scmp.eq.s32.totalorder %s50, 0
      %p308 = por %p306, %p307
      %s310 = sadd.s32 %s309, 1
      %p313 = scmp.eq.s32.totalorder %s44, 1
      %p314 = scmp.ne.s32.totalorder %s309, %s311
      %p315 = scmp.eq.s32.totalorder %s44, 0
      %p316 = por %p314, %p315
      %p317 = scmp.ne.s32.totalorder %s309, %s311
      %p318 = scmp.eq.s32.totalorder %s49, 1
      %p319 = por %p317, %p318
      %p320 = scmp.ne.s32.totalorder %s311, %s312
      %p321 = scmp.eq.s32.totalorder %s49, 0
      %p322 = por %p320, %p321
      %p323 = scmp.ne.s32.totalorder %s311, %s312
      %p324 = scmp.eq.s32.totalorder %s50, 1
      %p325 = por %p323, %p324
      %p327 = scmp.ne.s32.totalorder %s312, %s326
      %p328 = scmp.eq.s32.totalorder %s50, 0
      %p329 = por %p327, %p328
      %s331 = sadd.s32 %s330, 1
      %p334 = scmp.eq.s32.totalorder %s44, 1
      %p335 = scmp.ne.s32.totalorder %s330, %s332
      %p336 = scmp.eq.s32.totalorder %s44, 0
      %p337 = por %p335, %p336
      %p338 = scmp.ne.s32.totalorder %s330, %s332
      %p339 = scmp.eq.s32.totalorder %s49, 1
      %p340 = por %p338, %p339
      %p341 = scmp.ne.s32.totalorder %s332, %s333
      %p342 = scmp.eq.s32.totalorder %s49, 0
      %p343 = por %p341, %p342
      %p344 = scmp.ne.s32.totalorder %s332, %s333
      %p345 = scmp.eq.s32.totalorder %s50, 1
      %p346 = por %p344, %p345
      %p348 = scmp.ne.s32.totalorder %s333, %s347
      %p349 = scmp.eq.s32.totalorder %s50, 0
      %p350 = por %p348, %p349
      %s352 = sadd.s32 %s351, 1
      %p355 = scmp.eq.s32.totalorder %s44, 1
      %p356 = scmp.ne.s32.totalorder %s351, %s353
      %p357 = scmp.eq.s32.totalorder %s44, 0
      %p358 = por %p356, %p357
      %p359 = scmp.ne.s32.totalorder %s351, %s353
      %p360 = scmp.eq.s32.totalorder %s49, 1
      %p361 = por %p359, %p360
      %p362 = scmp.ne.s32.totalorder %s353, %s354
      %p363 = scmp.eq.s32.totalorder %s49, 0
      %p364 = por %p362, %p363
      %p365 = scmp.ne.s32.totalorder %s353, %s354
      %p366 = scmp.eq.s32.totalorder %s50, 1
      %p367 = por %p365, %p366
      %p369 = scmp.ne.s32.totalorder %s354, %s368
      %p370 = scmp.eq.s32.totalorder %s50, 0
      %p371 = por %p369, %p370
      %s373 = sadd.s32 %s372, 1
      %p376 = scmp.eq.s32.totalorder %s44, 1
      %p377 = scmp.ne.s32.totalorder %s372, %s374
      %p378 = scmp.eq.s32.totalorder %s44, 0
      %p379 = por %p377, %p378
      %p380 = scmp.ne.s32.totalorder %s372, %s374
      %p381 = scmp.eq.s32.totalorder %s49, 1
      %p382 = por %p380, %p381
      %p383 = scmp.ne.s32.totalorder %s374, %s375
      %p384 = scmp.eq.s32.totalorder %s49, 0
      %p385 = por %p383, %p384
      %p386 = scmp.ne.s32.totalorder %s374, %s375
      %p387 = scmp.eq.s32.totalorder %s50, 1
      %p388 = por %p386, %p387
      %p390 = scmp.ne.s32.totalorder %s375, %s389
      %p391 = scmp.eq.s32.totalorder %s50, 0
      %p392 = por %p390, %p391
      %s394 = sadd.s32 %s393, 1
      %p397 = scmp.eq.s32.totalorder %s44, 1
      %p398 = scmp.ne.s32.totalorder %s393, %s395
      %p399 = scmp.eq.s32.totalorder %s44, 0
      %p400 = por %p398, %p399
      %p401 = scmp.ne.s32.totalorder %s393, %s395
      %p402 = scmp.eq.s32.totalorder %s49, 1
      %p403 = por %p401, %p402
      %p404 = scmp.ne.s32.totalorder %s395, %s396
      %p405 = scmp.eq.s32.totalorder %s49, 0
      %p406 = por %p404, %p405
      %p407 = scmp.ne.s32.totalorder %s395, %s396
      %p408 = scmp.eq.s32.totalorder %s50, 1
      %p409 = por %p407, %p408
      %p411 = scmp.ne.s32.totalorder %s396, %s410
      %p412 = scmp.eq.s32.totalorder %s50, 0
      %p413 = por %p411, %p412
      %s415 = sadd.s32 %s414, 1
      %p418 = scmp.eq.s32.totalorder %s44, 1
      %p419 = scmp.ne.s32.totalorder %s414, %s416
      %p420 = scmp.eq.s32.totalorder %s44, 0
      %p421 = por %p419, %p420
      %p422 = scmp.ne.s32.totalorder %s414, %s416
      %p423 = scmp.eq.s32.totalorder %s49, 1
      %p424 = por %p422, %p423
      %p425 = scmp.ne.s32.totalorder %s416, %s417
      %p426 = scmp.eq.s32.totalorder %s49, 0
      %p427 = por %p425, %p426
      %p428 = scmp.ne.s32.totalorder %s416, %s417
      %p429 = scmp.eq.s32.totalorder %s50, 1
      %p430 = por %p428, %p429
      %p432 = scmp.ne.s32.totalorder %s417, %s431
      %p433 = scmp.eq.s32.totalorder %s50, 0
      %p434 = por %p432, %p433
      %s436 = sadd.s32 %s435, 1
      %p439 = scmp.eq.s32.totalorder %s44, 1
      %p440 = scmp.ne.s32.totalorder %s435, %s437
      %p441 = scmp.eq.s32.totalorder %s44, 0
      %p442 = por %p440, %p441
      %p443 = scmp.ne.s32.totalorder %s435, %s437
      %p444 = scmp.eq.s32.totalorder %s49, 1
      %p445 = por %p443, %p444
      %p446 = scmp.ne.s32.totalorder %s437, %s438
      %p447 = scmp.eq.s32.totalorder %s49, 0
      %p448 = por %p446, %p447
      %p449 = scmp.ne.s32.totalorder %s437, %s438
      %p450 = scmp.eq.s32.totalorder %s50, 1
      %p451 = por %p449, %p450
      %p453 = scmp.ne.s32.totalorder %s438, %s452
      %p454 = scmp.eq.s32.totalorder %s50, 0
      %p455 = por %p453, %p454
      %s457 = sadd.s32 %s456, 1
      %p460 = scmp.eq.s32.totalorder %s44, 1
      %p461 = scmp.ne.s32.totalorder %s456, %s458
      %p462 = scmp.eq.s32.totalorder %s44, 0
      %p463 = por %p461, %p462
      %p464 = scmp.ne.s32.totalorder %s456, %s458
      %p465 = scmp.eq.s32.totalorder %s49, 1
      %p466 = por %p464, %p465
      %p467 = scmp.ne.s32.totalorder %s458, %s459
      %p468 = scmp.eq.s32.totalorder %s49, 0
      %p469 = por %p467, %p468
      %p470 = scmp.ne.s32.totalorder %s458, %s459
      %p471 = scmp.eq.s32.totalorder %s50, 1
      %p472 = por %p470, %p471
      %p474 = scmp.ne.s32.totalorder %s459, %s473
      %p475 = scmp.eq.s32.totalorder %s50, 0
      %p476 = por %p474, %p475
      %s478 = sadd.s32 %s477, 1
      %p481 = scmp.eq.s32.totalorder %s44, 1
      %p482 = scmp.ne.s32.totalorder %s477, %s479
      %p483 = scmp.eq.s32.totalorder %s44, 0
      %p484 = por %p482, %p483
      %p485 = scmp.ne.s32.totalorder %s477, %s479
      %p486 = scmp.eq.s32.totalorder %s49, 1
      %p487 = por %p485, %p486
      %p488 = scmp.ne.s32.totalorder %s479, %s480
      %p489 = scmp.eq.s32.totalorder %s49, 0
      %p490 = por %p488, %p489
      %p491 = scmp.ne.s32.totalorder %s479, %s480
      %p492 = scmp.eq.s32.totalorder %s50, 1
      %p493 = por %p491, %p492
      %p495 = scmp.ne.s32.totalorder %s480, %s494
      %p496 = scmp.eq.s32.totalorder %s50, 0
      %p497 = por %p495, %p496
      %s499 = sadd.s32 %s498, 1
      %p502 = scmp.eq.s32.totalorder %s44, 1
      %p503 = scmp.ne.s32.totalorder %s498, %s500
      %p504 = scmp.eq.s32.totalorder %s44, 0
      %p505 = por %p503, %p504
      %p506 = scmp.ne.s32.totalorder %s498, %s500
      %p507 = scmp.eq.s32.totalorder %s49, 1
      %p508 = por %p506, %p507
      %p509 = scmp.ne.s32.totalorder %s500, %s501
      %p510 = scmp.eq.s32.totalorder %s49, 0
      %p511 = por %p509, %p510
      %p512 = scmp.ne.s32.totalorder %s500, %s501
      %p513 = scmp.eq.s32.totalorder %s50, 1
      %p514 = por %p512, %p513
      %p516 = scmp.ne.s32.totalorder %s501, %s515
      %p517 = scmp.eq.s32.totalorder %s50, 0
      %p518 = por %p516, %p517
      %s520 = sadd.s32 %s519, 1
      %p523 = scmp.eq.s32.totalorder %s44, 1
      %p524 = scmp.ne.s32.totalorder %s519, %s521
      %p525 = scmp.eq.s32.totalorder %s44, 0
      %p526 = por %p524, %p525
      %p527 = scmp.ne.s32.totalorder %s519, %s521
      %p528 = scmp.eq.s32.totalorder %s49, 1
      %p529 = por %p527, %p528
      %p530 = scmp.ne.s32.totalorder %s521, %s522
      %p531 = scmp.eq.s32.totalorder %s49, 0
      %p532 = por %p530, %p531
      %p533 = scmp.ne.s32.totalorder %s521, %s522
      %p534 = scmp.eq.s32.totalorder %s50, 1
      %p535 = por %p533, %p534
      %p537 = scmp.ne.s32.totalorder %s522, %s536
      %p538 = scmp.eq.s32.totalorder %s50, 0
      %p539 = por %p537, %p538
      %s541 = sadd.s32 %s540, 1
      %p544 = scmp.eq.s32.totalorder %s44, 1
      %p545 = scmp.ne.s32.totalorder %s540, %s542
      %p546 = scmp.eq.s32.totalorder %s44, 0
      %p547 = por %p545, %p546
      %p548 = scmp.ne.s32.totalorder %s540, %s542
      %p549 = scmp.eq.s32.totalorder %s49, 1
      %p550 = por %p548, %p549
      %p551 = scmp.ne.s32.totalorder %s542, %s543
      %p552 = scmp.eq.s32.totalorder %s49, 0
      %p553 = por %p551, %p552
      %p554 = scmp.ne.s32.totalorder %s542, %s543
      %p555 = scmp.eq.s32.totalorder %s50, 1
      %p556 = por %p554, %p555
      %p558 = scmp.ne.s32.totalorder %s543, %s557
      %p559 = scmp.eq.s32.totalorder %s50, 0
      %p560 = por %p558, %p559
      %s562 = sadd.s32 %s561, 1
      %p565 = scmp.eq.s32.totalorder %s44, 1
      %p566 = scmp.ne.s32.totalorder %s561, %s563
      %p567 = scmp.eq.s32.totalorder %s44, 0
      %p568 = por %p566, %p567
      %p569 = scmp.ne.s32.totalorder %s561, %s563
      %p570 = scmp.eq.s32.totalorder %s49, 1
      %p571 = por %p569, %p570
      %p572 = scmp.ne.s32.totalorder %s563, %s564
      %p573 = scmp.eq.s32.totalorder %s49, 0
      %p574 = por %p572, %p573
      %p575 = scmp.ne.s32.totalorder %s563, %s564
      %p576 = scmp.eq.s32.totalorder %s50, 1
      %p577 = por %p575, %p576
      %p579 = scmp.ne.s32.totalorder %s564, %s578
      %p580 = scmp.eq.s32.totalorder %s50, 0
      %p581 = por %p579, %p580
      %s583 = sadd.s32 %s582, 1
      %p586 = scmp.eq.s32.totalorder %s44, 1
      %p587 = scmp.ne.s32.totalorder %s582, %s584
      %p588 = scmp.eq.s32.totalorder %s44, 0
      %p589 = por %p587, %p588
      %p590 = scmp.ne.s32.totalorder %s582, %s584
      %p591 = scmp.eq.s32.totalorder %s49, 1
      %p592 = por %p590, %p591
      %p593 = scmp.ne.s32.totalorder %s584, %s585
      %p594 = scmp.eq.s32.totalorder %s49, 0
      %p595 = por %p593, %p594
      %p596 = scmp.ne.s32.totalorder %s584, %s585
      %p597 = scmp.eq.s32.totalorder %s50, 1
      %p598 = por %p596, %p597
      %p600 = scmp.ne.s32.totalorder %s585, %s599
      %p601 = scmp.eq.s32.totalorder %s50, 0
      %p602 = por %p600, %p601
      %s604 = sadd.s32 %s603, 1
      %p607 = scmp.eq.s32.totalorder %s44, 1
      %p608 = scmp.ne.s32.totalorder %s603, %s605
      %p609 = scmp.eq.s32.totalorder %s44, 0
      %p610 = por %p608, %p609
      %p611 = scmp.ne.s32.totalorder %s603, %s605
      %p612 = scmp.eq.s32.totalorder %s49, 1
      %p613 = por %p611, %p612
      %p614 = scmp.ne.s32.totalorder %s605, %s606
      %p615 = scmp.eq.s32.totalorder %s49, 0
      %p616 = por %p614, %p615
      %p617 = scmp.ne.s32.totalorder %s605, %s606
      %p618 = scmp.eq.s32.totalorder %s50, 1
      %p619 = por %p617, %p618
      %p621 = scmp.ne.s32.totalorder %s606, %s620
      %p622 = scmp.eq.s32.totalorder %s50, 0
      %p623 = por %p621, %p622
      %s624 = ssub.s32 %s44, %s51
      %p625 = scmp.eq.s32.totalorder %s624, 0
      %s627 = sadd.s32 %s626, 1
      %s628 = scalar_select %p625, %s626, %s627
      %p631 = pneg %p625
      %p632 = scmp.eq.s32.totalorder %s44, 1
      %p633 = por %p631, %p632
      %p634 = scmp.ne.s32.totalorder %s626, %s629
      %p635 = scmp.eq.s32.totalorder %s44, 0
      %p636 = por %p634, %p635
      %p637 = scmp.ne.s32.totalorder %s626, %s629
      %p638 = scmp.eq.s32.totalorder %s49, 1
      %p639 = por %p637, %p638
      %p640 = scmp.ne.s32.totalorder %s629, %s630
      %p641 = scmp.eq.s32.totalorder %s49, 0
      %p642 = por %p640, %p641
      %p643 = scmp.ne.s32.totalorder %s629, %s630
      %p644 = scmp.eq.s32.totalorder %s50, 1
      %p645 = por %p643, %p644
      %p647 = scmp.ne.s32.totalorder %s630, %s646
      %p648 = scmp.eq.s32.totalorder %s50, 0
      %p649 = por %p647, %p648
      %p650 = scmp.le.s32.totalorder 1, %s44
      %p651 = scmp.lt.s32.totalorder %s44, 3
      %p652 = pnand %p650, %p651
      %p653 = pneg %p652
      // Predicated region
      $region9: #{tpu_custom_call.1} parent=5 // pred_check
        _
      $region10: #{tpu_custom_call.1} parent=5 // pred_check_branch
        %655 = sbr.rel (%p652) target = $region12
      $region11: #{tpu_custom_call.1} parent=5 // pred_region
        %s656 = ssub.s32 %s44, 1
        // Predicated region
        $region13: #{tpu_custom_call.1} parent=11 // pred_check
          %p657 = pneg %p91
        $region14: #{tpu_custom_call.1} parent=11 // pred_check_branch
          %659 = sbr.rel (%p657) target = $region16
        $region15: #{tpu_custom_call.1} parent=11 // pred_region
          _
        $region16: #{tpu_custom_call.1} parent=11 // pred_fallthru
          _
        // Predicated region
        $region17: #{tpu_custom_call.1} parent=11 // pred_check
          %p660 = pneg %p112
        $region18: #{tpu_custom_call.1} parent=11 // pred_check_branch
          %662 = sbr.rel (%p660) target = $region20
        $region19: #{tpu_custom_call.1} parent=11 // pred_region
          _
        $region20: #{tpu_custom_call.1} parent=11 // pred_fallthru
          _
        // Predicated region
        $region21: #{tpu_custom_call.1} parent=11 // pred_check
          %p663 = pneg %p133
        $region22: #{tpu_custom_call.1} parent=11 // pred_check_branch
          %665 = sbr.rel (%p663) target = $region24
        $region23: #{tpu_custom_call.1} parent=11 // pred_region
          %667 = vsyncadd [#allocation3], 0
          %s669 = sshll.u32 %s3, 4
          %s670 = int_to_ptr.hbm [resolvable:$true] %s669
          %s671 = sshll.u32 [#allocation2], 4
          %s672 = int_to_ptr.vmem [resolvable:$true] %s671
          %674 = dma.hbm_to_vmem [thread:$0]  %s670, 16, %s672, [#allocation3]
        $region24: #{tpu_custom_call.1} parent=11 // pred_fallthru
          _
        // Predicated region
        $region25: #{tpu_custom_call.1} parent=11 // pred_check
          %p675 = pneg %p154
        $region26: #{tpu_custom_call.1} parent=11 // pred_check_branch
          %677 = sbr.rel (%p675) target = $region28
        $region27: #{tpu_custom_call.1} parent=11 // pred_region
          _
        $region28: #{tpu_custom_call.1} parent=11 // pred_fallthru
          _
        // Predicated region
        $region29: #{tpu_custom_call.1} parent=11 // pred_check
          %p678 = pneg %p175
        $region30: #{tpu_custom_call.1} parent=11 // pred_check_branch
          %680 = sbr.rel (%p678) target = $region32
        $region31: #{tpu_custom_call.1} parent=11 // pred_region
          %682 = vsyncadd [#allocation6], 0
          %s683 = sshll.u32 %s5, 4
          %s684 = int_to_ptr.hbm [resolvable:$true] %s683
          %s685 = sshll.u32 [#allocation5], 4
          %s686 = int_to_ptr.vmem [resolvable:$true] %s685
          %691 = dma.hbm_to_vmem [thread:$0]  %s684, 2048, %s686, [#allocation6], 128, 128, 8
        $region32: #{tpu_custom_call.1} parent=11 // pred_fallthru
          _
        // Predicated region
        $region33: #{tpu_custom_call.1} parent=11 // pred_check
          %p692 = pneg %p196
        $region34: #{tpu_custom_call.1} parent=11 // pred_check_branch
          %694 = sbr.rel (%p692) target = $region36
        $region35: #{tpu_custom_call.1} parent=11 // pred_region
          _
        $region36: #{tpu_custom_call.1} parent=11 // pred_fallthru
          _
        // Predicated region
        $region37: #{tpu_custom_call.1} parent=11 // pred_check
          %p695 = pneg %p217
        $region38: #{tpu_custom_call.1} parent=11 // pred_check_branch
          %697 = sbr.rel (%p695) target = $region40
        $region39: #{tpu_custom_call.1} parent=11 // pred_region
          _
        $region40: #{tpu_custom_call.1} parent=11 // pred_fallthru
          _
        // Predicated region
        $region41: #{tpu_custom_call.1} parent=11 // pred_check
          %p698 = pneg %p238
        $region42: #{tpu_custom_call.1} parent=11 // pred_check_branch
          %700 = sbr.rel (%p698) target = $region44
        $region43: #{tpu_custom_call.1} parent=11 // pred_region
          %702 = vsyncadd [#allocation6], 0
          %s703 = sshll.u32 %s8, 4
          %s704 = int_to_ptr.hbm [resolvable:$true] %s703
          %s705 = sshll.u32 [#allocation7], 4
          %s706 = int_to_ptr.vmem [resolvable:$true] %s705
          %711 = dma.hbm_to_vmem [thread:$0]  %s704, 32, %s706, [#allocation6], 16, 16, 1
        $region44: #{tpu_custom_call.1} parent=11 // pred_fallthru
          _
        // Predicated region
        $region45: #{tpu_custom_call.1} parent=11 // pred_check
          %p712 = pneg %p259
        $region46: #{tpu_custom_call.1} parent=11 // pred_check_branch
          %714 = sbr.rel (%p712) target = $region48
        $region47: #{tpu_custom_call.1} parent=11 // pred_region
          %716 = vsyncadd [#allocation9], 0
          %s717 = sshll.u32 %s9, 4
          %s718 = int_to_ptr.hbm [resolvable:$true] %s717
          %s719 = sshll.u32 [#allocation8], 4
          %s720 = int_to_ptr.vmem [resolvable:$true] %s719
          %725 = dma.hbm_to_vmem [thread:$0]  %s718, 512, %s720, [#allocation9], 64, 64, 4
        $region48: #{tpu_custom_call.1} parent=11 // pred_fallthru
          _
        // Predicated region
        $region49: #{tpu_custom_call.1} parent=11 // pred_check
          %p726 = pneg %p280
        $region50: #{tpu_custom_call.1} parent=11 // pred_check_branch
          %728 = sbr.rel (%p726) target = $region52
        $region51: #{tpu_custom_call.1} parent=11 // pred_region
          %730 = vsyncadd [#allocation9], 0
          %s731 = sshll.u32 %s10, 4
          %s732 = int_to_ptr.hbm [resolvable:$true] %s731
          %s733 = sshll.u32 [#allocation10], 4
          %s734 = int_to_ptr.vmem [resolvable:$true] %s733
          %739 = dma.hbm_to_vmem [thread:$0]  %s732, 32, %s734, [#allocation9], 16, 16, 1
        $region52: #{tpu_custom_call.1} parent=11 // pred_fallthru
          _
        // Predicated region
        $region53: #{tpu_custom_call.1} parent=11 // pred_check
          %p740 = pneg %p301
        $region54: #{tpu_custom_call.1} parent=11 // pred_check_branch
          %742 = sbr.rel (%p740) target = $region56
        $region55: #{tpu_custom_call.1} parent=11 // pred_region
          %744 = vsyncadd [#allocation12], 0
          %s745 = sshll.u32 %s11, 4
          %s746 = int_to_ptr.hbm [resolvable:$true] %s745
          %s747 = sshll.u32 [#allocation11], 4
          %s748 = int_to_ptr.vmem [resolvable:$true] %s747
          %753 = dma.hbm_to_vmem [thread:$0]  %s746, 512, %s748, [#allocation12], 64, 64, 4
        $region56: #{tpu_custom_call.1} parent=11 // pred_fallthru
          _
        // Predicated region
        $region57: #{tpu_custom_call.1} parent=11 // pred_check
          %p754 = pneg %p322
        $region58: #{tpu_custom_call.1} parent=11 // pred_check_branch
          %756 = sbr.rel (%p754) target = $region60
        $region59: #{tpu_custom_call.1} parent=11 // pred_region
          %758 = vsyncadd [#allocation12], 0
          %s759 = sshll.u32 %s12, 4
          %s760 = int_to_ptr.hbm [resolvable:$true] %s759
          %s761 = sshll.u32 [#allocation13], 4
          %s762 = int_to_ptr.vmem [resolvable:$true] %s761
          %767 = dma.hbm_to_vmem [thread:$0]  %s760, 32, %s762, [#allocation12], 16, 16, 1
        $region60: #{tpu_custom_call.1} parent=11 // pred_fallthru
          _
        // Predicated region
        $region61: #{tpu_custom_call.1} parent=11 // pred_check
          %p768 = pneg %p343
        $region62: #{tpu_custom_call.1} parent=11 // pred_check_branch
          %770 = sbr.rel (%p768) target = $region64
        $region63: #{tpu_custom_call.1} parent=11 // pred_region
          %772 = vsyncadd [#allocation15], 0
          %s773 = sshll.u32 %s13, 4
          %s774 = int_to_ptr.hbm [resolvable:$true] %s773
          %s775 = sshll.u32 [#allocation14], 4
          %s776 = int_to_ptr.vmem [resolvable:$true] %s775
          %781 = dma.hbm_to_vmem [thread:$0]  %s774, 512, %s776, [#allocation15], 64, 64, 4
        $region64: #{tpu_custom_call.1} parent=11 // pred_fallthru
          _
        // Predicated region
        $region65: #{tpu_custom_call.1} parent=11 // pred_check
          %p782 = pneg %p364
        $region66: #{tpu_custom_call.1} parent=11 // pred_check_branch
          %784 = sbr.rel (%p782) target = $region68
        $region67: #{tpu_custom_call.1} parent=11 // pred_region
          %786 = vsyncadd [#allocation15], 0
          %s787 = sshll.u32 %s14, 4
          %s788 = int_to_ptr.hbm [resolvable:$true] %s787
          %s789 = sshll.u32 [#allocation16], 4
          %s790 = int_to_ptr.vmem [resolvable:$true] %s789
          %795 = dma.hbm_to_vmem [thread:$0]  %s788, 32, %s790, [#allocation15], 16, 16, 1
        $region68: #{tpu_custom_call.1} parent=11 // pred_fallthru
          _
        // Predicated region
        $region69: #{tpu_custom_call.1} parent=11 // pred_check
          %p796 = pneg %p385
        $region70: #{tpu_custom_call.1} parent=11 // pred_check_branch
          %798 = sbr.rel (%p796) target = $region72
        $region71: #{tpu_custom_call.1} parent=11 // pred_region
          %800 = vsyncadd [#allocation18], 0
          %s801 = sshll.u32 %s15, 4
          %s802 = int_to_ptr.hbm [resolvable:$true] %s801
          %s803 = sshll.u32 [#allocation17], 4
          %s804 = int_to_ptr.vmem [resolvable:$true] %s803
          %809 = dma.hbm_to_vmem [thread:$0]  %s802, 32, %s804, [#allocation18], 16, 16, 1
        $region72: #{tpu_custom_call.1} parent=11 // pred_fallthru
          _
        // Predicated region
        $region73: #{tpu_custom_call.1} parent=11 // pred_check
          %p810 = pneg %p406
        $region74: #{tpu_custom_call.1} parent=11 // pred_check_branch
          %812 = sbr.rel (%p810) target = $region76
        $region75: #{tpu_custom_call.1} parent=11 // pred_region
          %814 = vsyncadd [#allocation18], 0
          %s815 = sshll.u32 %s16, 4
          %s816 = int_to_ptr.hbm [resolvable:$true] %s815
          %s817 = sshll.u32 [#allocation19], 4
          %s818 = int_to_ptr.vmem [resolvable:$true] %s817
          %823 = dma.hbm_to_vmem [thread:$0]  %s816, 32, %s818, [#allocation18], 16, 16, 1
        $region76: #{tpu_custom_call.1} parent=11 // pred_fallthru
          _
        // Predicated region
        $region77: #{tpu_custom_call.1} parent=11 // pred_check
          %p824 = pneg %p427
        $region78: #{tpu_custom_call.1} parent=11 // pred_check_branch
          %826 = sbr.rel (%p824) target = $region80
        $region79: #{tpu_custom_call.1} parent=11 // pred_region
          %828 = vsyncadd [#allocation21], 0
          %s829 = sshll.u32 %s17, 4
          %s830 = int_to_ptr.hbm [resolvable:$true] %s829
          %s831 = sshll.u32 [#allocation20], 4
          %s832 = int_to_ptr.vmem [resolvable:$true] %s831
          %837 = dma.hbm_to_vmem [thread:$0]  %s830, 512, %s832, [#allocation21], 64, 64, 4
        $region80: #{tpu_custom_call.1} parent=11 // pred_fallthru
          _
        // Predicated region
        $region81: #{tpu_custom_call.1} parent=11 // pred_check
          %p838 = pneg %p448
        $region82: #{tpu_custom_call.1} parent=11 // pred_check_branch
          %840 = sbr.rel (%p838) target = $region84
        $region83: #{tpu_custom_call.1} parent=11 // pred_region
          %842 = vsyncadd [#allocation21], 0
          %s843 = sshll.u32 %s18, 4
          %s844 = int_to_ptr.hbm [resolvable:$true] %s843
          %s845 = sshll.u32 [#allocation22], 4
          %s846 = int_to_ptr.vmem [resolvable:$true] %s845
          %851 = dma.hbm_to_vmem [thread:$0]  %s844, 32, %s846, [#allocation21], 16, 16, 1
        $region84: #{tpu_custom_call.1} parent=11 // pred_fallthru
          _
        // Predicated region
        $region85: #{tpu_custom_call.1} parent=11 // pred_check
          %p852 = pneg %p469
        $region86: #{tpu_custom_call.1} parent=11 // pred_check_branch
          %854 = sbr.rel (%p852) target = $region88
        $region87: #{tpu_custom_call.1} parent=11 // pred_region
          _
        $region88: #{tpu_custom_call.1} parent=11 // pred_fallthru
          _
        // Predicated region
        $region89: #{tpu_custom_call.1} parent=11 // pred_check
          %p855 = pneg %p490
        $region90: #{tpu_custom_call.1} parent=11 // pred_check_branch
          %857 = sbr.rel (%p855) target = $region92
        $region91: #{tpu_custom_call.1} parent=11 // pred_region
          %859 = vsyncadd [#allocation24], 0
          %s860 = sshll.u32 %s20, 4
          %s861 = int_to_ptr.hbm [resolvable:$true] %s860
          %s862 = sshll.u32 [#allocation23], 4
          %s863 = int_to_ptr.vmem [resolvable:$true] %s862
          %868 = dma.hbm_to_vmem [thread:$0]  %s861, 32, %s863, [#allocation24], 16, 16, 1
        $region92: #{tpu_custom_call.1} parent=11 // pred_fallthru
          _
        // Predicated region
        $region93: #{tpu_custom_call.1} parent=11 // pred_check
          %p869 = pneg %p511
        $region94: #{tpu_custom_call.1} parent=11 // pred_check_branch
          %871 = sbr.rel (%p869) target = $region96
        $region95: #{tpu_custom_call.1} parent=11 // pred_region
          _
        $region96: #{tpu_custom_call.1} parent=11 // pred_fallthru
          _
        // Predicated region
        $region97: #{tpu_custom_call.1} parent=11 // pred_check
          %p872 = pneg %p532
        $region98: #{tpu_custom_call.1} parent=11 // pred_check_branch
          %874 = sbr.rel (%p872) target = $region100
        $region99: #{tpu_custom_call.1} parent=11 // pred_region
          _
        $region100: #{tpu_custom_call.1} parent=11 // pred_fallthru
          _
        // Predicated region
        $region101: #{tpu_custom_call.1} parent=11 // pred_check
          %p875 = pneg %p553
        $region102: #{tpu_custom_call.1} parent=11 // pred_check_branch
          %877 = sbr.rel (%p875) target = $region104
        $region103: #{tpu_custom_call.1} parent=11 // pred_region
          _
        $region104: #{tpu_custom_call.1} parent=11 // pred_fallthru
          _
        // Predicated region
        $region105: #{tpu_custom_call.1} parent=11 // pred_check
          %p878 = pneg %p574
        $region106: #{tpu_custom_call.1} parent=11 // pred_check_branch
          %880 = sbr.rel (%p878) target = $region108
        $region107: #{tpu_custom_call.1} parent=11 // pred_region
          _
        $region108: #{tpu_custom_call.1} parent=11 // pred_fallthru
          _
        // Predicated region
        $region109: #{tpu_custom_call.1} parent=11 // pred_check
          %p881 = pneg %p595
        $region110: #{tpu_custom_call.1} parent=11 // pred_check_branch
          %883 = sbr.rel (%p881) target = $region112
        $region111: #{tpu_custom_call.1} parent=11 // pred_region
          _
        $region112: #{tpu_custom_call.1} parent=11 // pred_fallthru
          _
        // Predicated region
        $region113: #{tpu_custom_call.1} parent=11 // pred_check
          %p884 = pneg %p616
        $region114: #{tpu_custom_call.1} parent=11 // pred_check_branch
          %886 = sbr.rel (%p884) target = $region116
        $region115: #{tpu_custom_call.1} parent=11 // pred_region
          _
        $region116: #{tpu_custom_call.1} parent=11 // pred_fallthru
          _
      $region12: #{tpu_custom_call.1} parent=5 // pred_fallthru
        _
      %p887 = scmp.lt.s32.totalorder %s44, 2
      // Predicated region
      $region117: #{tpu_custom_call.1} parent=5 // pred_check
        %p888 = pneg %p887
      $region118: #{tpu_custom_call.1} parent=5 // pred_check_branch
        %890 = sbr.rel (%p888) target = $region120
      $region119: #{tpu_custom_call.1} parent=5 // pred_region
        // Predicated region
        $region121: #{tpu_custom_call.1} parent=119 // pred_check
          %p891 = pneg %p64
        $region122: #{tpu_custom_call.1} parent=119 // pred_check_branch
          %893 = sbr.rel (%p891) target = $region124
        $region123: #{tpu_custom_call.1} parent=119 // pred_region
          %p894 = scmp.lt.s32.totalorder %s44, 1
          %s895 = scalar_select %p894, %s44, 1
          %s896 = smul.addr %s895, 8
          %s897 = scalar_lea.vmem %s0, %s896
        $region124: #{tpu_custom_call.1} parent=119 // pred_fallthru
          _
      $region120: #{tpu_custom_call.1} parent=5 // pred_fallthru
        _
      %p898 = scmp.le.s32.totalorder 1, %s44
      %p899 = scmp.lt.s32.totalorder %s44, 3
      %p900 = pnand %p898, %p899
      %p901 = pneg %p900
      // Predicated region
      $region125: #{tpu_custom_call.1} parent=5 // pred_check
        _
      $region126: #{tpu_custom_call.1} parent=5 // pred_check_branch
        %903 = sbr.rel (%p900) target = $region128
      $region127: #{tpu_custom_call.1} parent=5 // pred_region
        %s904 = ssub.s32 %s44, 1
        // Predicated region
        $region129: #{tpu_custom_call.1} parent=127 // pred_check
          %p905 = pneg %p133
        $region130: #{tpu_custom_call.1} parent=127 // pred_check_branch
          %907 = sbr.rel (%p905) target = $region132
        $region131: #{tpu_custom_call.1} parent=127 // pred_region
          %909 = dma.done [#allocation3], 16
        $region132: #{tpu_custom_call.1} parent=127 // pred_fallthru
          _
        // Predicated region
        $region133: #{tpu_custom_call.1} parent=127 // pred_check
          %p910 = pneg %p175
        $region134: #{tpu_custom_call.1} parent=127 // pred_check_branch
          %912 = sbr.rel (%p910) target = $region136
        $region135: #{tpu_custom_call.1} parent=127 // pred_region
          %914 = dma.done [#allocation6], 2048
        $region136: #{tpu_custom_call.1} parent=127 // pred_fallthru
          _
        // Predicated region
        $region137: #{tpu_custom_call.1} parent=127 // pred_check
          %p915 = pneg %p238
        $region138: #{tpu_custom_call.1} parent=127 // pred_check_branch
          %917 = sbr.rel (%p915) target = $region140
        $region139: #{tpu_custom_call.1} parent=127 // pred_region
          %919 = dma.done [#allocation6], 32
        $region140: #{tpu_custom_call.1} parent=127 // pred_fallthru
          _
        // Predicated region
        $region141: #{tpu_custom_call.1} parent=127 // pred_check
          %p920 = pneg %p259
        $region142: #{tpu_custom_call.1} parent=127 // pred_check_branch
          %922 = sbr.rel (%p920) target = $region144
        $region143: #{tpu_custom_call.1} parent=127 // pred_region
          %924 = dma.done [#allocation9], 512
        $region144: #{tpu_custom_call.1} parent=127 // pred_fallthru
          _
        // Predicated region
        $region145: #{tpu_custom_call.1} parent=127 // pred_check
          %p925 = pneg %p280
        $region146: #{tpu_custom_call.1} parent=127 // pred_check_branch
          %927 = sbr.rel (%p925) target = $region148
        $region147: #{tpu_custom_call.1} parent=127 // pred_region
          %929 = dma.done [#allocation9], 32
        $region148: #{tpu_custom_call.1} parent=127 // pred_fallthru
          _
        // Predicated region
        $region149: #{tpu_custom_call.1} parent=127 // pred_check
          %p930 = pneg %p301
        $region150: #{tpu_custom_call.1} parent=127 // pred_check_branch
          %932 = sbr.rel (%p930) target = $region152
        $region151: #{tpu_custom_call.1} parent=127 // pred_region
          %934 = dma.done [#allocation12], 512
        $region152: #{tpu_custom_call.1} parent=127 // pred_fallthru
          _
        // Predicated region
        $region153: #{tpu_custom_call.1} parent=127 // pred_check
          %p935 = pneg %p322
        $region154: #{tpu_custom_call.1} parent=127 // pred_check_branch
          %937 = sbr.rel (%p935) target = $region156
        $region155: #{tpu_custom_call.1} parent=127 // pred_region
          %939 = dma.done [#allocation12], 32
        $region156: #{tpu_custom_call.1} parent=127 // pred_fallthru
          _
        // Predicated region
        $region157: #{tpu_custom_call.1} parent=127 // pred_check
          %p940 = pneg %p343
        $region158: #{tpu_custom_call.1} parent=127 // pred_check_branch
          %942 = sbr.rel (%p940) target = $region160
        $region159: #{tpu_custom_call.1} parent=127 // pred_region
          %944 = dma.done [#allocation15], 512
        $region160: #{tpu_custom_call.1} parent=127 // pred_fallthru
          _
        // Predicated region
        $region161: #{tpu_custom_call.1} parent=127 // pred_check
          %p945 = pneg %p364
        $region162: #{tpu_custom_call.1} parent=127 // pred_check_branch
          %947 = sbr.rel (%p945) target = $region164
        $region163: #{tpu_custom_call.1} parent=127 // pred_region
          %949 = dma.done [#allocation15], 32
        $region164: #{tpu_custom_call.1} parent=127 // pred_fallthru
          _
        // Predicated region
        $region165: #{tpu_custom_call.1} parent=127 // pred_check
          %p950 = pneg %p385
        $region166: #{tpu_custom_call.1} parent=127 // pred_check_branch
          %952 = sbr.rel (%p950) target = $region168
        $region167: #{tpu_custom_call.1} parent=127 // pred_region
          %954 = dma.done [#allocation18], 32
        $region168: #{tpu_custom_call.1} parent=127 // pred_fallthru
          _
        // Predicated region
        $region169: #{tpu_custom_call.1} parent=127 // pred_check
          %p955 = pneg %p406
        $region170: #{tpu_custom_call.1} parent=127 // pred_check_branch
          %957 = sbr.rel (%p955) target = $region172
        $region171: #{tpu_custom_call.1} parent=127 // pred_region
          %959 = dma.done [#allocation18], 32
        $region172: #{tpu_custom_call.1} parent=127 // pred_fallthru
          _
        // Predicated region
        $region173: #{tpu_custom_call.1} parent=127 // pred_check
          %p960 = pneg %p427
        $region174: #{tpu_custom_call.1} parent=127 // pred_check_branch
          %962 = sbr.rel (%p960) target = $region176
        $region175: #{tpu_custom_call.1} parent=127 // pred_region
          %964 = dma.done [#allocation21], 512
        $region176: #{tpu_custom_call.1} parent=127 // pred_fallthru
          _
        // Predicated region
        $region177: #{tpu_custom_call.1} parent=127 // pred_check
          %p965 = pneg %p448
        $region178: #{tpu_custom_call.1} parent=127 // pred_check_branch
          %967 = sbr.rel (%p965) target = $region180
        $region179: #{tpu_custom_call.1} parent=127 // pred_region
          %969 = dma.done [#allocation21], 32
        $region180: #{tpu_custom_call.1} parent=127 // pred_fallthru
          _
        // Predicated region
        $region181: #{tpu_custom_call.1} parent=127 // pred_check
          %p970 = pneg %p490
        $region182: #{tpu_custom_call.1} parent=127 // pred_check_branch
          %972 = sbr.rel (%p970) target = $region184
        $region183: #{tpu_custom_call.1} parent=127 // pred_region
          %974 = dma.done [#allocation24], 32
        $region184: #{tpu_custom_call.1} parent=127 // pred_fallthru
          _
        %p975 = scmp.lt.s32.totalorder %s49, 1
        %s976 = scalar_select %p975, %s49, 1
        %s977 = smul.addr %s976, 8
        %s978 = scalar_lea.vmem %s0, %s977
        %p979 = pneg %p70
        %p980 = pneg %p67
        %p981 = pneg %p91
        %p982 = pneg %p88
        %p983 = pneg %p112
        %p984 = pneg %p109
        %p985 = pneg %p133
        %p986 = pneg %p130
        %p987 = pneg %p154
        %p988 = pneg %p151
        %p989 = pneg %p175
        %p990 = pneg %p172
        %p991 = pneg %p196
        %p992 = pneg %p193
        %p993 = pneg %p217
        %p994 = pneg %p214
        %p995 = pneg %p238
        %p996 = pneg %p235
        %p997 = pneg %p259
        %p998 = pneg %p256
        %p999 = pneg %p280
        %p1000 = pneg %p277
        %p1001 = pneg %p301
        %p1002 = pneg %p298
        %p1003 = pneg %p322
        %p1004 = pneg %p319
        %p1005 = pneg %p343
        %p1006 = pneg %p340
        %p1007 = pneg %p364
        %p1008 = pneg %p361
        %p1009 = pneg %p385
        %p1010 = pneg %p382
        %p1011 = pneg %p406
        %p1012 = pneg %p403
        %p1013 = pneg %p427
        %p1014 = pneg %p424
        %p1015 = pneg %p448
        %p1016 = pneg %p445
        %p1017 = pneg %p469
        %p1018 = pneg %p466
        %p1019 = pneg %p490
        %p1020 = pneg %p487
        %p1021 = pneg %p511
        %p1022 = pneg %p508
        %p1023 = pneg %p532
        %p1024 = pneg %p529
        %p1025 = pneg %p553
        %p1026 = pneg %p550
        %p1027 = pneg %p574
        %p1028 = pneg %p571
        %p1029 = pneg %p595
        %p1030 = pneg %p592
        %p1031 = pneg %p616
        %p1032 = pneg %p613
        %p1033 = pneg %p642
        %p1034 = pneg %p639
        %s1035 = sand.u32 %s629, 1
        %s1036 = scalar_lea.sflag [#allocation4], %s1035
        %s1037 = sand.u32 %s629, 1
        %s1038 = scalar_lea.vmem [#allocation25], %s1037
        %p1039 = scmp.lt.s32.totalorder %s49, 1
        %s1040 = scalar_select %p1039, %s49, 1
        %s1041 = smul.addr %s1040, 8
        %s1042 = scalar_lea.vmem %s0, %s1041
        %v1044 = vld [vmem:[%s1042] sm:$0xff]
        %v1045 = vld [vmem:[%s2] sm:$0xf]
        %v1046 = vld [vmem:[#allocation2] sm:$0x1]
        %v1048 = vperm.slane %v1046, 0
        %vm1050 = vcmask 31744
        %v1052 = vsel %vm1050, %v1044, 0
        %vm1054 = vcmask 1043456
        %v1056 = vsel %vm1054, %v1045, 0
        %1058 = vmatpush.msra.mxu0 0.0
        %1059 = vmatpush.msra.mxu0 0.0
        %1060 = vmatpush.msra.mxu0 0.0
        %1061 = vmatpush.msra.mxu0 0.0
        %1062 = vmatpush.msra.mxu0 0.0
        %1063 = vmatpush.msra.mxu0 0.0
        %1064 = vmatpush.msra.mxu0 0.0
        %1065 = vmatpush.msra.mxu0 0.0
        %1066 = vmatpush.msra.mxu0 0.0
        %1067 = vmatpush.msra.mxu0 0.0
        %1068 = vmatpush.msra.mxu0 0.0
        %1069 = vmatpush.msra.mxu0 0.0
        %1070 = vmatpush.msra.mxu0 0.0
        %1071 = vmatpush.msra.mxu0 0.0
        %1072 = vmatpush.msra.mxu0 0.0
        %1073 = vmatpush.msra.mxu0 %v1056
        %1074 = vmatmul.f32.gmra.mxu0 %v1052
        %v1075 = vpop.f32.mrf.mxu0
        %v1076 = vadd.f32 %v1048, %v1075
        %1077 = vdwg.mxu0
        %v1078 = vld [vmem:[%s4] sm:$0xff]
        %v1079 = vld [vmem:[%s4 + $0x8] sm:$0xff]
        %v1080 = vld [vmem:[%s4 + $0x10] sm:$0xff]
        %v1081 = vld [vmem:[%s4 + $0x18] sm:$0xff]
        %v1082 = vld [vmem:[%s6] sm:$0x1]
        %v1084 = vperm.slane %v1082, 0
        %vm1086 = vcmask 261120
        %v1088 = vsel %vm1086, %v1076, 0
        %1090 = vmatpush.msra.mxu0 0.0
        %1091 = vmatpush.msra.mxu0 0.0
        %1092 = vmatpush.msra.mxu0 0.0
        %1093 = vmatpush.msra.mxu0 0.0
        %1094 = vmatpush.msra.mxu0 0.0
        %1095 = vmatpush.msra.mxu0 0.0
        %1096 = vmatpush.msra.mxu0 0.0
        %1097 = vmatpush.msra.mxu0 0.0
        %1098 = vmatpush.msra.mxu0 0.0
        %1099 = vmatpush.msra.mxu0 0.0
        %1100 = vmatpush.msra.mxu0 0.0
        %1101 = vmatpush.msra.mxu0 0.0
        %1102 = vmatpush.msra.mxu0 %v1081
        %1103 = vmatpush.msra.mxu0 %v1080
        %1104 = vmatpush.msra.mxu0 %v1079
        %1105 = vmatpush.msra.mxu0 %v1078
        %1106 = vmatmul.f32.gmra.mxu0 %v1088
        %v1107 = vpop.f32.mrf.mxu0
        %v1108 = vadd.f32 %v1084, %v1107
        %1109 = vdwg.mxu0
        %s1110 = scalar_lea.vmem %s4, 32
        %v1111 = vld [vmem:[%s1110] sm:$0xff]
        %v1112 = vld [vmem:[%s1110 + $0x8] sm:$0xff]
        %v1113 = vld [vmem:[%s1110 + $0x10] sm:$0xff]
        %v1114 = vld [vmem:[%s1110 + $0x18] sm:$0xff]
        %s1115 = scalar_lea.vmem %s6, 1
        %v1116 = vld [vmem:[%s1115] sm:$0x1]
        %v1118 = vperm.slane %v1116, 0
        %1120 = vmatpush.msra.mxu0 0.0
        %1121 = vmatpush.msra.mxu0 0.0
        %1122 = vmatpush.msra.mxu0 0.0
        %1123 = vmatpush.msra.mxu0 0.0
        %1124 = vmatpush.msra.mxu0 0.0
        %1125 = vmatpush.msra.mxu0 0.0
        %1126 = vmatpush.msra.mxu0 0.0
        %1127 = vmatpush.msra.mxu0 0.0
        %1128 = vmatpush.msra.mxu0 0.0
        %1129 = vmatpush.msra.mxu0 0.0
        %1130 = vmatpush.msra.mxu0 0.0
        %1131 = vmatpush.msra.mxu0 0.0
        %1132 = vmatpush.msra.mxu0 %v1114
        %1133 = vmatpush.msra.mxu0 %v1113
        %1134 = vmatpush.msra.mxu0 %v1112
        %1135 = vmatpush.msra.mxu0 %v1111
        %1136 = vmatmul.f32.gmra.mxu0 %v1088
        %v1137 = vpop.f32.mrf.mxu0
        %v1138 = vadd.f32 %v1118, %v1137
        %1139 = vdwg.mxu0
        %s1140 = scalar_lea.vmem %s4, 64
        %v1141 = vld [vmem:[%s1140] sm:$0xff]
        %v1142 = vld [vmem:[%s1140 + $0x8] sm:$0xff]
        %v1143 = vld [vmem:[%s1140 + $0x10] sm:$0xff]
        %v1144 = vld [vmem:[%s1140 + $0x18] sm:$0xff]
        %s1145 = scalar_lea.vmem %s6, 2
        %v1146 = vld [vmem:[%s1145] sm:$0x1]
        %v1148 = vperm.slane %v1146, 0
        %1150 = vmatpush.msra.mxu0 0.0
        %1151 = vmatpush.msra.mxu0 0.0
        %1152 = vmatpush.msra.mxu0 0.0
        %1153 = vmatpush.msra.mxu0 0.0
        %1154 = vmatpush.msra.mxu0 0.0
        %1155 = vmatpush.msra.mxu0 0.0
        %1156 = vmatpush.msra.mxu0 0.0
        %1157 = vmatpush.msra.mxu0 0.0
        %1158 = vmatpush.msra.mxu0 0.0
        %1159 = vmatpush.msra.mxu0 0.0
        %1160 = vmatpush.msra.mxu0 0.0
        %1161 = vmatpush.msra.mxu0 0.0
        %1162 = vmatpush.msra.mxu0 %v1144
        %1163 = vmatpush.msra.mxu0 %v1143
        %1164 = vmatpush.msra.mxu0 %v1142
        %1165 = vmatpush.msra.mxu0 %v1141
        %1166 = vmatmul.f32.gmra.mxu0 %v1088
        %v1167 = vpop.f32.mrf.mxu0
        %v1168 = vadd.f32 %v1148, %v1167
        %1169 = vdwg.mxu0
        %s1170 = scalar_lea.vmem %s4, 96
        %v1171 = vld [vmem:[%s1170] sm:$0xff]
        %v1172 = vld [vmem:[%s1170 + $0x8] sm:$0xff]
        %v1173 = vld [vmem:[%s1170 + $0x10] sm:$0xff]
        %v1174 = vld [vmem:[%s1170 + $0x18] sm:$0xff]
        %s1175 = scalar_lea.vmem %s6, 3
        %v1176 = vld [vmem:[%s1175] sm:$0x1]
        %v1178 = vperm.slane %v1176, 0
        %1180 = vmatpush.msra.mxu0 0.0
        %1181 = vmatpush.msra.mxu0 0.0
        %1182 = vmatpush.msra.mxu0 0.0
        %1183 = vmatpush.msra.mxu0 0.0
        %1184 = vmatpush.msra.mxu0 0.0
        %1185 = vmatpush.msra.mxu0 0.0
        %1186 = vmatpush.msra.mxu0 0.0
        %1187 = vmatpush.msra.mxu0 0.0
        %1188 = vmatpush.msra.mxu0 0.0
        %1189 = vmatpush.msra.mxu0 0.0
        %1190 = vmatpush.msra.mxu0 0.0
        %1191 = vmatpush.msra.mxu0 0.0
        %1192 = vmatpush.msra.mxu0 %v1174
        %1193 = vmatpush.msra.mxu0 %v1173
        %1194 = vmatpush.msra.mxu0 %v1172
        %1195 = vmatpush.msra.mxu0 %v1171
        %1196 = vmatmul.f32.gmra.mxu0 %v1088
        %v1197 = vpop.f32.mrf.mxu0
        %v1198 = vadd.f32 %v1178, %v1197
        %1199 = vdwg.mxu0
        %v1200 = vld [vmem:[#allocation5] sm:$0xff]
        %v1201 = vld [vmem:[#allocation5 + $0x8] sm:$0xff]
        %v1202 = vld [vmem:[#allocation5 + $0x10] sm:$0xff]
        %v1203 = vld [vmem:[#allocation5 + $0x18] sm:$0xff]
        %s1204 = scalar_lea.vmem [#allocation5], 32
        %v1205 = vld [vmem:[%s1204] sm:$0xff]
        %v1206 = vld [vmem:[%s1204 + $0x8] sm:$0xff]
        %v1207 = vld [vmem:[%s1204 + $0x10] sm:$0xff]
        %v1208 = vld [vmem:[%s1204 + $0x18] sm:$0xff]
        %s1209 = scalar_lea.vmem [#allocation5], 64
        %v1210 = vld [vmem:[%s1209] sm:$0xff]
        %v1211 = vld [vmem:[%s1209 + $0x8] sm:$0xff]
        %v1212 = vld [vmem:[%s1209 + $0x10] sm:$0xff]
        %v1213 = vld [vmem:[%s1209 + $0x18] sm:$0xff]
        %s1214 = scalar_lea.vmem [#allocation5], 96
        %v1215 = vld [vmem:[%s1214] sm:$0xff]
        %v1216 = vld [vmem:[%s1214 + $0x8] sm:$0xff]
        %v1217 = vld [vmem:[%s1214 + $0x10] sm:$0xff]
        %v1218 = vld [vmem:[%s1214 + $0x18] sm:$0xff]
        %v1220 = vsel %vm1086, 0.0, 0
        %1222 = vmatpush.msra.mxu0 0.0
        %1223 = vmatpush.msra.mxu0 0.0
        %1224 = vmatpush.msra.mxu0 0.0
        %1225 = vmatpush.msra.mxu0 0.0
        %1226 = vmatpush.msra.mxu0 0.0
        %1227 = vmatpush.msra.mxu0 0.0
        %1228 = vmatpush.msra.mxu0 0.0
        %1229 = vmatpush.msra.mxu0 0.0
        %1230 = vmatpush.msra.mxu0 0.0
        %1231 = vmatpush.msra.mxu0 0.0
        %1232 = vmatpush.msra.mxu0 0.0
        %1233 = vmatpush.msra.mxu0 0.0
        %1234 = vmatpush.msra.mxu0 %v1203
        %1235 = vmatpush.msra.mxu0 %v1202
        %1236 = vmatpush.msra.mxu0 %v1201
        %1237 = vmatpush.msra.mxu0 %v1200
        %1238 = vmatmul.f32.gmra.mxu0 %v1220
        %v1239 = vpop.f32.mrf.mxu0
        %v1240 = vadd.f32 0.0, %v1239
        %1241 = vdwg.mxu0
        %v1242 = vadd.f32 %v1108, %v1240
        %1243 = vmatpush.msra.mxu0 0.0
        %1244 = vmatpush.msra.mxu0 0.0
        %1245 = vmatpush.msra.mxu0 0.0
        %1246 = vmatpush.msra.mxu0 0.0
        %1247 = vmatpush.msra.mxu0 0.0
        %1248 = vmatpush.msra.mxu0 0.0
        %1249 = vmatpush.msra.mxu0 0.0
        %1250 = vmatpush.msra.mxu0 0.0
        %1251 = vmatpush.msra.mxu0 0.0
        %1252 = vmatpush.msra.mxu0 0.0
        %1253 = vmatpush.msra.mxu0 0.0
        %1254 = vmatpush.msra.mxu0 0.0
        %1255 = vmatpush.msra.mxu0 %v1208
        %1256 = vmatpush.msra.mxu0 %v1207
        %1257 = vmatpush.msra.mxu0 %v1206
        %1258 = vmatpush.msra.mxu0 %v1205
        %1259 = vmatmul.f32.gmra.mxu0 %v1220
        %v1260 = vpop.f32.mrf.mxu0
        %v1261 = vadd.f32 0.0, %v1260
        %1262 = vdwg.mxu0
        %v1263 = vadd.f32 %v1138, %v1261
        %1264 = vmatpush.msra.mxu0 0.0
        %1265 = vmatpush.msra.mxu0 0.0
        %1266 = vmatpush.msra.mxu0 0.0
        %1267 = vmatpush.msra.mxu0 0.0
        %1268 = vmatpush.msra.mxu0 0.0
        %1269 = vmatpush.msra.mxu0 0.0
        %1270 = vmatpush.msra.mxu0 0.0
        %1271 = vmatpush.msra.mxu0 0.0
        %1272 = vmatpush.msra.mxu0 0.0
        %1273 = vmatpush.msra.mxu0 0.0
        %1274 = vmatpush.msra.mxu0 0.0
        %1275 = vmatpush.msra.mxu0 0.0
        %1276 = vmatpush.msra.mxu0 %v1213
        %1277 = vmatpush.msra.mxu0 %v1212
        %1278 = vmatpush.msra.mxu0 %v1211
        %1279 = vmatpush.msra.mxu0 %v1210
        %1280 = vmatmul.f32.gmra.mxu0 %v1220
        %v1281 = vpop.f32.mrf.mxu0
        %v1282 = vadd.f32 0.0, %v1281
        %1283 = vdwg.mxu0
        %v1284 = vadd.f32 %v1168, %v1282
        %1285 = vmatpush.msra.mxu0 0.0
        %1286 = vmatpush.msra.mxu0 0.0
        %1287 = vmatpush.msra.mxu0 0.0
        %1288 = vmatpush.msra.mxu0 0.0
        %1289 = vmatpush.msra.mxu0 0.0
        %1290 = vmatpush.msra.mxu0 0.0
        %1291 = vmatpush.msra.mxu0 0.0
        %1292 = vmatpush.msra.mxu0 0.0
        %1293 = vmatpush.msra.mxu0 0.0
        %1294 = vmatpush.msra.mxu0 0.0
        %1295 = vmatpush.msra.mxu0 0.0
        %1296 = vmatpush.msra.mxu0 0.0
        %1297 = vmatpush.msra.mxu0 %v1218
        %1298 = vmatpush.msra.mxu0 %v1217
        %1299 = vmatpush.msra.mxu0 %v1216
        %1300 = vmatpush.msra.mxu0 %v1215
        %1301 = vmatmul.f32.gmra.mxu0 %v1220
        %v1302 = vpop.f32.mrf.mxu0
        %v1303 = vadd.f32 0.0, %v1302
        %1304 = vdwg.mxu0
        %v1305 = vadd.f32 %v1198, %v1303
        %v1306 = vxor.u32 %v1263, 2147483648
        %v1307 = vmul.f32 %v1306, 1.442695
        %v1308 = vpow.pop %v1307
        %v1309 = vadd.f32 %v1308, 1.0
        %v1310 = vrcp.pop %v1309
        %v1311 = vmul.f32 %v1309, %v1310
        %v1312 = vsub.f32 1.0, %v1311
        %v1313 = vmul.f32 %v1310, %v1312
        %v1314 = vadd.f32 %v1310, %v1313
        %vm1315 = vweird.f32 %v1309
        %vm1316 = vweird.f32 %v1310
        %vm1317 = vmor %vm1315, %vm1316
        %v1318 = vsel %vm1317, %v1310, %v1314
        %v1319 = vand.u32 2147483647, %v1309
        %vm1320 = vcmp.eq.f32.partialorder %v1319, 8.507059e+37
        %v1321 = vand.u32 %v1309, 2147483648
        %v1322 = vor.u32 1.1754944e-38, %v1321
        %v1323 = vsel %vm1320, %v1322, %v1318
        %v1324 = vmul.f32 1.0, %v1323
        %v1325 = vmul.f32 %v1324, 0.0
        %v1326 = vxor.u32 %v1242, 2147483648
        %v1327 = vmul.f32 %v1326, 1.442695
        %v1328 = vpow.pop %v1327
        %v1329 = vadd.f32 %v1328, 1.0
        %v1330 = vrcp.pop %v1329
        %v1331 = vmul.f32 %v1329, %v1330
        %v1332 = vsub.f32 1.0, %v1331
        %v1333 = vmul.f32 %v1330, %v1332
        %v1334 = vadd.f32 %v1330, %v1333
        %vm1335 = vweird.f32 %v1329
        %vm1336 = vweird.f32 %v1330
        %vm1337 = vmor %vm1335, %vm1336
        %v1338 = vsel %vm1337, %v1330, %v1334
        %v1339 = vand.u32 2147483647, %v1329
        %vm1340 = vcmp.eq.f32.partialorder %v1339, 8.507059e+37
        %v1341 = vand.u32 %v1329, 2147483648
        %v1342 = vor.u32 1.1754944e-38, %v1341
        %v1343 = vsel %vm1340, %v1342, %v1338
        %v1344 = vmul.f32 1.0, %v1343
        %v1345 = vtanh.pop %v1284
        %v1346 = vmul.f32 %v1344, %v1345
        %v1347 = vadd.f32 %v1325, %v1346
        %v1348 = vxor.u32 %v1305, 2147483648
        %v1349 = vmul.f32 %v1348, 1.442695
        %v1350 = vpow.pop %v1349
        %v1351 = vadd.f32 %v1350, 1.0
        %v1352 = vrcp.pop %v1351
        %v1353 = vmul.f32 %v1351, %v1352
        %v1354 = vsub.f32 1.0, %v1353
        %v1355 = vmul.f32 %v1352, %v1354
        %v1356 = vadd.f32 %v1352, %v1355
        %vm1357 = vweird.f32 %v1351
        %vm1358 = vweird.f32 %v1352
        %vm1359 = vmor %vm1357, %vm1358
        %v1360 = vsel %vm1359, %v1352, %v1356
        %v1361 = vand.u32 2147483647, %v1351
        %vm1362 = vcmp.eq.f32.partialorder %v1361, 8.507059e+37
        %v1363 = vand.u32 %v1351, 2147483648
        %v1364 = vor.u32 1.1754944e-38, %v1363
        %v1365 = vsel %vm1362, %v1364, %v1360
        %v1366 = vmul.f32 1.0, %v1365
        %v1367 = vtanh.pop %v1347
        %v1368 = vmul.f32 %v1366, %v1367
        %v1370 = vsel %vm1086, %v1368, 0
        %1372 = vmatpush.msra.mxu0 0.0
        %1373 = vmatpush.msra.mxu0 0.0
        %1374 = vmatpush.msra.mxu0 0.0
        %1375 = vmatpush.msra.mxu0 0.0
        %1376 = vmatpush.msra.mxu0 0.0
        %1377 = vmatpush.msra.mxu0 0.0
        %1378 = vmatpush.msra.mxu0 0.0
        %1379 = vmatpush.msra.mxu0 0.0
        %1380 = vmatpush.msra.mxu0 0.0
        %1381 = vmatpush.msra.mxu0 0.0
        %1382 = vmatpush.msra.mxu0 0.0
        %1383 = vmatpush.msra.mxu0 0.0
        %1384 = vmatpush.msra.mxu0 %v1203
        %1385 = vmatpush.msra.mxu0 %v1202
        %1386 = vmatpush.msra.mxu0 %v1201
        %1387 = vmatpush.msra.mxu0 %v1200
        %1388 = vmatmul.f32.gmra.mxu0 %v1370
        %v1389 = vpop.f32.mrf.mxu0
        %v1390 = vadd.f32 0.0, %v1389
        %1391 = vdwg.mxu0
        %v1393 = vrot.slane %v1390, 7
        %v1395 = vadd.f32 %v1108, %v1393
        %1396 = vmatpush.msra.mxu0 0.0
        %1397 = vmatpush.msra.mxu0 0.0
        %1398 = vmatpush.msra.mxu0 0.0
        %1399 = vmatpush.msra.mxu0 0.0
        %1400 = vmatpush.msra.mxu0 0.0
        %1401 = vmatpush.msra.mxu0 0.0
        %1402 = vmatpush.msra.mxu0 0.0
        %1403 = vmatpush.msra.mxu0 0.0
        %1404 = vmatpush.msra.mxu0 0.0
        %1405 = vmatpush.msra.mxu0 0.0
        %1406 = vmatpush.msra.mxu0 0.0
        %1407 = vmatpush.msra.mxu0 0.0
        %1408 = vmatpush.msra.mxu0 %v1208
        %1409 = vmatpush.msra.mxu0 %v1207
        %1410 = vmatpush.msra.mxu0 %v1206
        %1411 = vmatpush.msra.mxu0 %v1205
        %1412 = vmatmul.f32.gmra.mxu0 %v1370
        %v1413 = vpop.f32.mrf.mxu0
        %v1414 = vadd.f32 0.0, %v1413
        %1415 = vdwg.mxu0
        %v1417 = vrot.slane %v1414, 7
        %v1419 = vadd.f32 %v1138, %v1417
        %1420 = vmatpush.msra.mxu0 0.0
        %1421 = vmatpush.msra.mxu0 0.0
        %1422 = vmatpush.msra.mxu0 0.0
        %1423 = vmatpush.msra.mxu0 0.0
        %1424 = vmatpush.msra.mxu0 0.0
        %1425 = vmatpush.msra.mxu0 0.0
        %1426 = vmatpush.msra.mxu0 0.0
        %1427 = vmatpush.msra.mxu0 0.0
        %1428 = vmatpush.msra.mxu0 0.0
        %1429 = vmatpush.msra.mxu0 0.0
        %1430 = vmatpush.msra.mxu0 0.0
        %1431 = vmatpush.msra.mxu0 0.0
        %1432 = vmatpush.msra.mxu0 %v1213
        %1433 = vmatpush.msra.mxu0 %v1212
        %1434 = vmatpush.msra.mxu0 %v1211
        %1435 = vmatpush.msra.mxu0 %v1210
        %1436 = vmatmul.f32.gmra.mxu0 %v1370
        %v1437 = vpop.f32.mrf.mxu0
        %v1438 = vadd.f32 0.0, %v1437
        %1439 = vdwg.mxu0
        %v1441 = vrot.slane %v1438, 7
        %v1443 = vadd.f32 %v1168, %v1441
        %1444 = vmatpush.msra.mxu0 0.0
        %1445 = vmatpush.msra.mxu0 0.0
        %1446 = vmatpush.msra.mxu0 0.0
        %1447 = vmatpush.msra.mxu0 0.0
        %1448 = vmatpush.msra.mxu0 0.0
        %1449 = vmatpush.msra.mxu0 0.0
        %1450 = vmatpush.msra.mxu0 0.0
        %1451 = vmatpush.msra.mxu0 0.0
        %1452 = vmatpush.msra.mxu0 0.0
        %1453 = vmatpush.msra.mxu0 0.0
        %1454 = vmatpush.msra.mxu0 0.0
        %1455 = vmatpush.msra.mxu0 0.0
        %1456 = vmatpush.msra.mxu0 %v1218
        %1457 = vmatpush.msra.mxu0 %v1217
        %1458 = vmatpush.msra.mxu0 %v1216
        %1459 = vmatpush.msra.mxu0 %v1215
        %1460 = vmatmul.f32.gmra.mxu0 %v1370
        %v1461 = vpop.f32.mrf.mxu0
        %v1462 = vadd.f32 0.0, %v1461
        %1463 = vdwg.mxu0
        %v1465 = vrot.slane %v1462, 7
        %v1467 = vadd.f32 %v1198, %v1465
        %v1468 = vxor.u32 %v1419, 2147483648
        %v1469 = vmul.f32 %v1468, 1.442695
        %v1470 = vpow.pop %v1469
        %v1471 = vadd.f32 %v1470, 1.0
        %v1472 = vrcp.pop %v1471
        %v1473 = vmul.f32 %v1471, %v1472
        %v1474 = vsub.f32 1.0, %v1473
        %v1475 = vmul.f32 %v1472, %v1474
        %v1476 = vadd.f32 %v1472, %v1475
        %vm1477 = vweird.f32 %v1471
        %vm1478 = vweird.f32 %v1472
        %vm1479 = vmor %vm1477, %vm1478
        %v1480 = vsel %vm1479, %v1472, %v1476
        %v1481 = vand.u32 2147483647, %v1471
        %vm1482 = vcmp.eq.f32.partialorder %v1481, 8.507059e+37
        %v1483 = vand.u32 %v1471, 2147483648
        %v1484 = vor.u32 1.1754944e-38, %v1483
        %v1485 = vsel %vm1482, %v1484, %v1480
        %v1486 = vmul.f32 1.0, %v1485
        %v1488 = vrot.slane %v1347, 7
        %v1490 = vmul.f32 %v1486, %v1488
        %v1491 = vxor.u32 %v1395, 2147483648
        %v1492 = vmul.f32 %v1491, 1.442695
        %v1493 = vpow.pop %v1492
        %v1494 = vadd.f32 %v1493, 1.0
        %v1495 = vrcp.pop %v1494
        %v1496 = vmul.f32 %v1494, %v1495
        %v1497 = vsub.f32 1.0, %v1496
        %v1498 = vmul.f32 %v1495, %v1497
        %v1499 = vadd.f32 %v1495, %v1498
        %vm1500 = vweird.f32 %v1494
        %vm1501 = vweird.f32 %v1495
        %vm1502 = vmor %vm1500, %vm1501
        %v1503 = vsel %vm1502, %v1495, %v1499
        %v1504 = vand.u32 2147483647, %v1494
        %vm1505 = vcmp.eq.f32.partialorder %v1504, 8.507059e+37
        %v1506 = vand.u32 %v1494, 2147483648
        %v1507 = vor.u32 1.1754944e-38, %v1506
        %v1508 = vsel %vm1505, %v1507, %v1503
        %v1509 = vmul.f32 1.0, %v1508
        %v1510 = vtanh.pop %v1443
        %v1511 = vmul.f32 %v1509, %v1510
        %v1512 = vadd.f32 %v1490, %v1511
        %v1513 = vxor.u32 %v1467, 2147483648
        %v1514 = vmul.f32 %v1513, 1.442695
        %v1515 = vpow.pop %v1514
        %v1516 = vadd.f32 %v1515, 1.0
        %v1517 = vrcp.pop %v1516
        %v1518 = vmul.f32 %v1516, %v1517
        %v1519 = vsub.f32 1.0, %v1518
        %v1520 = vmul.f32 %v1517, %v1519
        %v1521 = vadd.f32 %v1517, %v1520
        %vm1522 = vweird.f32 %v1516
        %vm1523 = vweird.f32 %v1517
        %vm1524 = vmor %vm1522, %vm1523
        %v1525 = vsel %vm1524, %v1517, %v1521
        %v1526 = vand.u32 2147483647, %v1516
        %vm1527 = vcmp.eq.f32.partialorder %v1526, 8.507059e+37
        %v1528 = vand.u32 %v1516, 2147483648
        %v1529 = vor.u32 1.1754944e-38, %v1528
        %v1530 = vsel %vm1527, %v1529, %v1525
        %v1531 = vmul.f32 1.0, %v1530
        %v1532 = vtanh.pop %v1512
        %v1533 = vmul.f32 %v1531, %v1532
        %v1535 = vrot.slane %v1533, 1
        %v1536 = vsel %vm1086, %v1535, 0
        %1538 = vmatpush.msra.mxu0 0.0
        %1539 = vmatpush.msra.mxu0 0.0
        %1540 = vmatpush.msra.mxu0 0.0
        %1541 = vmatpush.msra.mxu0 0.0
        %1542 = vmatpush.msra.mxu0 0.0
        %1543 = vmatpush.msra.mxu0 0.0
        %1544 = vmatpush.msra.mxu0 0.0
        %1545 = vmatpush.msra.mxu0 0.0
        %1546 = vmatpush.msra.mxu0 0.0
        %1547 = vmatpush.msra.mxu0 0.0
        %1548 = vmatpush.msra.mxu0 0.0
        %1549 = vmatpush.msra.mxu0 0.0
        %1550 = vmatpush.msra.mxu0 %v1203
        %1551 = vmatpush.msra.mxu0 %v1202
        %1552 = vmatpush.msra.mxu0 %v1201
        %1553 = vmatpush.msra.mxu0 %v1200
        %1554 = vmatmul.f32.gmra.mxu0 %v1536
        %v1555 = vpop.f32.mrf.mxu0
        %v1556 = vadd.f32 0.0, %v1555
        %1557 = vdwg.mxu0
        %v1559 = vrot.slane %v1556, 6
        %v1561 = vadd.f32 %v1108, %v1559
        %1562 = vmatpush.msra.mxu0 0.0
        %1563 = vmatpush.msra.mxu0 0.0
        %1564 = vmatpush.msra.mxu0 0.0
        %1565 = vmatpush.msra.mxu0 0.0
        %1566 = vmatpush.msra.mxu0 0.0
        %1567 = vmatpush.msra.mxu0 0.0
        %1568 = vmatpush.msra.mxu0 0.0
        %1569 = vmatpush.msra.mxu0 0.0
        %1570 = vmatpush.msra.mxu0 0.0
        %1571 = vmatpush.msra.mxu0 0.0
        %1572 = vmatpush.msra.mxu0 0.0
        %1573 = vmatpush.msra.mxu0 0.0
        %1574 = vmatpush.msra.mxu0 %v1208
        %1575 = vmatpush.msra.mxu0 %v1207
        %1576 = vmatpush.msra.mxu0 %v1206
        %1577 = vmatpush.msra.mxu0 %v1205
        %1578 = vmatmul.f32.gmra.mxu0 %v1536
        %v1579 = vpop.f32.mrf.mxu0
        %v1580 = vadd.f32 0.0, %v1579
        %1581 = vdwg.mxu0
        %v1583 = vrot.slane %v1580, 6
        %v1585 = vadd.f32 %v1138, %v1583
        %1586 = vmatpush.msra.mxu0 0.0
        %1587 = vmatpush.msra.mxu0 0.0
        %1588 = vmatpush.msra.mxu0 0.0
        %1589 = vmatpush.msra.mxu0 0.0
        %1590 = vmatpush.msra.mxu0 0.0
        %1591 = vmatpush.msra.mxu0 0.0
        %1592 = vmatpush.msra.mxu0 0.0
        %1593 = vmatpush.msra.mxu0 0.0
        %1594 = vmatpush.msra.mxu0 0.0
        %1595 = vmatpush.msra.mxu0 0.0
        %1596 = vmatpush.msra.mxu0 0.0
        %1597 = vmatpush.msra.mxu0 0.0
        %1598 = vmatpush.msra.mxu0 %v1213
        %1599 = vmatpush.msra.mxu0 %v1212
        %1600 = vmatpush.msra.mxu0 %v1211
        %1601 = vmatpush.msra.mxu0 %v1210
        %1602 = vmatmul.f32.gmra.mxu0 %v1536
        %v1603 = vpop.f32.mrf.mxu0
        %v1604 = vadd.f32 0.0, %v1603
        %1605 = vdwg.mxu0
        %v1607 = vrot.slane %v1604, 6
        %v1609 = vadd.f32 %v1168, %v1607
        %1610 = vmatpush.msra.mxu0 0.0
        %1611 = vmatpush.msra.mxu0 0.0
        %1612 = vmatpush.msra.mxu0 0.0
        %1613 = vmatpush.msra.mxu0 0.0
        %1614 = vmatpush.msra.mxu0 0.0
        %1615 = vmatpush.msra.mxu0 0.0
        %1616 = vmatpush.msra.mxu0 0.0
        %1617 = vmatpush.msra.mxu0 0.0
        %1618 = vmatpush.msra.mxu0 0.0
        %1619 = vmatpush.msra.mxu0 0.0
        %1620 = vmatpush.msra.mxu0 0.0
        %1621 = vmatpush.msra.mxu0 0.0
        %1622 = vmatpush.msra.mxu0 %v1218
        %1623 = vmatpush.msra.mxu0 %v1217
        %1624 = vmatpush.msra.mxu0 %v1216
        %1625 = vmatpush.msra.mxu0 %v1215
        %1626 = vmatmul.f32.gmra.mxu0 %v1536
        %v1627 = vpop.f32.mrf.mxu0
        %v1628 = vadd.f32 0.0, %v1627
        %1629 = vdwg.mxu0
        %v1631 = vrot.slane %v1628, 6
        %v1633 = vadd.f32 %v1198, %v1631
        %v1634 = vxor.u32 %v1585, 2147483648
        %v1635 = vmul.f32 %v1634, 1.442695
        %v1636 = vpow.pop %v1635
        %v1637 = vadd.f32 %v1636, 1.0
        %v1638 = vrcp.pop %v1637
        %v1639 = vmul.f32 %v1637, %v1638
        %v1640 = vsub.f32 1.0, %v1639
        %v1641 = vmul.f32 %v1638, %v1640
        %v1642 = vadd.f32 %v1638, %v1641
        %vm1643 = vweird.f32 %v1637
        %vm1644 = vweird.f32 %v1638
        %vm1645 = vmor %vm1643, %vm1644
        %v1646 = vsel %vm1645, %v1638, %v1642
        %v1647 = vand.u32 2147483647, %v1637
        %vm1648 = vcmp.eq.f32.partialorder %v1647, 8.507059e+37
        %v1649 = vand.u32 %v1637, 2147483648
        %v1650 = vor.u32 1.1754944e-38, %v1649
        %v1651 = vsel %vm1648, %v1650, %v1646
        %v1652 = vmul.f32 1.0, %v1651
        %v1654 = vrot.slane %v1512, 7
        %v1656 = vmul.f32 %v1652, %v1654
        %v1657 = vxor.u32 %v1561, 2147483648
        %v1658 = vmul.f32 %v1657, 1.442695
        %v1659 = vpow.pop %v1658
        %v1660 = vadd.f32 %v1659, 1.0
        %v1661 = vrcp.pop %v1660
        %v1662 = vmul.f32 %v1660, %v1661
        %v1663 = vsub.f32 1.0, %v1662
        %v1664 = vmul.f32 %v1661, %v1663
        %v1665 = vadd.f32 %v1661, %v1664
        %vm1666 = vweird.f32 %v1660
        %vm1667 = vweird.f32 %v1661
        %vm1668 = vmor %vm1666, %vm1667
        %v1669 = vsel %vm1668, %v1661, %v1665
        %v1670 = vand.u32 2147483647, %v1660
        %vm1671 = vcmp.eq.f32.partialorder %v1670, 8.507059e+37
        %v1672 = vand.u32 %v1660, 2147483648
        %v1673 = vor.u32 1.1754944e-38, %v1672
        %v1674 = vsel %vm1671, %v1673, %v1669
        %v1675 = vmul.f32 1.0, %v1674
        %v1676 = vtanh.pop %v1609
        %v1677 = vmul.f32 %v1675, %v1676
        %v1678 = vadd.f32 %v1656, %v1677
        %v1679 = vxor.u32 %v1633, 2147483648
        %v1680 = vmul.f32 %v1679, 1.442695
        %v1681 = vpow.pop %v1680
        %v1682 = vadd.f32 %v1681, 1.0
        %v1683 = vrcp.pop %v1682
        %v1684 = vmul.f32 %v1682, %v1683
        %v1685 = vsub.f32 1.0, %v1684
        %v1686 = vmul.f32 %v1683, %v1685
        %v1687 = vadd.f32 %v1683, %v1686
        %vm1688 = vweird.f32 %v1682
        %vm1689 = vweird.f32 %v1683
        %vm1690 = vmor %vm1688, %vm1689
        %v1691 = vsel %vm1690, %v1683, %v1687
        %v1692 = vand.u32 2147483647, %v1682
        %vm1693 = vcmp.eq.f32.partialorder %v1692, 8.507059e+37
        %v1694 = vand.u32 %v1682, 2147483648
        %v1695 = vor.u32 1.1754944e-38, %v1694
        %v1696 = vsel %vm1693, %v1695, %v1691
        %v1697 = vmul.f32 1.0, %v1696
        %v1698 = vtanh.pop %v1678
        %v1699 = vmul.f32 %v1697, %v1698
        %v1701 = vrot.slane %v1699, 2
        %v1702 = vsel %vm1086, %v1701, 0
        %1704 = vmatpush.msra.mxu0 0.0
        %1705 = vmatpush.msra.mxu0 0.0
        %1706 = vmatpush.msra.mxu0 0.0
        %1707 = vmatpush.msra.mxu0 0.0
        %1708 = vmatpush.msra.mxu0 0.0
        %1709 = vmatpush.msra.mxu0 0.0
        %1710 = vmatpush.msra.mxu0 0.0
        %1711 = vmatpush.msra.mxu0 0.0
        %1712 = vmatpush.msra.mxu0 0.0
        %1713 = vmatpush.msra.mxu0 0.0
        %1714 = vmatpush.msra.mxu0 0.0
        %1715 = vmatpush.msra.mxu0 0.0
        %1716 = vmatpush.msra.mxu0 %v1203
        %1717 = vmatpush.msra.mxu0 %v1202
        %1718 = vmatpush.msra.mxu0 %v1201
        %1719 = vmatpush.msra.mxu0 %v1200
        %1720 = vmatmul.f32.gmra.mxu0 %v1702
        %v1721 = vpop.f32.mrf.mxu0
        %v1722 = vadd.f32 0.0, %v1721
        %1723 = vdwg.mxu0
        %v1725 = vrot.slane %v1722, 5
        %v1727 = vadd.f32 %v1108, %v1725
        %1728 = vmatpush.msra.mxu0 0.0
        %1729 = vmatpush.msra.mxu0 0.0
        %1730 = vmatpush.msra.mxu0 0.0
        %1731 = vmatpush.msra.mxu0 0.0
        %1732 = vmatpush.msra.mxu0 0.0
        %1733 = vmatpush.msra.mxu0 0.0
        %1734 = vmatpush.msra.mxu0 0.0
        %1735 = vmatpush.msra.mxu0 0.0
        %1736 = vmatpush.msra.mxu0 0.0
        %1737 = vmatpush.msra.mxu0 0.0
        %1738 = vmatpush.msra.mxu0 0.0
        %1739 = vmatpush.msra.mxu0 0.0
        %1740 = vmatpush.msra.mxu0 %v1208
        %1741 = vmatpush.msra.mxu0 %v1207
        %1742 = vmatpush.msra.mxu0 %v1206
        %1743 = vmatpush.msra.mxu0 %v1205
        %1744 = vmatmul.f32.gmra.mxu0 %v1702
        %v1745 = vpop.f32.mrf.mxu0
        %v1746 = vadd.f32 0.0, %v1745
        %1747 = vdwg.mxu0
        %v1749 = vrot.slane %v1746, 5
        %v1751 = vadd.f32 %v1138, %v1749
        %1752 = vmatpush.msra.mxu0 0.0
        %1753 = vmatpush.msra.mxu0 0.0
        %1754 = vmatpush.msra.mxu0 0.0
        %1755 = vmatpush.msra.mxu0 0.0
        %1756 = vmatpush.msra.mxu0 0.0
        %1757 = vmatpush.msra.mxu0 0.0
        %1758 = vmatpush.msra.mxu0 0.0
        %1759 = vmatpush.msra.mxu0 0.0
        %1760 = vmatpush.msra.mxu0 0.0
        %1761 = vmatpush.msra.mxu0 0.0
        %1762 = vmatpush.msra.mxu0 0.0
        %1763 = vmatpush.msra.mxu0 0.0
        %1764 = vmatpush.msra.mxu0 %v1213
        %1765 = vmatpush.msra.mxu0 %v1212
        %1766 = vmatpush.msra.mxu0 %v1211
        %1767 = vmatpush.msra.mxu0 %v1210
        %1768 = vmatmul.f32.gmra.mxu0 %v1702
        %v1769 = vpop.f32.mrf.mxu0
        %v1770 = vadd.f32 0.0, %v1769
        %1771 = vdwg.mxu0
        %v1773 = vrot.slane %v1770, 5
        %v1775 = vadd.f32 %v1168, %v1773
        %1776 = vmatpush.msra.mxu0 0.0
        %1777 = vmatpush.msra.mxu0 0.0
        %1778 = vmatpush.msra.mxu0 0.0
        %1779 = vmatpush.msra.mxu0 0.0
        %1780 = vmatpush.msra.mxu0 0.0
        %1781 = vmatpush.msra.mxu0 0.0
        %1782 = vmatpush.msra.mxu0 0.0
        %1783 = vmatpush.msra.mxu0 0.0
        %1784 = vmatpush.msra.mxu0 0.0
        %1785 = vmatpush.msra.mxu0 0.0
        %1786 = vmatpush.msra.mxu0 0.0
        %1787 = vmatpush.msra.mxu0 0.0
        %1788 = vmatpush.msra.mxu0 %v1218
        %1789 = vmatpush.msra.mxu0 %v1217
        %1790 = vmatpush.msra.mxu0 %v1216
        %1791 = vmatpush.msra.mxu0 %v1215
        %1792 = vmatmul.f32.gmra.mxu0 %v1702
        %v1793 = vpop.f32.mrf.mxu0
        %v1794 = vadd.f32 0.0, %v1793
        %1795 = vdwg.mxu0
        %v1797 = vrot.slane %v1794, 5
        %v1799 = vadd.f32 %v1198, %v1797
        %v1800 = vxor.u32 %v1751, 2147483648
        %v1801 = vmul.f32 %v1800, 1.442695
        %v1802 = vpow.pop %v1801
        %v1803 = vadd.f32 %v1802, 1.0
        %v1804 = vrcp.pop %v1803
        %v1805 = vmul.f32 %v1803, %v1804
        %v1806 = vsub.f32 1.0, %v1805
        %v1807 = vmul.f32 %v1804, %v1806
        %v1808 = vadd.f32 %v1804, %v1807
        %vm1809 = vweird.f32 %v1803
        %vm1810 = vweird.f32 %v1804
        %vm1811 = vmor %vm1809, %vm1810
        %v1812 = vsel %vm1811, %v1804, %v1808
        %v1813 = vand.u32 2147483647, %v1803
        %vm1814 = vcmp.eq.f32.partialorder %v1813, 8.507059e+37
        %v1815 = vand.u32 %v1803, 2147483648
        %v1816 = vor.u32 1.1754944e-38, %v1815
        %v1817 = vsel %vm1814, %v1816, %v1812
        %v1818 = vmul.f32 1.0, %v1817
        %v1820 = vrot.slane %v1678, 7
        %v1822 = vmul.f32 %v1818, %v1820
        %v1823 = vxor.u32 %v1727, 2147483648
        %v1824 = vmul.f32 %v1823, 1.442695
        %v1825 = vpow.pop %v1824
        %v1826 = vadd.f32 %v1825, 1.0
        %v1827 = vrcp.pop %v1826
        %v1828 = vmul.f32 %v1826, %v1827
        %v1829 = vsub.f32 1.0, %v1828
        %v1830 = vmul.f32 %v1827, %v1829
        %v1831 = vadd.f32 %v1827, %v1830
        %vm1832 = vweird.f32 %v1826
        %vm1833 = vweird.f32 %v1827
        %vm1834 = vmor %vm1832, %vm1833
        %v1835 = vsel %vm1834, %v1827, %v1831
        %v1836 = vand.u32 2147483647, %v1826
        %vm1837 = vcmp.eq.f32.partialorder %v1836, 8.507059e+37
        %v1838 = vand.u32 %v1826, 2147483648
        %v1839 = vor.u32 1.1754944e-38, %v1838
        %v1840 = vsel %vm1837, %v1839, %v1835
        %v1841 = vmul.f32 1.0, %v1840
        %v1842 = vtanh.pop %v1775
        %v1843 = vmul.f32 %v1841, %v1842
        %v1844 = vadd.f32 %v1822, %v1843
        %v1845 = vxor.u32 %v1799, 2147483648
        %v1846 = vmul.f32 %v1845, 1.442695
        %v1847 = vpow.pop %v1846
        %v1848 = vadd.f32 %v1847, 1.0
        %v1849 = vrcp.pop %v1848
        %v1850 = vmul.f32 %v1848, %v1849
        %v1851 = vsub.f32 1.0, %v1850
        %v1852 = vmul.f32 %v1849, %v1851
        %v1853 = vadd.f32 %v1849, %v1852
        %vm1854 = vweird.f32 %v1848
        %vm1855 = vweird.f32 %v1849
        %vm1856 = vmor %vm1854, %vm1855
        %v1857 = vsel %vm1856, %v1849, %v1853
        %v1858 = vand.u32 2147483647, %v1848
        %vm1859 = vcmp.eq.f32.partialorder %v1858, 8.507059e+37
        %v1860 = vand.u32 %v1848, 2147483648
        %v1861 = vor.u32 1.1754944e-38, %v1860
        %v1862 = vsel %vm1859, %v1861, %v1857
        %v1863 = vmul.f32 1.0, %v1862
        %v1864 = vtanh.pop %v1844
        %v1865 = vmul.f32 %v1863, %v1864
        %v1867 = vrot.slane %v1865, 3
        %v1868 = vsel %vm1086, %v1867, 0
        %1870 = vmatpush.msra.mxu0 0.0
        %1871 = vmatpush.msra.mxu0 0.0
        %1872 = vmatpush.msra.mxu0 0.0
        %1873 = vmatpush.msra.mxu0 0.0
        %1874 = vmatpush.msra.mxu0 0.0
        %1875 = vmatpush.msra.mxu0 0.0
        %1876 = vmatpush.msra.mxu0 0.0
        %1877 = vmatpush.msra.mxu0 0.0
        %1878 = vmatpush.msra.mxu0 0.0
        %1879 = vmatpush.msra.mxu0 0.0
        %1880 = vmatpush.msra.mxu0 0.0
        %1881 = vmatpush.msra.mxu0 0.0
        %1882 = vmatpush.msra.mxu0 %v1203
        %1883 = vmatpush.msra.mxu0 %v1202
        %1884 = vmatpush.msra.mxu0 %v1201
        %1885 = vmatpush.msra.mxu0 %v1200
        %1886 = vmatmul.f32.gmra.mxu0 %v1868
        %v1887 = vpop.f32.mrf.mxu0
        %v1888 = vadd.f32 0.0, %v1887
        %1889 = vdwg.mxu0
        %v1891 = vrot.slane %v1888, 4
        %v1893 = vadd.f32 %v1108, %v1891
        %1894 = vmatpush.msra.mxu0 0.0
        %1895 = vmatpush.msra.mxu0 0.0
        %1896 = vmatpush.msra.mxu0 0.0
        %1897 = vmatpush.msra.mxu0 0.0
        %1898 = vmatpush.msra.mxu0 0.0
        %1899 = vmatpush.msra.mxu0 0.0
        %1900 = vmatpush.msra.mxu0 0.0
        %1901 = vmatpush.msra.mxu0 0.0
        %1902 = vmatpush.msra.mxu0 0.0
        %1903 = vmatpush.msra.mxu0 0.0
        %1904 = vmatpush.msra.mxu0 0.0
        %1905 = vmatpush.msra.mxu0 0.0
        %1906 = vmatpush.msra.mxu0 %v1208
        %1907 = vmatpush.msra.mxu0 %v1207
        %1908 = vmatpush.msra.mxu0 %v1206
        %1909 = vmatpush.msra.mxu0 %v1205
        %1910 = vmatmul.f32.gmra.mxu0 %v1868
        %v1911 = vpop.f32.mrf.mxu0
        %v1912 = vadd.f32 0.0, %v1911
        %1913 = vdwg.mxu0
        %v1915 = vrot.slane %v1912, 4
        %v1917 = vadd.f32 %v1138, %v1915
        %1918 = vmatpush.msra.mxu0 0.0
        %1919 = vmatpush.msra.mxu0 0.0
        %1920 = vmatpush.msra.mxu0 0.0
        %1921 = vmatpush.msra.mxu0 0.0
        %1922 = vmatpush.msra.mxu0 0.0
        %1923 = vmatpush.msra.mxu0 0.0
        %1924 = vmatpush.msra.mxu0 0.0
        %1925 = vmatpush.msra.mxu0 0.0
        %1926 = vmatpush.msra.mxu0 0.0
        %1927 = vmatpush.msra.mxu0 0.0
        %1928 = vmatpush.msra.mxu0 0.0
        %1929 = vmatpush.msra.mxu0 0.0
        %1930 = vmatpush.msra.mxu0 %v1213
        %1931 = vmatpush.msra.mxu0 %v1212
        %1932 = vmatpush.msra.mxu0 %v1211
        %1933 = vmatpush.msra.mxu0 %v1210
        %1934 = vmatmul.f32.gmra.mxu0 %v1868
        %v1935 = vpop.f32.mrf.mxu0
        %v1936 = vadd.f32 0.0, %v1935
        %1937 = vdwg.mxu0
        %v1939 = vrot.slane %v1936, 4
        %v1941 = vadd.f32 %v1168, %v1939
        %1942 = vmatpush.msra.mxu0 0.0
        %1943 = vmatpush.msra.mxu0 0.0
        %1944 = vmatpush.msra.mxu0 0.0
        %1945 = vmatpush.msra.mxu0 0.0
        %1946 = vmatpush.msra.mxu0 0.0
        %1947 = vmatpush.msra.mxu0 0.0
        %1948 = vmatpush.msra.mxu0 0.0
        %1949 = vmatpush.msra.mxu0 0.0
        %1950 = vmatpush.msra.mxu0 0.0
        %1951 = vmatpush.msra.mxu0 0.0
        %1952 = vmatpush.msra.mxu0 0.0
        %1953 = vmatpush.msra.mxu0 0.0
        %1954 = vmatpush.msra.mxu0 %v1218
        %1955 = vmatpush.msra.mxu0 %v1217
        %1956 = vmatpush.msra.mxu0 %v1216
        %1957 = vmatpush.msra.mxu0 %v1215
        %1958 = vmatmul.f32.gmra.mxu0 %v1868
        %v1959 = vpop.f32.mrf.mxu0
        %v1960 = vadd.f32 0.0, %v1959
        %1961 = vdwg.mxu0
        %v1963 = vrot.slane %v1960, 4
        %v1965 = vadd.f32 %v1198, %v1963
        %v1966 = vxor.u32 %v1917, 2147483648
        %v1967 = vmul.f32 %v1966, 1.442695
        %v1968 = vpow.pop %v1967
        %v1969 = vadd.f32 %v1968, 1.0
        %v1970 = vrcp.pop %v1969
        %v1971 = vmul.f32 %v1969, %v1970
        %v1972 = vsub.f32 1.0, %v1971
        %v1973 = vmul.f32 %v1970, %v1972
        %v1974 = vadd.f32 %v1970, %v1973
        %vm1975 = vweird.f32 %v1969
        %vm1976 = vweird.f32 %v1970
        %vm1977 = vmor %vm1975, %vm1976
        %v1978 = vsel %vm1977, %v1970, %v1974
        %v1979 = vand.u32 2147483647, %v1969
        %vm1980 = vcmp.eq.f32.partialorder %v1979, 8.507059e+37
        %v1981 = vand.u32 %v1969, 2147483648
        %v1982 = vor.u32 1.1754944e-38, %v1981
        %v1983 = vsel %vm1980, %v1982, %v1978
        %v1984 = vmul.f32 1.0, %v1983
        %v1986 = vrot.slane %v1844, 7
        %v1988 = vmul.f32 %v1984, %v1986
        %v1989 = vxor.u32 %v1893, 2147483648
        %v1990 = vmul.f32 %v1989, 1.442695
        %v1991 = vpow.pop %v1990
        %v1992 = vadd.f32 %v1991, 1.0
        %v1993 = vrcp.pop %v1992
        %v1994 = vmul.f32 %v1992, %v1993
        %v1995 = vsub.f32 1.0, %v1994
        %v1996 = vmul.f32 %v1993, %v1995
        %v1997 = vadd.f32 %v1993, %v1996
        %vm1998 = vweird.f32 %v1992
        %vm1999 = vweird.f32 %v1993
        %vm2000 = vmor %vm1998, %vm1999
        %v2001 = vsel %vm2000, %v1993, %v1997
        %v2002 = vand.u32 2147483647, %v1992
        %vm2003 = vcmp.eq.f32.partialorder %v2002, 8.507059e+37
        %v2004 = vand.u32 %v1992, 2147483648
        %v2005 = vor.u32 1.1754944e-38, %v2004
        %v2006 = vsel %vm2003, %v2005, %v2001
        %v2007 = vmul.f32 1.0, %v2006
        %v2008 = vtanh.pop %v1941
        %v2009 = vmul.f32 %v2007, %v2008
        %v2010 = vadd.f32 %v1988, %v2009
        %v2011 = vxor.u32 %v1965, 2147483648
        %v2012 = vmul.f32 %v2011, 1.442695
        %v2013 = vpow.pop %v2012
        %v2014 = vadd.f32 %v2013, 1.0
        %v2015 = vrcp.pop %v2014
        %v2016 = vmul.f32 %v2014, %v2015
        %v2017 = vsub.f32 1.0, %v2016
        %v2018 = vmul.f32 %v2015, %v2017
        %v2019 = vadd.f32 %v2015, %v2018
        %vm2020 = vweird.f32 %v2014
        %vm2021 = vweird.f32 %v2015
        %vm2022 = vmor %vm2020, %vm2021
        %v2023 = vsel %vm2022, %v2015, %v2019
        %v2024 = vand.u32 2147483647, %v2014
        %vm2025 = vcmp.eq.f32.partialorder %v2024, 8.507059e+37
        %v2026 = vand.u32 %v2014, 2147483648
        %v2027 = vor.u32 1.1754944e-38, %v2026
        %v2028 = vsel %vm2025, %v2027, %v2023
        %v2029 = vmul.f32 1.0, %v2028
        %v2030 = vtanh.pop %v2010
        %v2031 = vmul.f32 %v2029, %v2030
        %v2033 = vrot.slane %v2031, 4
        %v2034 = vsel %vm1086, %v2033, 0
        %2036 = vmatpush.msra.mxu0 0.0
        %2037 = vmatpush.msra.mxu0 0.0
        %2038 = vmatpush.msra.mxu0 0.0
        %2039 = vmatpush.msra.mxu0 0.0
        %2040 = vmatpush.msra.mxu0 0.0
        %2041 = vmatpush.msra.mxu0 0.0
        %2042 = vmatpush.msra.mxu0 0.0
        %2043 = vmatpush.msra.mxu0 0.0
        %2044 = vmatpush.msra.mxu0 0.0
        %2045 = vmatpush.msra.mxu0 0.0
        %2046 = vmatpush.msra.mxu0 0.0
        %2047 = vmatpush.msra.mxu0 0.0
        %2048 = vmatpush.msra.mxu0 %v1203
        %2049 = vmatpush.msra.mxu0 %v1202
        %2050 = vmatpush.msra.mxu0 %v1201
        %2051 = vmatpush.msra.mxu0 %v1200
        %2052 = vmatmul.f32.gmra.mxu0 %v2034
        %v2053 = vpop.f32.mrf.mxu0
        %v2054 = vadd.f32 0.0, %v2053
        %2055 = vdwg.mxu0
        %v2057 = vrot.slane %v2054, 3
        %v2059 = vadd.f32 %v1108, %v2057
        %2060 = vmatpush.msra.mxu0 0.0
        %2061 = vmatpush.msra.mxu0 0.0
        %2062 = vmatpush.msra.mxu0 0.0
        %2063 = vmatpush.msra.mxu0 0.0
        %2064 = vmatpush.msra.mxu0 0.0
        %2065 = vmatpush.msra.mxu0 0.0
        %2066 = vmatpush.msra.mxu0 0.0
        %2067 = vmatpush.msra.mxu0 0.0
        %2068 = vmatpush.msra.mxu0 0.0
        %2069 = vmatpush.msra.mxu0 0.0
        %2070 = vmatpush.msra.mxu0 0.0
        %2071 = vmatpush.msra.mxu0 0.0
        %2072 = vmatpush.msra.mxu0 %v1208
        %2073 = vmatpush.msra.mxu0 %v1207
        %2074 = vmatpush.msra.mxu0 %v1206
        %2075 = vmatpush.msra.mxu0 %v1205
        %2076 = vmatmul.f32.gmra.mxu0 %v2034
        %v2077 = vpop.f32.mrf.mxu0
        %v2078 = vadd.f32 0.0, %v2077
        %2079 = vdwg.mxu0
        %v2081 = vrot.slane %v2078, 3
        %v2083 = vadd.f32 %v1138, %v2081
        %2084 = vmatpush.msra.mxu0 0.0
        %2085 = vmatpush.msra.mxu0 0.0
        %2086 = vmatpush.msra.mxu0 0.0
        %2087 = vmatpush.msra.mxu0 0.0
        %2088 = vmatpush.msra.mxu0 0.0
        %2089 = vmatpush.msra.mxu0 0.0
        %2090 = vmatpush.msra.mxu0 0.0
        %2091 = vmatpush.msra.mxu0 0.0
        %2092 = vmatpush.msra.mxu0 0.0
        %2093 = vmatpush.msra.mxu0 0.0
        %2094 = vmatpush.msra.mxu0 0.0
        %2095 = vmatpush.msra.mxu0 0.0
        %2096 = vmatpush.msra.mxu0 %v1213
        %2097 = vmatpush.msra.mxu0 %v1212
        %2098 = vmatpush.msra.mxu0 %v1211
        %2099 = vmatpush.msra.mxu0 %v1210
        %2100 = vmatmul.f32.gmra.mxu0 %v2034
        %v2101 = vpop.f32.mrf.mxu0
        %v2102 = vadd.f32 0.0, %v2101
        %2103 = vdwg.mxu0
        %v2105 = vrot.slane %v2102, 3
        %v2107 = vadd.f32 %v1168, %v2105
        %2108 = vmatpush.msra.mxu0 0.0
        %2109 = vmatpush.msra.mxu0 0.0
        %2110 = vmatpush.msra.mxu0 0.0
        %2111 = vmatpush.msra.mxu0 0.0
        %2112 = vmatpush.msra.mxu0 0.0
        %2113 = vmatpush.msra.mxu0 0.0
        %2114 = vmatpush.msra.mxu0 0.0
        %2115 = vmatpush.msra.mxu0 0.0
        %2116 = vmatpush.msra.mxu0 0.0
        %2117 = vmatpush.msra.mxu0 0.0
        %2118 = vmatpush.msra.mxu0 0.0
        %2119 = vmatpush.msra.mxu0 0.0
        %2120 = vmatpush.msra.mxu0 %v1218
        %2121 = vmatpush.msra.mxu0 %v1217
        %2122 = vmatpush.msra.mxu0 %v1216
        %2123 = vmatpush.msra.mxu0 %v1215
        %2124 = vmatmul.f32.gmra.mxu0 %v2034
        %v2125 = vpop.f32.mrf.mxu0
        %v2126 = vadd.f32 0.0, %v2125
        %2127 = vdwg.mxu0
        %v2129 = vrot.slane %v2126, 3
        %v2131 = vadd.f32 %v1198, %v2129
        %v2132 = vxor.u32 %v2083, 2147483648
        %v2133 = vmul.f32 %v2132, 1.442695
        %v2134 = vpow.pop %v2133
        %v2135 = vadd.f32 %v2134, 1.0
        %v2136 = vrcp.pop %v2135
        %v2137 = vmul.f32 %v2135, %v2136
        %v2138 = vsub.f32 1.0, %v2137
        %v2139 = vmul.f32 %v2136, %v2138
        %v2140 = vadd.f32 %v2136, %v2139
        %vm2141 = vweird.f32 %v2135
        %vm2142 = vweird.f32 %v2136
        %vm2143 = vmor %vm2141, %vm2142
        %v2144 = vsel %vm2143, %v2136, %v2140
        %v2145 = vand.u32 2147483647, %v2135
        %vm2146 = vcmp.eq.f32.partialorder %v2145, 8.507059e+37
        %v2147 = vand.u32 %v2135, 2147483648
        %v2148 = vor.u32 1.1754944e-38, %v2147
        %v2149 = vsel %vm2146, %v2148, %v2144
        %v2150 = vmul.f32 1.0, %v2149
        %v2152 = vrot.slane %v2010, 7
        %v2154 = vmul.f32 %v2150, %v2152
        %v2155 = vxor.u32 %v2059, 2147483648
        %v2156 = vmul.f32 %v2155, 1.442695
        %v2157 = vpow.pop %v2156
        %v2158 = vadd.f32 %v2157, 1.0
        %v2159 = vrcp.pop %v2158
        %v2160 = vmul.f32 %v2158, %v2159
        %v2161 = vsub.f32 1.0, %v2160
        %v2162 = vmul.f32 %v2159, %v2161
        %v2163 = vadd.f32 %v2159, %v2162
        %vm2164 = vweird.f32 %v2158
        %vm2165 = vweird.f32 %v2159
        %vm2166 = vmor %vm2164, %vm2165
        %v2167 = vsel %vm2166, %v2159, %v2163
        %v2168 = vand.u32 2147483647, %v2158
        %vm2169 = vcmp.eq.f32.partialorder %v2168, 8.507059e+37
        %v2170 = vand.u32 %v2158, 2147483648
        %v2171 = vor.u32 1.1754944e-38, %v2170
        %v2172 = vsel %vm2169, %v2171, %v2167
        %v2173 = vmul.f32 1.0, %v2172
        %v2174 = vtanh.pop %v2107
        %v2175 = vmul.f32 %v2173, %v2174
        %v2176 = vadd.f32 %v2154, %v2175
        %v2177 = vxor.u32 %v2131, 2147483648
        %v2178 = vmul.f32 %v2177, 1.442695
        %v2179 = vpow.pop %v2178
        %v2180 = vadd.f32 %v2179, 1.0
        %v2181 = vrcp.pop %v2180
        %v2182 = vmul.f32 %v2180, %v2181
        %v2183 = vsub.f32 1.0, %v2182
        %v2184 = vmul.f32 %v2181, %v2183
        %v2185 = vadd.f32 %v2181, %v2184
        %vm2186 = vweird.f32 %v2180
        %vm2187 = vweird.f32 %v2181
        %vm2188 = vmor %vm2186, %vm2187
        %v2189 = vsel %vm2188, %v2181, %v2185
        %v2190 = vand.u32 2147483647, %v2180
        %vm2191 = vcmp.eq.f32.partialorder %v2190, 8.507059e+37
        %v2192 = vand.u32 %v2180, 2147483648
        %v2193 = vor.u32 1.1754944e-38, %v2192
        %v2194 = vsel %vm2191, %v2193, %v2189
        %v2195 = vmul.f32 1.0, %v2194
        %v2196 = vtanh.pop %v2176
        %v2197 = vmul.f32 %v2195, %v2196
        %v2199 = vrot.slane %v2197, 5
        %v2200 = vsel %vm1086, %v2199, 0
        %2202 = vmatpush.msra.mxu0 0.0
        %2203 = vmatpush.msra.mxu0 0.0
        %2204 = vmatpush.msra.mxu0 0.0
        %2205 = vmatpush.msra.mxu0 0.0
        %2206 = vmatpush.msra.mxu0 0.0
        %2207 = vmatpush.msra.mxu0 0.0
        %2208 = vmatpush.msra.mxu0 0.0
        %2209 = vmatpush.msra.mxu0 0.0
        %2210 = vmatpush.msra.mxu0 0.0
        %2211 = vmatpush.msra.mxu0 0.0
        %2212 = vmatpush.msra.mxu0 0.0
        %2213 = vmatpush.msra.mxu0 0.0
        %2214 = vmatpush.msra.mxu0 %v1203
        %2215 = vmatpush.msra.mxu0 %v1202
        %2216 = vmatpush.msra.mxu0 %v1201
        %2217 = vmatpush.msra.mxu0 %v1200
        %2218 = vmatmul.f32.gmra.mxu0 %v2200
        %v2219 = vpop.f32.mrf.mxu0
        %v2220 = vadd.f32 0.0, %v2219
        %2221 = vdwg.mxu0
        %v2223 = vrot.slane %v2220, 2
        %v2225 = vadd.f32 %v1108, %v2223
        %2226 = vmatpush.msra.mxu0 0.0
        %2227 = vmatpush.msra.mxu0 0.0
        %2228 = vmatpush.msra.mxu0 0.0
        %2229 = vmatpush.msra.mxu0 0.0
        %2230 = vmatpush.msra.mxu0 0.0
        %2231 = vmatpush.msra.mxu0 0.0
        %2232 = vmatpush.msra.mxu0 0.0
        %2233 = vmatpush.msra.mxu0 0.0
        %2234 = vmatpush.msra.mxu0 0.0
        %2235 = vmatpush.msra.mxu0 0.0
        %2236 = vmatpush.msra.mxu0 0.0
        %2237 = vmatpush.msra.mxu0 0.0
        %2238 = vmatpush.msra.mxu0 %v1208
        %2239 = vmatpush.msra.mxu0 %v1207
        %2240 = vmatpush.msra.mxu0 %v1206
        %2241 = vmatpush.msra.mxu0 %v1205
        %2242 = vmatmul.f32.gmra.mxu0 %v2200
        %v2243 = vpop.f32.mrf.mxu0
        %v2244 = vadd.f32 0.0, %v2243
        %2245 = vdwg.mxu0
        %v2247 = vrot.slane %v2244, 2
        %v2249 = vadd.f32 %v1138, %v2247
        %2250 = vmatpush.msra.mxu0 0.0
        %2251 = vmatpush.msra.mxu0 0.0
        %2252 = vmatpush.msra.mxu0 0.0
        %2253 = vmatpush.msra.mxu0 0.0
        %2254 = vmatpush.msra.mxu0 0.0
        %2255 = vmatpush.msra.mxu0 0.0
        %2256 = vmatpush.msra.mxu0 0.0
        %2257 = vmatpush.msra.mxu0 0.0
        %2258 = vmatpush.msra.mxu0 0.0
        %2259 = vmatpush.msra.mxu0 0.0
        %2260 = vmatpush.msra.mxu0 0.0
        %2261 = vmatpush.msra.mxu0 0.0
        %2262 = vmatpush.msra.mxu0 %v1213
        %2263 = vmatpush.msra.mxu0 %v1212
        %2264 = vmatpush.msra.mxu0 %v1211
        %2265 = vmatpush.msra.mxu0 %v1210
        %2266 = vmatmul.f32.gmra.mxu0 %v2200
        %v2267 = vpop.f32.mrf.mxu0
        %v2268 = vadd.f32 0.0, %v2267
        %2269 = vdwg.mxu0
        %v2271 = vrot.slane %v2268, 2
        %v2273 = vadd.f32 %v1168, %v2271
        %2274 = vmatpush.msra.mxu0 0.0
        %2275 = vmatpush.msra.mxu0 0.0
        %2276 = vmatpush.msra.mxu0 0.0
        %2277 = vmatpush.msra.mxu0 0.0
        %2278 = vmatpush.msra.mxu0 0.0
        %2279 = vmatpush.msra.mxu0 0.0
        %2280 = vmatpush.msra.mxu0 0.0
        %2281 = vmatpush.msra.mxu0 0.0
        %2282 = vmatpush.msra.mxu0 0.0
        %2283 = vmatpush.msra.mxu0 0.0
        %2284 = vmatpush.msra.mxu0 0.0
        %2285 = vmatpush.msra.mxu0 0.0
        %2286 = vmatpush.msra.mxu0 %v1218
        %2287 = vmatpush.msra.mxu0 %v1217
        %2288 = vmatpush.msra.mxu0 %v1216
        %2289 = vmatpush.msra.mxu0 %v1215
        %2290 = vmatmul.f32.gmra.mxu0 %v2200
        %v2291 = vpop.f32.mrf.mxu0
        %v2292 = vadd.f32 0.0, %v2291
        %2293 = vdwg.mxu0
        %v2295 = vrot.slane %v2292, 2
        %v2297 = vadd.f32 %v1198, %v2295
        %v2298 = vxor.u32 %v2249, 2147483648
        %v2299 = vmul.f32 %v2298, 1.442695
        %v2300 = vpow.pop %v2299
        %v2301 = vadd.f32 %v2300, 1.0
        %v2302 = vrcp.pop %v2301
        %v2303 = vmul.f32 %v2301, %v2302
        %v2304 = vsub.f32 1.0, %v2303
        %v2305 = vmul.f32 %v2302, %v2304
        %v2306 = vadd.f32 %v2302, %v2305
        %vm2307 = vweird.f32 %v2301
        %vm2308 = vweird.f32 %v2302
        %vm2309 = vmor %vm2307, %vm2308
        %v2310 = vsel %vm2309, %v2302, %v2306
        %v2311 = vand.u32 2147483647, %v2301
        %vm2312 = vcmp.eq.f32.partialorder %v2311, 8.507059e+37
        %v2313 = vand.u32 %v2301, 2147483648
        %v2314 = vor.u32 1.1754944e-38, %v2313
        %v2315 = vsel %vm2312, %v2314, %v2310
        %v2316 = vmul.f32 1.0, %v2315
        %v2318 = vrot.slane %v2176, 7
        %v2320 = vmul.f32 %v2316, %v2318
        %v2321 = vxor.u32 %v2225, 2147483648
        %v2322 = vmul.f32 %v2321, 1.442695
        %v2323 = vpow.pop %v2322
        %v2324 = vadd.f32 %v2323, 1.0
        %v2325 = vrcp.pop %v2324
        %v2326 = vmul.f32 %v2324, %v2325
        %v2327 = vsub.f32 1.0, %v2326
        %v2328 = vmul.f32 %v2325, %v2327
        %v2329 = vadd.f32 %v2325, %v2328
        %vm2330 = vweird.f32 %v2324
        %vm2331 = vweird.f32 %v2325
        %vm2332 = vmor %vm2330, %vm2331
        %v2333 = vsel %vm2332, %v2325, %v2329
        %v2334 = vand.u32 2147483647, %v2324
        %vm2335 = vcmp.eq.f32.partialorder %v2334, 8.507059e+37
        %v2336 = vand.u32 %v2324, 2147483648
        %v2337 = vor.u32 1.1754944e-38, %v2336
        %v2338 = vsel %vm2335, %v2337, %v2333
        %v2339 = vmul.f32 1.0, %v2338
        %v2340 = vtanh.pop %v2273
        %v2341 = vmul.f32 %v2339, %v2340
        %v2342 = vadd.f32 %v2320, %v2341
        %v2343 = vxor.u32 %v2297, 2147483648
        %v2344 = vmul.f32 %v2343, 1.442695
        %v2345 = vpow.pop %v2344
        %v2346 = vadd.f32 %v2345, 1.0
        %v2347 = vrcp.pop %v2346
        %v2348 = vmul.f32 %v2346, %v2347
        %v2349 = vsub.f32 1.0, %v2348
        %v2350 = vmul.f32 %v2347, %v2349
        %v2351 = vadd.f32 %v2347, %v2350
        %vm2352 = vweird.f32 %v2346
        %vm2353 = vweird.f32 %v2347
        %vm2354 = vmor %vm2352, %vm2353
        %v2355 = vsel %vm2354, %v2347, %v2351
        %v2356 = vand.u32 2147483647, %v2346
        %vm2357 = vcmp.eq.f32.partialorder %v2356, 8.507059e+37
        %v2358 = vand.u32 %v2346, 2147483648
        %v2359 = vor.u32 1.1754944e-38, %v2358
        %v2360 = vsel %vm2357, %v2359, %v2355
        %v2361 = vmul.f32 1.0, %v2360
        %v2362 = vtanh.pop %v2342
        %v2363 = vmul.f32 %v2361, %v2362
        %v2365 = vrot.slane %v2363, 6
        %v2366 = vsel %vm1086, %v2365, 0
        %2368 = vmatpush.msra.mxu0 0.0
        %2369 = vmatpush.msra.mxu0 0.0
        %2370 = vmatpush.msra.mxu0 0.0
        %2371 = vmatpush.msra.mxu0 0.0
        %2372 = vmatpush.msra.mxu0 0.0
        %2373 = vmatpush.msra.mxu0 0.0
        %2374 = vmatpush.msra.mxu0 0.0
        %2375 = vmatpush.msra.mxu0 0.0
        %2376 = vmatpush.msra.mxu0 0.0
        %2377 = vmatpush.msra.mxu0 0.0
        %2378 = vmatpush.msra.mxu0 0.0
        %2379 = vmatpush.msra.mxu0 0.0
        %2380 = vmatpush.msra.mxu0 %v1203
        %2381 = vmatpush.msra.mxu0 %v1202
        %2382 = vmatpush.msra.mxu0 %v1201
        %2383 = vmatpush.msra.mxu0 %v1200
        %2384 = vmatmul.f32.gmra.mxu0 %v2366
        %v2385 = vpop.f32.mrf.mxu0
        %v2386 = vadd.f32 0.0, %v2385
        %2387 = vdwg.mxu0
        %v2389 = vrot.slane %v2386, 1
        %v2391 = vadd.f32 %v1108, %v2389
        %2392 = vmatpush.msra.mxu0 0.0
        %2393 = vmatpush.msra.mxu0 0.0
        %2394 = vmatpush.msra.mxu0 0.0
        %2395 = vmatpush.msra.mxu0 0.0
        %2396 = vmatpush.msra.mxu0 0.0
        %2397 = vmatpush.msra.mxu0 0.0
        %2398 = vmatpush.msra.mxu0 0.0
        %2399 = vmatpush.msra.mxu0 0.0
        %2400 = vmatpush.msra.mxu0 0.0
        %2401 = vmatpush.msra.mxu0 0.0
        %2402 = vmatpush.msra.mxu0 0.0
        %2403 = vmatpush.msra.mxu0 0.0
        %2404 = vmatpush.msra.mxu0 %v1208
        %2405 = vmatpush.msra.mxu0 %v1207
        %2406 = vmatpush.msra.mxu0 %v1206
        %2407 = vmatpush.msra.mxu0 %v1205
        %2408 = vmatmul.f32.gmra.mxu0 %v2366
        %v2409 = vpop.f32.mrf.mxu0
        %v2410 = vadd.f32 0.0, %v2409
        %2411 = vdwg.mxu0
        %v2413 = vrot.slane %v2410, 1
        %v2415 = vadd.f32 %v1138, %v2413
        %2416 = vmatpush.msra.mxu0 0.0
        %2417 = vmatpush.msra.mxu0 0.0
        %2418 = vmatpush.msra.mxu0 0.0
        %2419 = vmatpush.msra.mxu0 0.0
        %2420 = vmatpush.msra.mxu0 0.0
        %2421 = vmatpush.msra.mxu0 0.0
        %2422 = vmatpush.msra.mxu0 0.0
        %2423 = vmatpush.msra.mxu0 0.0
        %2424 = vmatpush.msra.mxu0 0.0
        %2425 = vmatpush.msra.mxu0 0.0
        %2426 = vmatpush.msra.mxu0 0.0
        %2427 = vmatpush.msra.mxu0 0.0
        %2428 = vmatpush.msra.mxu0 %v1213
        %2429 = vmatpush.msra.mxu0 %v1212
        %2430 = vmatpush.msra.mxu0 %v1211
        %2431 = vmatpush.msra.mxu0 %v1210
        %2432 = vmatmul.f32.gmra.mxu0 %v2366
        %v2433 = vpop.f32.mrf.mxu0
        %v2434 = vadd.f32 0.0, %v2433
        %2435 = vdwg.mxu0
        %v2437 = vrot.slane %v2434, 1
        %v2439 = vadd.f32 %v1168, %v2437
        %2440 = vmatpush.msra.mxu0 0.0
        %2441 = vmatpush.msra.mxu0 0.0
        %2442 = vmatpush.msra.mxu0 0.0
        %2443 = vmatpush.msra.mxu0 0.0
        %2444 = vmatpush.msra.mxu0 0.0
        %2445 = vmatpush.msra.mxu0 0.0
        %2446 = vmatpush.msra.mxu0 0.0
        %2447 = vmatpush.msra.mxu0 0.0
        %2448 = vmatpush.msra.mxu0 0.0
        %2449 = vmatpush.msra.mxu0 0.0
        %2450 = vmatpush.msra.mxu0 0.0
        %2451 = vmatpush.msra.mxu0 0.0
        %2452 = vmatpush.msra.mxu0 %v1218
        %2453 = vmatpush.msra.mxu0 %v1217
        %2454 = vmatpush.msra.mxu0 %v1216
        %2455 = vmatpush.msra.mxu0 %v1215
        %2456 = vmatmul.f32.gmra.mxu0 %v2366
        %v2457 = vpop.f32.mrf.mxu0
        %v2458 = vadd.f32 0.0, %v2457
        %2459 = vdwg.mxu0
        %v2461 = vrot.slane %v2458, 1
        %v2463 = vadd.f32 %v1198, %v2461
        %v2464 = vxor.u32 %v2415, 2147483648
        %v2465 = vmul.f32 %v2464, 1.442695
        %v2466 = vpow.pop %v2465
        %v2467 = vadd.f32 %v2466, 1.0
        %v2468 = vrcp.pop %v2467
        %v2469 = vmul.f32 %v2467, %v2468
        %v2470 = vsub.f32 1.0, %v2469
        %v2471 = vmul.f32 %v2468, %v2470
        %v2472 = vadd.f32 %v2468, %v2471
        %vm2473 = vweird.f32 %v2467
        %vm2474 = vweird.f32 %v2468
        %vm2475 = vmor %vm2473, %vm2474
        %v2476 = vsel %vm2475, %v2468, %v2472
        %v2477 = vand.u32 2147483647, %v2467
        %vm2478 = vcmp.eq.f32.partialorder %v2477, 8.507059e+37
        %v2479 = vand.u32 %v2467, 2147483648
        %v2480 = vor.u32 1.1754944e-38, %v2479
        %v2481 = vsel %vm2478, %v2480, %v2476
        %v2482 = vmul.f32 1.0, %v2481
        %v2484 = vrot.slane %v2342, 7
        %v2486 = vmul.f32 %v2482, %v2484
        %v2487 = vxor.u32 %v2391, 2147483648
        %v2488 = vmul.f32 %v2487, 1.442695
        %v2489 = vpow.pop %v2488
        %v2490 = vadd.f32 %v2489, 1.0
        %v2491 = vrcp.pop %v2490
        %v2492 = vmul.f32 %v2490, %v2491
        %v2493 = vsub.f32 1.0, %v2492
        %v2494 = vmul.f32 %v2491, %v2493
        %v2495 = vadd.f32 %v2491, %v2494
        %vm2496 = vweird.f32 %v2490
        %vm2497 = vweird.f32 %v2491
        %vm2498 = vmor %vm2496, %vm2497
        %v2499 = vsel %vm2498, %v2491, %v2495
        %v2500 = vand.u32 2147483647, %v2490
        %vm2501 = vcmp.eq.f32.partialorder %v2500, 8.507059e+37
        %v2502 = vand.u32 %v2490, 2147483648
        %v2503 = vor.u32 1.1754944e-38, %v2502
        %v2504 = vsel %vm2501, %v2503, %v2499
        %v2505 = vmul.f32 1.0, %v2504
        %v2506 = vtanh.pop %v2439
        %v2507 = vmul.f32 %v2505, %v2506
        %v2508 = vadd.f32 %v2486, %v2507
        %v2509 = vxor.u32 %v2463, 2147483648
        %v2510 = vmul.f32 %v2509, 1.442695
        %v2511 = vpow.pop %v2510
        %v2512 = vadd.f32 %v2511, 1.0
        %v2513 = vrcp.pop %v2512
        %v2514 = vmul.f32 %v2512, %v2513
        %v2515 = vsub.f32 1.0, %v2514
        %v2516 = vmul.f32 %v2513, %v2515
        %v2517 = vadd.f32 %v2513, %v2516
        %vm2518 = vweird.f32 %v2512
        %vm2519 = vweird.f32 %v2513
        %vm2520 = vmor %vm2518, %vm2519
        %v2521 = vsel %vm2520, %v2513, %v2517
        %v2522 = vand.u32 2147483647, %v2512
        %vm2523 = vcmp.eq.f32.partialorder %v2522, 8.507059e+37
        %v2524 = vand.u32 %v2512, 2147483648
        %v2525 = vor.u32 1.1754944e-38, %v2524
        %v2526 = vsel %vm2523, %v2525, %v2521
        %v2527 = vmul.f32 1.0, %v2526
        %v2528 = vtanh.pop %v2508
        %v2529 = vmul.f32 %v2527, %v2528
        %vm2530 = vcmask 1040384
        %v2531 = vsel %vm2530, %v1368, %v1533
        %vm2532 = vcmask 1041408
        %v2533 = vsel %vm2532, %v2531, %v1699
        %vm2534 = vcmask 1042432
        %v2535 = vsel %vm2534, %v2533, %v1865
        %v2536 = vsel %vm1054, %v2535, %v2031
        %vm2537 = vcmask 1044480
        %v2538 = vsel %vm2537, %v2536, %v2197
        %vm2539 = vcmask 1045504
        %v2540 = vsel %vm2539, %v2538, %v2363
        %vm2541 = vcmask 1046528
        %v2542 = vsel %vm2541, %v2540, %v2529
        %v2543 = vld [vmem:[%s1] sm:$0xff]
        %v2544 = vadd.f32 %v2542, %v2543
        %v2545 = vpack.c.bf16 %v2544, %v2544
        %v2546 = vld [vmem:[%s7] sm:$0xf]
        %v2547 = vld [vmem:[%s7 + $0x4] sm:$0xf]
        %v2548 = vld [vmem:[%s7 + $0x8] sm:$0xf]
        %v2549 = vld [vmem:[%s7 + $0xc] sm:$0xf]
        %v2550 = vld [vmem:[#allocation7] sm:$0x1]
        %v2552 = vperm.slane %v2550, 0
        %v2558 = vunpack.c.l.b16 %v2546
        %v2559 = vunpack.c.l.b16 %v2547
        %v2560 = vunpack.c.l.b16 %v2548
        %v2561 = vunpack.c.l.b16 %v2549
        %v2562 = vpack.c.b16 %v2559, %v2558
        %v2563 = vpack.c.b16 %v2561, %v2560
        %v2567 = vsel %vm1086, %v2545, 0
        %2569 = vmatpush.bf16.msra.mxu0 0
        %2570 = vmatpush.bf16.msra.mxu0 0
        %2571 = vmatpush.bf16.msra.mxu0 0
        %2572 = vmatpush.bf16.msra.mxu0 0
        %2573 = vmatpush.bf16.msra.mxu0 0
        %2574 = vmatpush.bf16.msra.mxu0 0
        %2575 = vmatpush.bf16.msra.mxu0 %v2563
        %2576 = vmatpush.bf16.msra.mxu0 %v2562
        %2577 = vmatmul.bf16.gmra.mxu0 %v2567
        %v2578 = vpop.f32.mrf.mxu0
        %v2579 = vadd.f32 %v2552, %v2578
        %v2580 = vpop.f32.mrf.mxu0
        %2581 = vdwg.mxu0
        %v2582 = vld [vmem:[#allocation8] sm:$0xf]
        %v2583 = vld [vmem:[#allocation8 + $0x4] sm:$0xf]
        %v2584 = vld [vmem:[#allocation8 + $0x8] sm:$0xf]
        %v2585 = vld [vmem:[#allocation8 + $0xc] sm:$0xf]
        %v2586 = vld [vmem:[#allocation10] sm:$0x1]
        %v2588 = vperm.slane %v2586, 0
        %v2594 = vunpack.c.l.b16 %v2582
        %v2595 = vunpack.c.l.b16 %v2583
        %v2596 = vunpack.c.l.b16 %v2584
        %v2597 = vunpack.c.l.b16 %v2585
        %v2598 = vpack.c.b16 %v2595, %v2594
        %v2599 = vpack.c.b16 %v2597, %v2596
        %2602 = vmatpush.bf16.msra.mxu0 0
        %2603 = vmatpush.bf16.msra.mxu0 0
        %2604 = vmatpush.bf16.msra.mxu0 0
        %2605 = vmatpush.bf16.msra.mxu0 0
        %2606 = vmatpush.bf16.msra.mxu0 0
        %2607 = vmatpush.bf16.msra.mxu0 0
        %2608 = vmatpush.bf16.msra.mxu0 %v2599
        %2609 = vmatpush.bf16.msra.mxu0 %v2598
        %2610 = vmatmul.bf16.gmra.mxu0 %v2567
        %v2611 = vpop.f32.mrf.mxu0
        %v2612 = vadd.f32 %v2588, %v2611
        %v2613 = vpop.f32.mrf.mxu0
        %2614 = vdwg.mxu0
        %v2615 = vld [vmem:[#allocation11] sm:$0xf]
        %v2616 = vld [vmem:[#allocation11 + $0x4] sm:$0xf]
        %v2617 = vld [vmem:[#allocation11 + $0x8] sm:$0xf]
        %v2618 = vld [vmem:[#allocation11 + $0xc] sm:$0xf]
        %v2619 = vld [vmem:[#allocation13] sm:$0x1]
        %v2621 = vperm.slane %v2619, 0
        %v2627 = vunpack.c.l.b16 %v2615
        %v2628 = vunpack.c.l.b16 %v2616
        %v2629 = vunpack.c.l.b16 %v2617
        %v2630 = vunpack.c.l.b16 %v2618
        %v2631 = vpack.c.b16 %v2628, %v2627
        %v2632 = vpack.c.b16 %v2630, %v2629
        %2635 = vmatpush.bf16.msra.mxu0 0
        %2636 = vmatpush.bf16.msra.mxu0 0
        %2637 = vmatpush.bf16.msra.mxu0 0
        %2638 = vmatpush.bf16.msra.mxu0 0
        %2639 = vmatpush.bf16.msra.mxu0 0
        %2640 = vmatpush.bf16.msra.mxu0 0
        %2641 = vmatpush.bf16.msra.mxu0 %v2632
        %2642 = vmatpush.bf16.msra.mxu0 %v2631
        %2643 = vmatmul.bf16.gmra.mxu0 %v2567
        %v2644 = vpop.f32.mrf.mxu0
        %v2645 = vadd.f32 %v2621, %v2644
        %v2646 = vpop.f32.mrf.mxu0
        %2647 = vdwg.mxu0
        %v2648 = vmul.f32 %v2579, 0.35355338
        %v2649 = vpack.c.bf16 %v2648, %v2648
        %v2650 = vpack.c.bf16 %v2612, %v2612
        %v2651 = vpack.c.bf16 %v2645, %v2645
        %vm2652 = vcmask 64512
        %v2654 = vsel %vm2652, %v2649, 0
        %v2657 = vsel %vm2652, %v2650, 0
        %2659 = vmatpush.bf16.xpose.msra.mxu0 0
        %2660 = vmatpush.bf16.xpose.msra.mxu0 0
        %2661 = vmatpush.bf16.xpose.msra.mxu0 0
        %2662 = vmatpush.bf16.xpose.msra.mxu0 0
        %2663 = vmatpush.bf16.xpose.msra.mxu0 0
        %2664 = vmatpush.bf16.xpose.msra.mxu0 0
        %2665 = vmatpush.bf16.xpose.msra.mxu0 0
        %2666 = vmatpush.bf16.xpose.msra.mxu0 %v2657
        %2667 = vmatmul.bf16.gmra.mxu0 %v2654
        %v2668 = vpop.f32.mrf.mxu0
        %v2669 = vadd.f32 0.0, %v2668
        %v2670 = vpop.f32.mrf.mxu0
        %2671 = vdwg.mxu0
        %v2672 = vsel %vm2652, %v2669, -inf
        %2673 = vmax.xlane.f32.xlu0 %v2672
        %v2674 = vpop.xlane.xlu0 %2673
        %v2675 = vsub.f32 %v2669, %v2674
        %v2676 = vmul.f32 %v2675, 1.442695
        %v2677 = vpow.pop %v2676
        %v2678 = vsel %vm2652, %v2677, 0.0
        %2679 = vadd.xlane.f32.xlu0 %v2678
        %v2680 = vpop.xlane.xlu0 %2679
        %v2681 = vrcp.pop %v2680
        %v2682 = vmul.f32 %v2677, %v2681
        %v2683 = vpack.c.bf16 %v2682, %v2682
        %v2685 = vsel %vm2652, %v2683, 0
        %v2688 = vsel %vm1054, %v2651, 0
        %2690 = vmatpush.bf16.msra.mxu0 0
        %2691 = vmatpush.bf16.msra.mxu0 0
        %2692 = vmatpush.bf16.msra.mxu0 0
        %2693 = vmatpush.bf16.msra.mxu0 0
        %2694 = vmatpush.bf16.msra.mxu0 0
        %2695 = vmatpush.bf16.msra.mxu0 0
        %2696 = vmatpush.bf16.msra.mxu0 0
        %2697 = vmatpush.bf16.msra.mxu0 %v2688
        %2698 = vmatmul.bf16.gmra.mxu0 %v2685
        %v2699 = vpop.f32.mrf.mxu0
        %v2700 = vadd.f32 0.0, %v2699
        %v2701 = vpop.f32.mrf.mxu0
        %2702 = vdwg.mxu0
        %2704 = vrot.lane.b32.xlu0 %v2649, 120
        %v2705 = vpop.permute.xlu0 %2704
        %2707 = vrot.lane.b32.xlu0 %v2650, 120
        %v2708 = vpop.permute.xlu0 %2707
        %v2710 = vsel %vm2652, %v2705, 0
        %v2713 = vsel %vm2652, %v2708, 0
        %2715 = vmatpush.bf16.xpose.msra.mxu0 0
        %2716 = vmatpush.bf16.xpose.msra.mxu0 0
        %2717 = vmatpush.bf16.xpose.msra.mxu0 0
        %2718 = vmatpush.bf16.xpose.msra.mxu0 0
        %2719 = vmatpush.bf16.xpose.msra.mxu0 0
        %2720 = vmatpush.bf16.xpose.msra.mxu0 0
        %2721 = vmatpush.bf16.xpose.msra.mxu0 0
        %2722 = vmatpush.bf16.xpose.msra.mxu0 %v2713
        %2723 = vmatmul.bf16.gmra.mxu0 %v2710
        %v2724 = vpop.f32.mrf.mxu0
        %v2725 = vadd.f32 0.0, %v2724
        %v2726 = vpop.f32.mrf.mxu0
        %2727 = vdwg.mxu0
        %v2728 = vsel %vm2652, %v2725, -inf
        %2729 = vmax.xlane.f32.xlu0 %v2728
        %v2730 = vpop.xlane.xlu0 %2729
        %v2731 = vsub.f32 %v2725, %v2730
        %v2732 = vmul.f32 %v2731, 1.442695
        %v2733 = vpow.pop %v2732
        %v2734 = vsel %vm2652, %v2733, 0.0
        %2735 = vadd.xlane.f32.xlu0 %v2734
        %v2736 = vpop.xlane.xlu0 %2735
        %v2737 = vrcp.pop %v2736
        %v2738 = vmul.f32 %v2733, %v2737
        %v2739 = vpack.c.bf16 %v2738, %v2738
        %2741 = vrot.lane.b32.xlu0 %v2651, 120
        %v2742 = vpop.permute.xlu0 %2741
        %v2744 = vsel %vm2652, %v2739, 0
        %v2747 = vsel %vm1054, %v2742, 0
        %2749 = vmatpush.bf16.msra.mxu0 0
        %2750 = vmatpush.bf16.msra.mxu0 0
        %2751 = vmatpush.bf16.msra.mxu0 0
        %2752 = vmatpush.bf16.msra.mxu0 0
        %2753 = vmatpush.bf16.msra.mxu0 0
        %2754 = vmatpush.bf16.msra.mxu0 0
        %2755 = vmatpush.bf16.msra.mxu0 0
        %2756 = vmatpush.bf16.msra.mxu0 %v2747
        %2757 = vmatmul.bf16.gmra.mxu0 %v2744
        %v2758 = vpop.f32.mrf.mxu0
        %v2759 = vadd.f32 0.0, %v2758
        %v2760 = vpop.f32.mrf.mxu0
        %2761 = vdwg.mxu0
        %2762 = vrot.lane.b32.xlu0 %v2649, 112
        %v2763 = vpop.permute.xlu0 %2762
        %2764 = vrot.lane.b32.xlu0 %v2650, 112
        %v2765 = vpop.permute.xlu0 %2764
        %v2767 = vsel %vm2652, %v2763, 0
        %v2770 = vsel %vm2652, %v2765, 0
        %2772 = vmatpush.bf16.xpose.msra.mxu0 0
        %2773 = vmatpush.bf16.xpose.msra.mxu0 0
        %2774 = vmatpush.bf16.xpose.msra.mxu0 0
        %2775 = vmatpush.bf16.xpose.msra.mxu0 0
        %2776 = vmatpush.bf16.xpose.msra.mxu0 0
        %2777 = vmatpush.bf16.xpose.msra.mxu0 0
        %2778 = vmatpush.bf16.xpose.msra.mxu0 0
        %2779 = vmatpush.bf16.xpose.msra.mxu0 %v2770
        %2780 = vmatmul.bf16.gmra.mxu0 %v2767
        %v2781 = vpop.f32.mrf.mxu0
        %v2782 = vadd.f32 0.0, %v2781
        %v2783 = vpop.f32.mrf.mxu0
        %2784 = vdwg.mxu0
        %v2785 = vsel %vm2652, %v2782, -inf
        %2786 = vmax.xlane.f32.xlu0 %v2785
        %v2787 = vpop.xlane.xlu0 %2786
        %v2788 = vsub.f32 %v2782, %v2787
        %v2789 = vmul.f32 %v2788, 1.442695
        %v2790 = vpow.pop %v2789
        %v2791 = vsel %vm2652, %v2790, 0.0
        %2792 = vadd.xlane.f32.xlu0 %v2791
        %v2793 = vpop.xlane.xlu0 %2792
        %v2794 = vrcp.pop %v2793
        %v2795 = vmul.f32 %v2790, %v2794
        %v2796 = vpack.c.bf16 %v2795, %v2795
        %2797 = vrot.lane.b32.xlu0 %v2651, 112
        %v2798 = vpop.permute.xlu0 %2797
        %v2800 = vsel %vm2652, %v2796, 0
        %v2803 = vsel %vm1054, %v2798, 0
        %2805 = vmatpush.bf16.msra.mxu0 0
        %2806 = vmatpush.bf16.msra.mxu0 0
        %2807 = vmatpush.bf16.msra.mxu0 0
        %2808 = vmatpush.bf16.msra.mxu0 0
        %2809 = vmatpush.bf16.msra.mxu0 0
        %2810 = vmatpush.bf16.msra.mxu0 0
        %2811 = vmatpush.bf16.msra.mxu0 0
        %2812 = vmatpush.bf16.msra.mxu0 %v2803
        %2813 = vmatmul.bf16.gmra.mxu0 %v2800
        %v2814 = vpop.f32.mrf.mxu0
        %v2815 = vadd.f32 0.0, %v2814
        %v2816 = vpop.f32.mrf.mxu0
        %2817 = vdwg.mxu0
        %2818 = vrot.lane.b32.xlu0 %v2649, 104
        %v2819 = vpop.permute.xlu0 %2818
        %2820 = vrot.lane.b32.xlu0 %v2650, 104
        %v2821 = vpop.permute.xlu0 %2820
        %v2823 = vsel %vm2652, %v2819, 0
        %v2826 = vsel %vm2652, %v2821, 0
        %2828 = vmatpush.bf16.xpose.msra.mxu0 0
        %2829 = vmatpush.bf16.xpose.msra.mxu0 0
        %2830 = vmatpush.bf16.xpose.msra.mxu0 0
        %2831 = vmatpush.bf16.xpose.msra.mxu0 0
        %2832 = vmatpush.bf16.xpose.msra.mxu0 0
        %2833 = vmatpush.bf16.xpose.msra.mxu0 0
        %2834 = vmatpush.bf16.xpose.msra.mxu0 0
        %2835 = vmatpush.bf16.xpose.msra.mxu0 %v2826
        %2836 = vmatmul.bf16.gmra.mxu0 %v2823
        %v2837 = vpop.f32.mrf.mxu0
        %v2838 = vadd.f32 0.0, %v2837
        %v2839 = vpop.f32.mrf.mxu0
        %2840 = vdwg.mxu0
        %v2841 = vsel %vm2652, %v2838, -inf
        %2842 = vmax.xlane.f32.xlu0 %v2841
        %v2843 = vpop.xlane.xlu0 %2842
        %v2844 = vsub.f32 %v2838, %v2843
        %v2845 = vmul.f32 %v2844, 1.442695
        %v2846 = vpow.pop %v2845
        %v2847 = vsel %vm2652, %v2846, 0.0
        %2848 = vadd.xlane.f32.xlu0 %v2847
        %v2849 = vpop.xlane.xlu0 %2848
        %v2850 = vrcp.pop %v2849
        %v2851 = vmul.f32 %v2846, %v2850
        %v2852 = vpack.c.bf16 %v2851, %v2851
        %2853 = vrot.lane.b32.xlu0 %v2651, 104
        %v2854 = vpop.permute.xlu0 %2853
        %v2856 = vsel %vm2652, %v2852, 0
        %v2859 = vsel %vm1054, %v2854, 0
        %2861 = vmatpush.bf16.msra.mxu0 0
        %2862 = vmatpush.bf16.msra.mxu0 0
        %2863 = vmatpush.bf16.msra.mxu0 0
        %2864 = vmatpush.bf16.msra.mxu0 0
        %2865 = vmatpush.bf16.msra.mxu0 0
        %2866 = vmatpush.bf16.msra.mxu0 0
        %2867 = vmatpush.bf16.msra.mxu0 0
        %2868 = vmatpush.bf16.msra.mxu0 %v2859
        %2869 = vmatmul.bf16.gmra.mxu0 %v2856
        %v2870 = vpop.f32.mrf.mxu0
        %v2871 = vadd.f32 0.0, %v2870
        %v2872 = vpop.f32.mrf.mxu0
        %2873 = vdwg.mxu0
        %2875 = vrot.lane.b32.xlu0 %v2759, 8
        %v2876 = vpop.permute.xlu0 %2875
        %2879 = vrot.lane.b32.xlu0 %v2815, 16
        %v2880 = vpop.permute.xlu0 %2879
        %2883 = vrot.lane.b32.xlu0 %v2871, 24
        %v2884 = vpop.permute.xlu0 %2883
        %v2886 = vsel %vm2652, %v2700, %v2876
        %vm2887 = vcmask 130048
        %v2888 = vsel %vm2887, %v2886, %v2880
        %vm2889 = vcmask 195584
        %v2890 = vsel %vm2889, %v2888, %v2884
        %v2891 = vpack.c.bf16 %v2890, %v2890
        %v2892 = vld [vmem:[#allocation14] sm:$0xf]
        %v2893 = vld [vmem:[#allocation14 + $0x4] sm:$0xf]
        %v2894 = vld [vmem:[#allocation14 + $0x8] sm:$0xf]
        %v2895 = vld [vmem:[#allocation14 + $0xc] sm:$0xf]
        %v2896 = vld [vmem:[#allocation16] sm:$0x1]
        %v2898 = vperm.slane %v2896, 0
        %v2904 = vunpack.c.l.b16 %v2892
        %v2905 = vunpack.c.l.b16 %v2893
        %v2906 = vunpack.c.l.b16 %v2894
        %v2907 = vunpack.c.l.b16 %v2895
        %v2908 = vpack.c.b16 %v2905, %v2904
        %v2909 = vpack.c.b16 %v2907, %v2906
        %v2913 = vsel %vm1086, %v2891, 0
        %2915 = vmatpush.bf16.msra.mxu0 0
        %2916 = vmatpush.bf16.msra.mxu0 0
        %2917 = vmatpush.bf16.msra.mxu0 0
        %2918 = vmatpush.bf16.msra.mxu0 0
        %2919 = vmatpush.bf16.msra.mxu0 0
        %2920 = vmatpush.bf16.msra.mxu0 0
        %2921 = vmatpush.bf16.msra.mxu0 %v2909
        %2922 = vmatpush.bf16.msra.mxu0 %v2908
        %2923 = vmatmul.bf16.gmra.mxu0 %v2913
        %v2924 = vpop.f32.mrf.mxu0
        %v2925 = vadd.f32 %v2898, %v2924
        %v2926 = vpop.f32.mrf.mxu0
        %2927 = vdwg.mxu0
        %v2928 = vadd.f32 %v2544, %v2925
        %v2929 = vld [vmem:[#allocation17] sm:$0x1]
        %v2930 = vld [vmem:[#allocation19] sm:$0x1]
        %v2931 = vsel %vm1086, %v2928, 0.0
        %2932 = vadd.xlane.f32.xlu0 %v2931
        %v2933 = vpop.xlane.xlu0 %2932
        %v2934 = vrcp.pop 32.0
        %v2935 = vmul.f32 32.0, %v2934
        %v2936 = vsub.f32 1.0, %v2935
        %v2937 = vmul.f32 %v2934, %v2936
        %v2938 = vadd.f32 %v2934, %v2937
        %vm2939 = vweird.f32 %v2934
        %v2940 = vsel %vm2939, %v2934, %v2938
        %v2941 = vmul.f32 %v2933, %v2940
        %v2942 = vsub.f32 %v2928, %v2941
        %v2943 = vmul.f32 %v2942, %v2942
        %v2944 = vsel %vm1086, %v2943, 0.0
        %2945 = vadd.xlane.f32.xlu0 %v2944
        %v2946 = vpop.xlane.xlu0 %2945
        %v2947 = vmul.f32 %v2946, %v2940
        %v2948 = vadd.f32 %v2947, 1e-05
        %v2949 = vrsqrt.pop %v2948
        %v2950 = vmul.f32 %v2949, %v2948
        %v2951 = vmul.f32 %v2950, %v2949
        %v2952 = vmul.f32 0.5, %v2951
        %v2953 = vsub.f32 1.5, %v2952
        %v2954 = vmul.f32 %v2949, %v2953
        %vm2955 = vweird.f32 %v2948
        %vm2956 = vweird.f32 %v2949
        %vm2957 = vmor %vm2955, %vm2956
        %v2958 = vsel %vm2957, %v2949, %v2954
        %v2959 = vmul.f32 %v2942, %v2958
        %v2961 = vperm.slane %v2929, 0
        %v2963 = vmul.f32 %v2959, %v2961
        %v2965 = vperm.slane %v2930, 0
        %v2967 = vadd.f32 %v2963, %v2965
        %v2968 = vpack.c.bf16 %v2967, %v2967
        %v2969 = vld [vmem:[#allocation20] sm:$0xf]
        %v2970 = vld [vmem:[#allocation20 + $0x4] sm:$0xf]
        %v2971 = vld [vmem:[#allocation20 + $0x8] sm:$0xf]
        %v2972 = vld [vmem:[#allocation20 + $0xc] sm:$0xf]
        %v2973 = vld [vmem:[#allocation22] sm:$0x1]
        %v2975 = vperm.slane %v2973, 0
        %v2981 = vunpack.c.l.b16 %v2969
        %v2982 = vunpack.c.l.b16 %v2970
        %v2983 = vunpack.c.l.b16 %v2971
        %v2984 = vunpack.c.l.b16 %v2972
        %v2985 = vpack.c.b16 %v2982, %v2981
        %v2986 = vpack.c.b16 %v2984, %v2983
        %v2990 = vsel %vm1086, %v2968, 0
        %2992 = vmatpush.bf16.msra.mxu0 0
        %2993 = vmatpush.bf16.msra.mxu0 0
        %2994 = vmatpush.bf16.msra.mxu0 0
        %2995 = vmatpush.bf16.msra.mxu0 0
        %2996 = vmatpush.bf16.msra.mxu0 0
        %2997 = vmatpush.bf16.msra.mxu0 0
        %2998 = vmatpush.bf16.msra.mxu0 %v2986
        %2999 = vmatpush.bf16.msra.mxu0 %v2985
        %3000 = vmatmul.bf16.gmra.mxu0 %v2990
        %v3001 = vpop.f32.mrf.mxu0
        %v3002 = vadd.f32 %v2975, %v3001
        %v3003 = vpop.f32.mrf.mxu0
        %3004 = vdwg.mxu0
        %v3005 = vmax.f32 %v3002, 0.0
        %v3006 = vpack.c.bf16 %v3005, %v3005
        %v3007 = vld [vmem:[%s19] sm:$0xf]
        %v3008 = vld [vmem:[%s19 + $0x4] sm:$0xf]
        %v3009 = vld [vmem:[%s19 + $0x8] sm:$0xf]
        %v3010 = vld [vmem:[%s19 + $0xc] sm:$0xf]
        %v3011 = vld [vmem:[%s19 + $0x10] sm:$0xf]
        %v3012 = vld [vmem:[%s19 + $0x14] sm:$0xf]
        %v3013 = vld [vmem:[%s19 + $0x18] sm:$0xf]
        %v3014 = vld [vmem:[%s19 + $0x1c] sm:$0xf]
        %v3015 = vld [vmem:[%s19 + $0x20] sm:$0xf]
        %v3016 = vld [vmem:[%s19 + $0x24] sm:$0xf]
        %v3017 = vld [vmem:[%s19 + $0x28] sm:$0xf]
        %v3018 = vld [vmem:[%s19 + $0x2c] sm:$0xf]
        %v3019 = vld [vmem:[%s19 + $0x30] sm:$0xf]
        %v3020 = vld [vmem:[%s19 + $0x34] sm:$0xf]
        %v3021 = vld [vmem:[%s19 + $0x38] sm:$0xf]
        %v3022 = vld [vmem:[%s19 + $0x3c] sm:$0xf]
        %v3023 = vld [vmem:[#allocation23] sm:$0x1]
        %v3025 = vperm.slane %v3023, 0
        %v3043 = vunpack.c.l.b16 %v3007
        %v3044 = vunpack.c.l.b16 %v3008
        %v3045 = vunpack.c.l.b16 %v3009
        %v3046 = vunpack.c.l.b16 %v3010
        %v3047 = vunpack.c.l.b16 %v3011
        %v3048 = vunpack.c.l.b16 %v3012
        %v3049 = vunpack.c.l.b16 %v3013
        %v3050 = vunpack.c.l.b16 %v3014
        %v3051 = vunpack.c.l.b16 %v3015
        %v3052 = vunpack.c.l.b16 %v3016
        %v3053 = vunpack.c.l.b16 %v3017
        %v3054 = vunpack.c.l.b16 %v3018
        %v3055 = vunpack.c.l.b16 %v3019
        %v3056 = vunpack.c.l.b16 %v3020
        %v3057 = vunpack.c.l.b16 %v3021
        %v3058 = vunpack.c.l.b16 %v3022
        %v3059 = vpack.c.b16 %v3044, %v3043
        %v3060 = vpack.c.b16 %v3046, %v3045
        %v3061 = vpack.c.b16 %v3048, %v3047
        %v3062 = vpack.c.b16 %v3050, %v3049
        %v3063 = vpack.c.b16 %v3052, %v3051
        %v3064 = vpack.c.b16 %v3054, %v3053
        %v3065 = vpack.c.b16 %v3056, %v3055
        %v3066 = vpack.c.b16 %v3058, %v3057
        %3075 = vmatpush.bf16.msra.mxu0 %v3066
        %3076 = vmatpush.bf16.msra.mxu0 %v3065
        %3077 = vmatpush.bf16.msra.mxu0 %v3064
        %3078 = vmatpush.bf16.msra.mxu0 %v3063
        %3079 = vmatpush.bf16.msra.mxu0 %v3062
        %3080 = vmatpush.bf16.msra.mxu0 %v3061
        %3081 = vmatpush.bf16.msra.mxu0 %v3060
        %3082 = vmatpush.bf16.msra.mxu0 %v3059
        %3083 = vmatmul.bf16.gmra.mxu0 %v3006
        %v3084 = vpop.f32.mrf.mxu0
        %v3085 = vadd.f32 %v3025, %v3084
        %v3086 = vpop.f32.mrf.mxu0
        %3087 = vdwg.mxu0
        %v3088 = vadd.f32 %v2967, %v3085
        %v3089 = vld [vmem:[%s21] sm:$0x1]
        %v3090 = vld [vmem:[%s22] sm:$0x1]
        %v3091 = vsel %vm1086, %v3088, 0.0
        %3092 = vadd.xlane.f32.xlu0 %v3091
        %v3093 = vpop.xlane.xlu0 %3092
        %v3094 = vmul.f32 %v3093, %v2940
        %v3095 = vsub.f32 %v3088, %v3094
        %v3096 = vmul.f32 %v3095, %v3095
        %v3097 = vsel %vm1086, %v3096, 0.0
        %3098 = vadd.xlane.f32.xlu0 %v3097
        %v3099 = vpop.xlane.xlu0 %3098
        %v3100 = vmul.f32 %v3099, %v2940
        %v3101 = vadd.f32 %v3100, 1e-05
        %v3102 = vrsqrt.pop %v3101
        %v3103 = vmul.f32 %v3102, %v3101
        %v3104 = vmul.f32 %v3103, %v3102
        %v3105 = vmul.f32 0.5, %v3104
        %v3106 = vsub.f32 1.5, %v3105
        %v3107 = vmul.f32 %v3102, %v3106
        %vm3108 = vweird.f32 %v3101
        %vm3109 = vweird.f32 %v3102
        %vm3110 = vmor %vm3108, %vm3109
        %v3111 = vsel %vm3110, %v3102, %v3107
        %v3112 = vmul.f32 %v3095, %v3111
        %v3114 = vperm.slane %v3089, 0
        %v3116 = vmul.f32 %v3112, %v3114
        %v3118 = vperm.slane %v3090, 0
        %v3120 = vadd.f32 %v3116, %v3118
        %v3121 = vpack.c.bf16 %v3120, %v3120
        %s3122 = scalar_lea.vmem %s7, 16
        %v3123 = vld [vmem:[%s3122] sm:$0xf]
        %v3124 = vld [vmem:[%s3122 + $0x4] sm:$0xf]
        %v3125 = vld [vmem:[%s3122 + $0x8] sm:$0xf]
        %v3126 = vld [vmem:[%s3122 + $0xc] sm:$0xf]
        %s3127 = scalar_lea.vmem [#allocation7], 1
        %v3128 = vld [vmem:[%s3127] sm:$0x1]
        %v3130 = vperm.slane %v3128, 0
        %v3136 = vunpack.c.l.b16 %v3123
        %v3137 = vunpack.c.l.b16 %v3124
        %v3138 = vunpack.c.l.b16 %v3125
        %v3139 = vunpack.c.l.b16 %v3126
        %v3140 = vpack.c.b16 %v3137, %v3136
        %v3141 = vpack.c.b16 %v3139, %v3138
        %v3145 = vsel %vm1086, %v3121, 0
        %3147 = vmatpush.bf16.msra.mxu0 0
        %3148 = vmatpush.bf16.msra.mxu0 0
        %3149 = vmatpush.bf16.msra.mxu0 0
        %3150 = vmatpush.bf16.msra.mxu0 0
        %3151 = vmatpush.bf16.msra.mxu0 0
        %3152 = vmatpush.bf16.msra.mxu0 0
        %3153 = vmatpush.bf16.msra.mxu0 %v3141
        %3154 = vmatpush.bf16.msra.mxu0 %v3140
        %3155 = vmatmul.bf16.gmra.mxu0 %v3145
        %v3156 = vpop.f32.mrf.mxu0
        %v3157 = vadd.f32 %v3130, %v3156
        %v3158 = vpop.f32.mrf.mxu0
        %3159 = vdwg.mxu0
        %s3160 = scalar_lea.vmem [#allocation8], 16
        %v3161 = vld [vmem:[%s3160] sm:$0xf]
        %v3162 = vld [vmem:[%s3160 + $0x4] sm:$0xf]
        %v3163 = vld [vmem:[%s3160 + $0x8] sm:$0xf]
        %v3164 = vld [vmem:[%s3160 + $0xc] sm:$0xf]
        %s3165 = scalar_lea.vmem [#allocation10], 1
        %v3166 = vld [vmem:[%s3165] sm:$0x1]
        %v3168 = vperm.slane %v3166, 0
        %v3174 = vunpack.c.l.b16 %v3161
        %v3175 = vunpack.c.l.b16 %v3162
        %v3176 = vunpack.c.l.b16 %v3163
        %v3177 = vunpack.c.l.b16 %v3164
        %v3178 = vpack.c.b16 %v3175, %v3174
        %v3179 = vpack.c.b16 %v3177, %v3176
        %3182 = vmatpush.bf16.msra.mxu0 0
        %3183 = vmatpush.bf16.msra.mxu0 0
        %3184 = vmatpush.bf16.msra.mxu0 0
        %3185 = vmatpush.bf16.msra.mxu0 0
        %3186 = vmatpush.bf16.msra.mxu0 0
        %3187 = vmatpush.bf16.msra.mxu0 0
        %3188 = vmatpush.bf16.msra.mxu0 %v3179
        %3189 = vmatpush.bf16.msra.mxu0 %v3178
        %3190 = vmatmul.bf16.gmra.mxu0 %v3145
        %v3191 = vpop.f32.mrf.mxu0
        %v3192 = vadd.f32 %v3168, %v3191
        %v3193 = vpop.f32.mrf.mxu0
        %3194 = vdwg.mxu0
        %s3195 = scalar_lea.vmem [#allocation11], 16
        %v3196 = vld [vmem:[%s3195] sm:$0xf]
        %v3197 = vld [vmem:[%s3195 + $0x4] sm:$0xf]
        %v3198 = vld [vmem:[%s3195 + $0x8] sm:$0xf]
        %v3199 = vld [vmem:[%s3195 + $0xc] sm:$0xf]
        %s3200 = scalar_lea.vmem [#allocation13], 1
        %v3201 = vld [vmem:[%s3200] sm:$0x1]
        %v3203 = vperm.slane %v3201, 0
        %v3209 = vunpack.c.l.b16 %v3196
        %v3210 = vunpack.c.l.b16 %v3197
        %v3211 = vunpack.c.l.b16 %v3198
        %v3212 = vunpack.c.l.b16 %v3199
        %v3213 = vpack.c.b16 %v3210, %v3209
        %v3214 = vpack.c.b16 %v3212, %v3211
        %3217 = vmatpush.bf16.msra.mxu0 0
        %3218 = vmatpush.bf16.msra.mxu0 0
        %3219 = vmatpush.bf16.msra.mxu0 0
        %3220 = vmatpush.bf16.msra.mxu0 0
        %3221 = vmatpush.bf16.msra.mxu0 0
        %3222 = vmatpush.bf16.msra.mxu0 0
        %3223 = vmatpush.bf16.msra.mxu0 %v3214
        %3224 = vmatpush.bf16.msra.mxu0 %v3213
        %3225 = vmatmul.bf16.gmra.mxu0 %v3145
        %v3226 = vpop.f32.mrf.mxu0
        %v3227 = vadd.f32 %v3203, %v3226
        %v3228 = vpop.f32.mrf.mxu0
        %3229 = vdwg.mxu0
        %v3230 = vmul.f32 %v3157, 0.35355338
        %v3231 = vpack.c.bf16 %v3230, %v3230
        %v3232 = vpack.c.bf16 %v3192, %v3192
        %v3233 = vpack.c.bf16 %v3227, %v3227
        %v3235 = vsel %vm2652, %v3231, 0
        %v3238 = vsel %vm2652, %v3232, 0
        %3240 = vmatpush.bf16.xpose.msra.mxu0 0
        %3241 = vmatpush.bf16.xpose.msra.mxu0 0
        %3242 = vmatpush.bf16.xpose.msra.mxu0 0
        %3243 = vmatpush.bf16.xpose.msra.mxu0 0
        %3244 = vmatpush.bf16.xpose.msra.mxu0 0
        %3245 = vmatpush.bf16.xpose.msra.mxu0 0
        %3246 = vmatpush.bf16.xpose.msra.mxu0 0
        %3247 = vmatpush.bf16.xpose.msra.mxu0 %v3238
        %3248 = vmatmul.bf16.gmra.mxu0 %v3235
        %v3249 = vpop.f32.mrf.mxu0
        %v3250 = vadd.f32 0.0, %v3249
        %v3251 = vpop.f32.mrf.mxu0
        %3252 = vdwg.mxu0
        %v3253 = vsel %vm2652, %v3250, -inf
        %3254 = vmax.xlane.f32.xlu0 %v3253
        %v3255 = vpop.xlane.xlu0 %3254
        %v3256 = vsub.f32 %v3250, %v3255
        %v3257 = vmul.f32 %v3256, 1.442695
        %v3258 = vpow.pop %v3257
        %v3259 = vsel %vm2652, %v3258, 0.0
        %3260 = vadd.xlane.f32.xlu0 %v3259
        %v3261 = vpop.xlane.xlu0 %3260
        %v3262 = vrcp.pop %v3261
        %v3263 = vmul.f32 %v3258, %v3262
        %v3264 = vpack.c.bf16 %v3263, %v3263
        %v3266 = vsel %vm2652, %v3264, 0
        %v3269 = vsel %vm1054, %v3233, 0
        %3271 = vmatpush.bf16.msra.mxu0 0
        %3272 = vmatpush.bf16.msra.mxu0 0
        %3273 = vmatpush.bf16.msra.mxu0 0
        %3274 = vmatpush.bf16.msra.mxu0 0
        %3275 = vmatpush.bf16.msra.mxu0 0
        %3276 = vmatpush.bf16.msra.mxu0 0
        %3277 = vmatpush.bf16.msra.mxu0 0
        %3278 = vmatpush.bf16.msra.mxu0 %v3269
        %3279 = vmatmul.bf16.gmra.mxu0 %v3266
        %v3280 = vpop.f32.mrf.mxu0
        %v3281 = vadd.f32 0.0, %v3280
        %v3282 = vpop.f32.mrf.mxu0
        %3283 = vdwg.mxu0
        %3285 = vrot.lane.b32.xlu0 %v3231, 120
        %v3286 = vpop.permute.xlu0 %3285
        %3288 = vrot.lane.b32.xlu0 %v3232, 120
        %v3289 = vpop.permute.xlu0 %3288
        %v3291 = vsel %vm2652, %v3286, 0
        %v3294 = vsel %vm2652, %v3289, 0
        %3296 = vmatpush.bf16.xpose.msra.mxu0 0
        %3297 = vmatpush.bf16.xpose.msra.mxu0 0
        %3298 = vmatpush.bf16.xpose.msra.mxu0 0
        %3299 = vmatpush.bf16.xpose.msra.mxu0 0
        %3300 = vmatpush.bf16.xpose.msra.mxu0 0
        %3301 = vmatpush.bf16.xpose.msra.mxu0 0
        %3302 = vmatpush.bf16.xpose.msra.mxu0 0
        %3303 = vmatpush.bf16.xpose.msra.mxu0 %v3294
        %3304 = vmatmul.bf16.gmra.mxu0 %v3291
        %v3305 = vpop.f32.mrf.mxu0
        %v3306 = vadd.f32 0.0, %v3305
        %v3307 = vpop.f32.mrf.mxu0
        %3308 = vdwg.mxu0
        %v3309 = vsel %vm2652, %v3306, -inf
        %3310 = vmax.xlane.f32.xlu0 %v3309
        %v3311 = vpop.xlane.xlu0 %3310
        %v3312 = vsub.f32 %v3306, %v3311
        %v3313 = vmul.f32 %v3312, 1.442695
        %v3314 = vpow.pop %v3313
        %v3315 = vsel %vm2652, %v3314, 0.0
        %3316 = vadd.xlane.f32.xlu0 %v3315
        %v3317 = vpop.xlane.xlu0 %3316
        %v3318 = vrcp.pop %v3317
        %v3319 = vmul.f32 %v3314, %v3318
        %v3320 = vpack.c.bf16 %v3319, %v3319
        %3322 = vrot.lane.b32.xlu0 %v3233, 120
        %v3323 = vpop.permute.xlu0 %3322
        %v3325 = vsel %vm2652, %v3320, 0
        %v3328 = vsel %vm1054, %v3323, 0
        %3330 = vmatpush.bf16.msra.mxu0 0
        %3331 = vmatpush.bf16.msra.mxu0 0
        %3332 = vmatpush.bf16.msra.mxu0 0
        %3333 = vmatpush.bf16.msra.mxu0 0
        %3334 = vmatpush.bf16.msra.mxu0 0
        %3335 = vmatpush.bf16.msra.mxu0 0
        %3336 = vmatpush.bf16.msra.mxu0 0
        %3337 = vmatpush.bf16.msra.mxu0 %v3328
        %3338 = vmatmul.bf16.gmra.mxu0 %v3325
        %v3339 = vpop.f32.mrf.mxu0
        %v3340 = vadd.f32 0.0, %v3339
        %v3341 = vpop.f32.mrf.mxu0
        %3342 = vdwg.mxu0
        %3343 = vrot.lane.b32.xlu0 %v3231, 112
        %v3344 = vpop.permute.xlu0 %3343
        %3345 = vrot.lane.b32.xlu0 %v3232, 112
        %v3346 = vpop.permute.xlu0 %3345
        %v3348 = vsel %vm2652, %v3344, 0
        %v3351 = vsel %vm2652, %v3346, 0
        %3353 = vmatpush.bf16.xpose.msra.mxu0 0
        %3354 = vmatpush.bf16.xpose.msra.mxu0 0
        %3355 = vmatpush.bf16.xpose.msra.mxu0 0
        %3356 = vmatpush.bf16.xpose.msra.mxu0 0
        %3357 = vmatpush.bf16.xpose.msra.mxu0 0
        %3358 = vmatpush.bf16.xpose.msra.mxu0 0
        %3359 = vmatpush.bf16.xpose.msra.mxu0 0
        %3360 = vmatpush.bf16.xpose.msra.mxu0 %v3351
        %3361 = vmatmul.bf16.gmra.mxu0 %v3348
        %v3362 = vpop.f32.mrf.mxu0
        %v3363 = vadd.f32 0.0, %v3362
        %v3364 = vpop.f32.mrf.mxu0
        %3365 = vdwg.mxu0
        %v3366 = vsel %vm2652, %v3363, -inf
        %3367 = vmax.xlane.f32.xlu0 %v3366
        %v3368 = vpop.xlane.xlu0 %3367
        %v3369 = vsub.f32 %v3363, %v3368
        %v3370 = vmul.f32 %v3369, 1.442695
        %v3371 = vpow.pop %v3370
        %v3372 = vsel %vm2652, %v3371, 0.0
        %3373 = vadd.xlane.f32.xlu0 %v3372
        %v3374 = vpop.xlane.xlu0 %3373
        %v3375 = vrcp.pop %v3374
        %v3376 = vmul.f32 %v3371, %v3375
        %v3377 = vpack.c.bf16 %v3376, %v3376
        %3378 = vrot.lane.b32.xlu0 %v3233, 112
        %v3379 = vpop.permute.xlu0 %3378
        %v3381 = vsel %vm2652, %v3377, 0
        %v3384 = vsel %vm1054, %v3379, 0
        %3386 = vmatpush.bf16.msra.mxu0 0
        %3387 = vmatpush.bf16.msra.mxu0 0
        %3388 = vmatpush.bf16.msra.mxu0 0
        %3389 = vmatpush.bf16.msra.mxu0 0
        %3390 = vmatpush.bf16.msra.mxu0 0
        %3391 = vmatpush.bf16.msra.mxu0 0
        %3392 = vmatpush.bf16.msra.mxu0 0
        %3393 = vmatpush.bf16.msra.mxu0 %v3384
        %3394 = vmatmul.bf16.gmra.mxu0 %v3381
        %v3395 = vpop.f32.mrf.mxu0
        %v3396 = vadd.f32 0.0, %v3395
        %v3397 = vpop.f32.mrf.mxu0
        %3398 = vdwg.mxu0
        %3399 = vrot.lane.b32.xlu0 %v3231, 104
        %v3400 = vpop.permute.xlu0 %3399
        %3401 = vrot.lane.b32.xlu0 %v3232, 104
        %v3402 = vpop.permute.xlu0 %3401
        %v3404 = vsel %vm2652, %v3400, 0
        %v3407 = vsel %vm2652, %v3402, 0
        %3409 = vmatpush.bf16.xpose.msra.mxu0 0
        %3410 = vmatpush.bf16.xpose.msra.mxu0 0
        %3411 = vmatpush.bf16.xpose.msra.mxu0 0
        %3412 = vmatpush.bf16.xpose.msra.mxu0 0
        %3413 = vmatpush.bf16.xpose.msra.mxu0 0
        %3414 = vmatpush.bf16.xpose.msra.mxu0 0
        %3415 = vmatpush.bf16.xpose.msra.mxu0 0
        %3416 = vmatpush.bf16.xpose.msra.mxu0 %v3407
        %3417 = vmatmul.bf16.gmra.mxu0 %v3404
        %v3418 = vpop.f32.mrf.mxu0
        %v3419 = vadd.f32 0.0, %v3418
        %v3420 = vpop.f32.mrf.mxu0
        %3421 = vdwg.mxu0
        %v3422 = vsel %vm2652, %v3419, -inf
        %3423 = vmax.xlane.f32.xlu0 %v3422
        %v3424 = vpop.xlane.xlu0 %3423
        %v3425 = vsub.f32 %v3419, %v3424
        %v3426 = vmul.f32 %v3425, 1.442695
        %v3427 = vpow.pop %v3426
        %v3428 = vsel %vm2652, %v3427, 0.0
        %3429 = vadd.xlane.f32.xlu0 %v3428
        %v3430 = vpop.xlane.xlu0 %3429
        %v3431 = vrcp.pop %v3430
        %v3432 = vmul.f32 %v3427, %v3431
        %v3433 = vpack.c.bf16 %v3432, %v3432
        %3434 = vrot.lane.b32.xlu0 %v3233, 104
        %v3435 = vpop.permute.xlu0 %3434
        %v3437 = vsel %vm2652, %v3433, 0
        %v3440 = vsel %vm1054, %v3435, 0
        %3442 = vmatpush.bf16.msra.mxu0 0
        %3443 = vmatpush.bf16.msra.mxu0 0
        %3444 = vmatpush.bf16.msra.mxu0 0
        %3445 = vmatpush.bf16.msra.mxu0 0
        %3446 = vmatpush.bf16.msra.mxu0 0
        %3447 = vmatpush.bf16.msra.mxu0 0
        %3448 = vmatpush.bf16.msra.mxu0 0
        %3449 = vmatpush.bf16.msra.mxu0 %v3440
        %3450 = vmatmul.bf16.gmra.mxu0 %v3437
        %v3451 = vpop.f32.mrf.mxu0
        %v3452 = vadd.f32 0.0, %v3451
        %v3453 = vpop.f32.mrf.mxu0
        %3454 = vdwg.mxu0
        %3456 = vrot.lane.b32.xlu0 %v3340, 8
        %v3457 = vpop.permute.xlu0 %3456
        %3460 = vrot.lane.b32.xlu0 %v3396, 16
        %v3461 = vpop.permute.xlu0 %3460
        %3464 = vrot.lane.b32.xlu0 %v3452, 24
        %v3465 = vpop.permute.xlu0 %3464
        %v3467 = vsel %vm2652, %v3281, %v3457
        %v3468 = vsel %vm2887, %v3467, %v3461
        %v3469 = vsel %vm2889, %v3468, %v3465
        %v3470 = vpack.c.bf16 %v3469, %v3469
        %s3471 = scalar_lea.vmem [#allocation14], 16
        %v3472 = vld [vmem:[%s3471] sm:$0xf]
        %v3473 = vld [vmem:[%s3471 + $0x4] sm:$0xf]
        %v3474 = vld [vmem:[%s3471 + $0x8] sm:$0xf]
        %v3475 = vld [vmem:[%s3471 + $0xc] sm:$0xf]
        %s3476 = scalar_lea.vmem [#allocation16], 1
        %v3477 = vld [vmem:[%s3476] sm:$0x1]
        %v3479 = vperm.slane %v3477, 0
        %v3485 = vunpack.c.l.b16 %v3472
        %v3486 = vunpack.c.l.b16 %v3473
        %v3487 = vunpack.c.l.b16 %v3474
        %v3488 = vunpack.c.l.b16 %v3475
        %v3489 = vpack.c.b16 %v3486, %v3485
        %v3490 = vpack.c.b16 %v3488, %v3487
        %v3494 = vsel %vm1086, %v3470, 0
        %3496 = vmatpush.bf16.msra.mxu0 0
        %3497 = vmatpush.bf16.msra.mxu0 0
        %3498 = vmatpush.bf16.msra.mxu0 0
        %3499 = vmatpush.bf16.msra.mxu0 0
        %3500 = vmatpush.bf16.msra.mxu0 0
        %3501 = vmatpush.bf16.msra.mxu0 0
        %3502 = vmatpush.bf16.msra.mxu0 %v3490
        %3503 = vmatpush.bf16.msra.mxu0 %v3489
        %3504 = vmatmul.bf16.gmra.mxu0 %v3494
        %v3505 = vpop.f32.mrf.mxu0
        %v3506 = vadd.f32 %v3479, %v3505
        %v3507 = vpop.f32.mrf.mxu0
        %3508 = vdwg.mxu0
        %v3509 = vadd.f32 %v3120, %v3506
        %s3510 = scalar_lea.vmem [#allocation17], 1
        %v3511 = vld [vmem:[%s3510] sm:$0x1]
        %s3512 = scalar_lea.vmem [#allocation19], 1
        %v3513 = vld [vmem:[%s3512] sm:$0x1]
        %v3514 = vsel %vm1086, %v3509, 0.0
        %3515 = vadd.xlane.f32.xlu0 %v3514
        %v3516 = vpop.xlane.xlu0 %3515
        %v3517 = vmul.f32 %v3516, %v2940
        %v3518 = vsub.f32 %v3509, %v3517
        %v3519 = vmul.f32 %v3518, %v3518
        %v3520 = vsel %vm1086, %v3519, 0.0
        %3521 = vadd.xlane.f32.xlu0 %v3520
        %v3522 = vpop.xlane.xlu0 %3521
        %v3523 = vmul.f32 %v3522, %v2940
        %v3524 = vadd.f32 %v3523, 1e-05
        %v3525 = vrsqrt.pop %v3524
        %v3526 = vmul.f32 %v3525, %v3524
        %v3527 = vmul.f32 %v3526, %v3525
        %v3528 = vmul.f32 0.5, %v3527
        %v3529 = vsub.f32 1.5, %v3528
        %v3530 = vmul.f32 %v3525, %v3529
        %vm3531 = vweird.f32 %v3524
        %vm3532 = vweird.f32 %v3525
        %vm3533 = vmor %vm3531, %vm3532
        %v3534 = vsel %vm3533, %v3525, %v3530
        %v3535 = vmul.f32 %v3518, %v3534
        %v3537 = vperm.slane %v3511, 0
        %v3539 = vmul.f32 %v3535, %v3537
        %v3541 = vperm.slane %v3513, 0
        %v3543 = vadd.f32 %v3539, %v3541
        %v3544 = vpack.c.bf16 %v3543, %v3543
        %s3545 = scalar_lea.vmem [#allocation20], 16
        %v3546 = vld [vmem:[%s3545] sm:$0xf]
        %v3547 = vld [vmem:[%s3545 + $0x4] sm:$0xf]
        %v3548 = vld [vmem:[%s3545 + $0x8] sm:$0xf]
        %v3549 = vld [vmem:[%s3545 + $0xc] sm:$0xf]
        %s3550 = scalar_lea.vmem [#allocation22], 1
        %v3551 = vld [vmem:[%s3550] sm:$0x1]
        %v3553 = vperm.slane %v3551, 0
        %v3559 = vunpack.c.l.b16 %v3546
        %v3560 = vunpack.c.l.b16 %v3547
        %v3561 = vunpack.c.l.b16 %v3548
        %v3562 = vunpack.c.l.b16 %v3549
        %v3563 = vpack.c.b16 %v3560, %v3559
        %v3564 = vpack.c.b16 %v3562, %v3561
        %v3568 = vsel %vm1086, %v3544, 0
        %3570 = vmatpush.bf16.msra.mxu0 0
        %3571 = vmatpush.bf16.msra.mxu0 0
        %3572 = vmatpush.bf16.msra.mxu0 0
        %3573 = vmatpush.bf16.msra.mxu0 0
        %3574 = vmatpush.bf16.msra.mxu0 0
        %3575 = vmatpush.bf16.msra.mxu0 0
        %3576 = vmatpush.bf16.msra.mxu0 %v3564
        %3577 = vmatpush.bf16.msra.mxu0 %v3563
        %3578 = vmatmul.bf16.gmra.mxu0 %v3568
        %v3579 = vpop.f32.mrf.mxu0
        %v3580 = vadd.f32 %v3553, %v3579
        %v3581 = vpop.f32.mrf.mxu0
        %3582 = vdwg.mxu0
        %v3583 = vmax.f32 %v3580, 0.0
        %v3584 = vpack.c.bf16 %v3583, %v3583
        %s3585 = scalar_lea.vmem %s19, 64
        %v3586 = vld [vmem:[%s3585] sm:$0xf]
        %v3587 = vld [vmem:[%s3585 + $0x4] sm:$0xf]
        %v3588 = vld [vmem:[%s3585 + $0x8] sm:$0xf]
        %v3589 = vld [vmem:[%s3585 + $0xc] sm:$0xf]
        %v3590 = vld [vmem:[%s3585 + $0x10] sm:$0xf]
        %v3591 = vld [vmem:[%s3585 + $0x14] sm:$0xf]
        %v3592 = vld [vmem:[%s3585 + $0x18] sm:$0xf]
        %v3593 = vld [vmem:[%s3585 + $0x1c] sm:$0xf]
        %v3594 = vld [vmem:[%s3585 + $0x20] sm:$0xf]
        %v3595 = vld [vmem:[%s3585 + $0x24] sm:$0xf]
        %v3596 = vld [vmem:[%s3585 + $0x28] sm:$0xf]
        %v3597 = vld [vmem:[%s3585 + $0x2c] sm:$0xf]
        %v3598 = vld [vmem:[%s3585 + $0x30] sm:$0xf]
        %v3599 = vld [vmem:[%s3585 + $0x34] sm:$0xf]
        %v3600 = vld [vmem:[%s3585 + $0x38] sm:$0xf]
        %v3601 = vld [vmem:[%s3585 + $0x3c] sm:$0xf]
        %s3602 = scalar_lea.vmem [#allocation23], 1
        %v3603 = vld [vmem:[%s3602] sm:$0x1]
        %v3605 = vperm.slane %v3603, 0
        %v3623 = vunpack.c.l.b16 %v3586
        %v3624 = vunpack.c.l.b16 %v3587
        %v3625 = vunpack.c.l.b16 %v3588
        %v3626 = vunpack.c.l.b16 %v3589
        %v3627 = vunpack.c.l.b16 %v3590
        %v3628 = vunpack.c.l.b16 %v3591
        %v3629 = vunpack.c.l.b16 %v3592
        %v3630 = vunpack.c.l.b16 %v3593
        %v3631 = vunpack.c.l.b16 %v3594
        %v3632 = vunpack.c.l.b16 %v3595
        %v3633 = vunpack.c.l.b16 %v3596
        %v3634 = vunpack.c.l.b16 %v3597
        %v3635 = vunpack.c.l.b16 %v3598
        %v3636 = vunpack.c.l.b16 %v3599
        %v3637 = vunpack.c.l.b16 %v3600
        %v3638 = vunpack.c.l.b16 %v3601
        %v3639 = vpack.c.b16 %v3624, %v3623
        %v3640 = vpack.c.b16 %v3626, %v3625
        %v3641 = vpack.c.b16 %v3628, %v3627
        %v3642 = vpack.c.b16 %v3630, %v3629
        %v3643 = vpack.c.b16 %v3632, %v3631
        %v3644 = vpack.c.b16 %v3634, %v3633
        %v3645 = vpack.c.b16 %v3636, %v3635
        %v3646 = vpack.c.b16 %v3638, %v3637
        %3655 = vmatpush.bf16.msra.mxu0 %v3646
        %3656 = vmatpush.bf16.msra.mxu0 %v3645
        %3657 = vmatpush.bf16.msra.mxu0 %v3644
        %3658 = vmatpush.bf16.msra.mxu0 %v3643
        %3659 = vmatpush.bf16.msra.mxu0 %v3642
        %3660 = vmatpush.bf16.msra.mxu0 %v3641
        %3661 = vmatpush.bf16.msra.mxu0 %v3640
        %3662 = vmatpush.bf16.msra.mxu0 %v3639
        %3663 = vmatmul.bf16.gmra.mxu0 %v3584
        %v3664 = vpop.f32.mrf.mxu0
        %v3665 = vadd.f32 %v3605, %v3664
        %v3666 = vpop.f32.mrf.mxu0
        %3667 = vdwg.mxu0
        %v3668 = vadd.f32 %v3543, %v3665
        %s3669 = scalar_lea.vmem %s21, 1
        %v3670 = vld [vmem:[%s3669] sm:$0x1]
        %s3671 = scalar_lea.vmem %s22, 1
        %v3672 = vld [vmem:[%s3671] sm:$0x1]
        %v3673 = vsel %vm1086, %v3668, 0.0
        %3674 = vadd.xlane.f32.xlu0 %v3673
        %v3675 = vpop.xlane.xlu0 %3674
        %v3676 = vmul.f32 %v3675, %v2940
        %v3677 = vsub.f32 %v3668, %v3676
        %v3678 = vmul.f32 %v3677, %v3677
        %v3679 = vsel %vm1086, %v3678, 0.0
        %3680 = vadd.xlane.f32.xlu0 %v3679
        %v3681 = vpop.xlane.xlu0 %3680
        %v3682 = vmul.f32 %v3681, %v2940
        %v3683 = vadd.f32 %v3682, 1e-05
        %v3684 = vrsqrt.pop %v3683
        %v3685 = vmul.f32 %v3684, %v3683
        %v3686 = vmul.f32 %v3685, %v3684
        %v3687 = vmul.f32 0.5, %v3686
        %v3688 = vsub.f32 1.5, %v3687
        %v3689 = vmul.f32 %v3684, %v3688
        %vm3690 = vweird.f32 %v3683
        %vm3691 = vweird.f32 %v3684
        %vm3692 = vmor %vm3690, %vm3691
        %v3693 = vsel %vm3692, %v3684, %v3689
        %v3694 = vmul.f32 %v3677, %v3693
        %v3696 = vperm.slane %v3670, 0
        %v3698 = vmul.f32 %v3694, %v3696
        %v3700 = vperm.slane %v3672, 0
        %v3702 = vadd.f32 %v3698, %v3700
        %v3703 = vpack.c.bf16 %v3702, %v3702
        %v3704 = vld [vmem:[%s23] sm:$0xf]
        %v3705 = vld [vmem:[%s23 + $0x4] sm:$0xf]
        %v3706 = vld [vmem:[%s23 + $0x8] sm:$0xf]
        %v3707 = vld [vmem:[%s23 + $0xc] sm:$0xf]
        %v3708 = vld [vmem:[%s24] sm:$0x1]
        %v3710 = vshrl.u32 %v3703, 16
        %v3712 = vrot.slane %v3710, 3
        %v3717 = vunpack.c.l.b16 %v3704
        %v3718 = vunpack.c.l.b16 %v3705
        %v3719 = vunpack.c.l.b16 %v3706
        %v3720 = vunpack.c.l.b16 %v3707
        %v3721 = vpack.c.b16 %v3718, %v3717
        %v3722 = vpack.c.b16 %v3720, %v3719
        %v3726 = vsel %vm1086, %v3712, 0
        %3728 = vmatpush.bf16.msra.mxu0 0
        %3729 = vmatpush.bf16.msra.mxu0 0
        %3730 = vmatpush.bf16.msra.mxu0 0
        %3731 = vmatpush.bf16.msra.mxu0 0
        %3732 = vmatpush.bf16.msra.mxu0 0
        %3733 = vmatpush.bf16.msra.mxu0 0
        %3734 = vmatpush.bf16.msra.mxu0 %v3722
        %3735 = vmatpush.bf16.msra.mxu0 %v3721
        %3736 = vmatmul.bf16.gmra.mxu0 %v3726
        %v3737 = vpop.f32.mrf.mxu0
        %v3738 = vadd.f32 %v3708, %v3737
        %v3739 = vpop.f32.mrf.mxu0
        %3740 = vdwg.mxu0
        %v3741 = vmax.f32 %v3738, 0.0
        %v3742 = vpack.c.bf16 %v3741, %v3741
        %v3743 = vld [vmem:[%s25] sm:$0xf]
        %v3744 = vld [vmem:[%s25 + $0x4] sm:$0xf]
        %v3745 = vld [vmem:[%s26] sm:$0x1]
        %v3748 = vunpack.c.l.b16 %v3743
        %v3749 = vunpack.c.l.b16 %v3744
        %v3750 = vpack.c.b16 %v3749, %v3748
        %v3753 = vsel %vm2887, %v3742, 0
        %3755 = vmatpush.bf16.msra.mxu0 0
        %3756 = vmatpush.bf16.msra.mxu0 0
        %3757 = vmatpush.bf16.msra.mxu0 0
        %3758 = vmatpush.bf16.msra.mxu0 0
        %3759 = vmatpush.bf16.msra.mxu0 0
        %3760 = vmatpush.bf16.msra.mxu0 0
        %3761 = vmatpush.bf16.msra.mxu0 0
        %3762 = vmatpush.bf16.msra.mxu0 %v3750
        %3763 = vmatmul.bf16.gmra.mxu0 %v3753
        %v3764 = vpop.f32.mrf.mxu0
        %v3765 = vadd.f32 %v3745, %v3764
        %v3766 = vpop.f32.mrf.mxu0
        %3767 = vdwg.mxu0
        %3768 = vst [vmem:[%s1038] sm:$0x1] %v3765
        %s3769 = sand.u32 %s629, 1
        %s3770 = scalar_lea.sflag [#allocation4], %s3769
        %s3771 = sand.u32 %s629, 1
        %s3772 = scalar_lea.vmem [#allocation25], %s3771
        // Predicated region
        $region185: #{tpu_custom_call.1} parent=127 // pred_check
          %p3773 = pneg %p639
        $region186: #{tpu_custom_call.1} parent=127 // pred_check_branch
          %3775 = sbr.rel (%p3773) target = $region188
        $region187: #{tpu_custom_call.1} parent=127 // pred_region
          %3777 = vsyncadd %s3770, 0
          %s3778 = scalar_lea.hbm %s27, %s49
          %s3780 = sshll.u32 %s3772, 4
          %s3781 = int_to_ptr.vmem [resolvable:$true] %s3780
          %s3782 = sshll.u32 %s3778, 4
          %s3783 = int_to_ptr.hbm [resolvable:$true] %s3782
          %3785 = dma.vmem_to_hbm [thread:$0]  %s3781, 16, %s3783, %s3770
        $region188: #{tpu_custom_call.1} parent=127 // pred_fallthru
          _
      $region128: #{tpu_custom_call.1} parent=5 // pred_fallthru
        _
      %p3786 = scmp.le.s32.totalorder 2, %s44
      // Predicated region
      $region189: #{tpu_custom_call.1} parent=5 // pred_check
        %p3787 = pneg %p3786
      $region190: #{tpu_custom_call.1} parent=5 // pred_check_branch
        %3789 = sbr.rel (%p3787) target = $region192
      $region191: #{tpu_custom_call.1} parent=5 // pred_region
        %s3790 = ssub.s32 %s44, 2
        // Predicated region
        $region193: #{tpu_custom_call.1} parent=191 // pred_check
          %p3791 = pneg %p645
        $region194: #{tpu_custom_call.1} parent=191 // pred_check_branch
          %3793 = sbr.rel (%p3791) target = $region196
        $region195: #{tpu_custom_call.1} parent=191 // pred_region
          %s3794 = sand.u32 %s630, 1
          %s3795 = scalar_lea.sflag [#allocation4], %s3794
          %s3796 = sand.u32 %s630, 1
          %s3797 = scalar_lea.vmem [#allocation25], %s3796
          %3799 = dma.done %s3795, 16
        $region196: #{tpu_custom_call.1} parent=191 // pred_fallthru
          _
      $region192: #{tpu_custom_call.1} parent=5 // pred_fallthru
        _
    $region6: #{tpu_custom_call.1} parent=1 // loop_footer
      %s48 = sadd.s32 1, %s44
    $region7: #{tpu_custom_call.1} parent=1 // loop_footer_branch
      %43 = sbr.rel target = $region3
    $region8: #{tpu_custom_call.1} parent=1 // loop_exit
      _
    %3800 = vsyncpa [#allocation3], 1
    %s3801 = scalar_lea.sflag [#allocation3], 1
    %3802 = vsyncpa %s3801, 1
    %3803 = vsyncpa [#allocation6], 1
    %3804 = vsyncpa [#allocation9], 1
    %3805 = vsyncpa [#allocation12], 1
    %3806 = vsyncpa [#allocation15], 1
    %3807 = vsyncpa [#allocation18], 1
    %3808 = vsyncpa [#allocation21], 1
    %3809 = vsyncpa [#allocation24], 1
    %3810 = vsyncpa [#allocation4], 1
    %s3811 = scalar_lea.sflag [#allocation4], 1
    %3812 = vsyncpa %s3811, 1

</llo_original>
